<compile_context>
chip_gen: v6e
topology: v6e:2x2x1
jax: 0.10.0
libtpu: 0.0.40
codegen_flags: <defaults>
</compile_context>

<pallas_src>
import math
from functools import partial

import jax
import jax.numpy as jnp
from jax.experimental import pallas as pl
from jax.experimental.pallas import tpu as pltpu


def _round_up(x, m):
    return (x + m - 1) // m * m


# ---------------------------------------------------------------------------
# Conv layer: stride-1 "tap" conv inside a single Pallas kernel.
#
# The wrapper space-to-depths a strided conv (kernel k, stride s, k % s == 0)
# into a stride-1 conv with kernel m = k//s over Cd = s*s*C channels, pads one
# extra spatial row, and flattens (H', W') rows so every tap's input slab is a
# CONTIGUOUS block of rows.  The kernel accumulates
#     acc += x[rows a*W'+b : a*W'+b+OH*W'] @ w_tap[a,b]
# over the m*m taps (f32 accumulation), then fuses bias + ReLU.  Output is
# (OH*W', OC); columns >= OW of each row are wrap-around garbage and are
# sliced off by the (plain-JAX) glue before the next layer.
# ---------------------------------------------------------------------------
def _conv_taps_kernel(x_ref, w_ref, b_ref, o_ref, *, m, wd, m_out):
    # x_ref: (NB, Min, Cd) bf16   w_ref: (m*m, Cd, OC) bf16
    # b_ref: (1, OC) f32          o_ref: (NB, m_out, OC) bf16
    nb = x_ref.shape[0]
    oc = o_ref.shape[-1]
    bias = b_ref[...]                                    # (1, OC) f32
    for n in range(nb):
        acc = jnp.zeros((m_out, oc), jnp.float32)
        for t in range(m * m):
            ti, tj = t // m, t % m
            start = ti * wd + tj                         # static offset
            xs = x_ref[n, start:start + m_out, :]        # (m_out, Cd) bf16
            acc = acc + jnp.dot(xs, w_ref[t],
                                preferred_element_type=jnp.float32)
        acc = jnp.maximum(acc + bias, 0.0)               # fused bias + ReLU
        o_ref[n, :, :] = acc.astype(o_ref.dtype)


def _prep_conv_input(x_nhwc, k, s):
    """NHWC activation -> space-to-depth + flattened rows for the tap kernel.

    Returns (x2d, (OH, OW, Wd, m)) with x2d: (N, (Hd+1)*Wd, s*s*C) bf16.
    Pure reshapes/transpose/pad — one pass over the data, no k*k duplication.
    """
    N, H, W, C = x_nhwc.shape
    assert k % s == 0
    m = k // s
    OH = (H - k) // s + 1
    OW = (W - k) // s + 1
    Hc, Wc = s * (OH + m - 1), s * (OW + m - 1)          # crop to used extent
    x = x_nhwc[:, :Hc, :Wc, :]
    Hd, Wd = Hc // s, Wc // s
    x = x.reshape(N, Hd, s, Wd, s, C).transpose(0, 1, 3, 2, 4, 5)
    x = x.reshape(N, Hd, Wd, s * s * C)
    x = jnp.pad(x, ((0, 0), (0, 1), (0, 0), (0, 0)))     # 1 extra spatial row
    x = x.reshape(N, (Hd + 1) * Wd, s * s * C)
    return x, (OH, OW, Wd, m)


def conv_layer_pallas(x2d, w_taps, bias, *, oh, wd, m):
    N, Min, Cd = x2d.shape
    T, Cd2, OC = w_taps.shape
    assert Cd == Cd2 and T == m * m
    m_out = oh * wd
    NB = N if N <= 8 else 8                               # batch rows / grid step
    grid = (pl.cdiv(N, NB),)
    kernel = partial(_conv_taps_kernel, m=m, wd=wd, m_out=m_out)
    return pl.pallas_call(
        kernel,
        out_shape=jax.ShapeDtypeStruct((N, m_out, OC), jnp.bfloat16),
        grid=grid,
        in_specs=[
            pl.BlockSpec((NB, Min, Cd), lambda i: (i, 0, 0)),
            pl.BlockSpec((T, Cd, OC), lambda i: (0, 0, 0)),   # weights resident
            pl.BlockSpec((1, OC), lambda i: (0, 0)),
        ],
        out_specs=pl.BlockSpec((NB, m_out, OC), lambda i: (i, 0, 0)),
        compiler_params=pltpu.CompilerParams(
            dimension_semantics=("parallel",),            # megacore over batch
            vmem_limit_bytes=32 * 1024 * 1024),
    )(x2d, w_taps, bias)


# ---------------------------------------------------------------------------
# Fused FC head: (x @ W1 + b1, ReLU) -> VMEM scratch -> (@ W2 + b2)
# One pallas_call, M-tiled grid ("parallel"), lane-dense (128-padded) output.
# ---------------------------------------------------------------------------
def _fc_head_kernel(x_ref, w1_ref, b1_ref, w2_ref, b2_ref, o_ref, h_ref):
    h = jnp.dot(x_ref[...], w1_ref[...], preferred_element_type=jnp.float32)
    h = jnp.maximum(h + b1_ref[...], 0.0)
    h_ref[...] = h.astype(h_ref.dtype)                    # hidden stays in VMEM
    q = jnp.dot(h_ref[...], w2_ref[...], preferred_element_type=jnp.float32)
    o_ref[...] = (q + b2_ref[...]).astype(o_ref.dtype)


def fc_head_pallas(x, w1, b1, w2, b2):
    M, F = x.shape
    F2, H1 = w1.shape
    H12, Ap = w2.shape
    assert F == F2 and H1 == H12
    tm = M if M <= 256 else 256                           # v5e: 128 also fine
    grid = (pl.cdiv(M, tm),)
    return pl.pallas_call(
        _fc_head_kernel,
        out_shape=jax.ShapeDtypeStruct((M, Ap), jnp.float32),
        grid=grid,
        in_specs=[
            pl.BlockSpec((tm, F), lambda i: (i, 0)),
            pl.BlockSpec((F, H1), lambda i: (0, 0)),      # weights stay resident
            pl.BlockSpec((1, H1), lambda i: (0, 0)),
            pl.BlockSpec((H1, Ap), lambda i: (0, 0)),
            pl.BlockSpec((1, Ap), lambda i: (0, 0)),
        ],
        out_specs=pl.BlockSpec((tm, Ap), lambda i: (i, 0)),
        scratch_shapes=[pltpu.VMEM((tm, H1), jnp.bfloat16)],
        compiler_params=pltpu.CompilerParams(
            dimension_semantics=("parallel",),
            vmem_limit_bytes=32 * 1024 * 1024),
    )(x, w1, b1, w2, b2)


# ---------------------------------------------------------------------------
# Forward pass (matches PyTorch QLearner.forward semantics)
# ---------------------------------------------------------------------------
def qlearner_forward(x_nchw, kp, num_actions):
    x = jnp.transpose(x_nchw, (0, 2, 3, 1)).astype(jnp.bfloat16)   # NCHW->NHWC
    for idx, (k, s) in ((1, (8, 4)), (2, (4, 2)), (3, (3, 1))):
        x2d, (oh, ow, wd, m) = _prep_conv_input(x, k, s)
        y = conv_layer_pallas(x2d, kp[f"w{idx}"], kp[f"b{idx}"], oh=oh, wd=wd, m=m)
        x = y.reshape(y.shape[0], oh, wd, -1)[:, :, :ow, :]        # drop garbage cols
    # NHWC flatten; wf1 rows were permuted at init so this equals torch's
    # NCHW x.view(N, -1) @ fc1.weight.T
    feats = x.reshape(x.shape[0], -1)
    q = fc_head_pallas(feats, kp["wf1"], kp["bf1"], kp["wf2"], kp["bf2"])
    return q[:, :num_actions]


# ---------------------------------------------------------------------------
# Parameter init (PyTorch layouts) + one-time conversion to kernel layouts
# ---------------------------------------------------------------------------
def init_params(key, in_ch, H, W, num_actions):
    h1, w1 = (H - 8) // 4 + 1, (W - 8) // 4 + 1
    h2, w2 = (h1 - 4) // 2 + 1, (w1 - 4) // 2 + 1
    h3, w3 = h2 - 2, w2 - 2
    feat = 64 * h3 * w3                                   # == self.feature_size()

    def u(k, shape, fan_in):
        b = 1.0 / math.sqrt(fan_in)
        return jax.random.uniform(k, shape, jnp.float32, -b, b)

    ks = jax.random.split(key, 10)
    torch_p = {
        "w1": u(ks[0], (32, in_ch, 8, 8), in_ch * 64), "b1": u(ks[1], (32,), in_ch * 64),
        "w2": u(ks[2], (64, 32, 4, 4), 32 * 16),       "b2": u(ks[3], (64,), 32 * 16),
        "w3": u(ks[4], (64, 64, 3, 3), 64 * 9),        "b3": u(ks[5], (64,), 64 * 9),
        "fc1_w": u(ks[6], (512, feat), feat),          "fc1_b": u(ks[7], (512,), feat),
        "fc2_w": u(ks[8], (num_actions, 512), 512),    "fc2_b": u(ks[9], (num_actions,), 512),
    }
    return torch_p, (h3, w3, feat)


def prepare_params(tp, h3, w3):
    """One-time conversion: tap-major bf16 conv weights, NHWC-permuted fc1,
    lane-padded fc2.  Nothing is padded/reshaped in the forward path."""
    def conv_taps(w_oihw, s):
        OC, IC, KH, KW = w_oihw.shape
        m = KH // s
        w = jnp.transpose(w_oihw, (2, 3, 1, 0))            # (KH, KW, IC, OC)
        w = w.reshape(m, s, m, s, IC, OC)                  # (a, p, b, q, IC, OC)
        w = jnp.transpose(w, (0, 2, 1, 3, 4, 5))           # (a, b, p, q, IC, OC)
        return w.reshape(m * m, s * s * IC, OC).astype(jnp.bfloat16)

    C3 = tp["w3"].shape[0]
    A = tp["fc2_w"].shape[0]
    Ap = _round_up(A, 128)
    # torch fc1 row index = c*H*W + h*W + w  ->  NHWC flatten h*W*C + w*C + c
    wf1 = tp["fc1_w"].reshape(512, C3, h3, w3).transpose(2, 3, 1, 0)
    wf1 = wf1.reshape(h3 * w3 * C3, 512)
    wf2 = jnp.zeros((512, Ap), jnp.float32).at[:, :A].set(tp["fc2_w"].T)
    bf2 = jnp.zeros((1, Ap), jnp.float32).at[0, :A].set(tp["fc2_b"])
    return {
        "w1": conv_taps(tp["w1"], 4), "b1": tp["b1"].reshape(1, -1),
        "w2": conv_taps(tp["w2"], 2), "b2": tp["b2"].reshape(1, -1),
        "w3": conv_taps(tp["w3"], 1), "b3": tp["b3"].reshape(1, -1),
        "wf1": wf1.astype(jnp.bfloat16), "bf1": tp["fc1_b"].reshape(1, -1),
        "wf2": wf2.astype(jnp.bfloat16), "bf2": bf2,
    }


# Pure-JAX reference (same bf16-input / f32-accumulate numerics) for checking.
def reference_forward(x_nchw, tp):
    bf = jnp.bfloat16

    def conv(x, w, b, s):
        y = jax.lax.conv_general_dilated(
            x.astype(bf), w.astype(bf), window_strides=(s, s), padding="VALID",
            dimension_numbers=("NCHW", "OIHW", "NCHW"),
            preferred_element_type=jnp.float32)
        return jnp.maximum(y + b[None, :, None, None], 0.0).astype(bf)

    x = conv(x_nchw, tp["w1"], tp["b1"], 4)
    x = conv(x, tp["w2"], tp["b2"], 2)
    x = conv(x, tp["w3"], tp["b3"], 1)
    f = x.reshape(x.shape[0], -1)                          # NCHW flatten (torch)
    h = jnp.dot(f, tp["fc1_w"].T.astype(bf), preferred_element_type=jnp.float32)
    h = jnp.maximum(h + tp["fc1_b"], 0.0).astype(bf)
    q = jnp.dot(h, tp["fc2_w"].T.astype(bf), preferred_element_type=jnp.float32)
    return q + tp["fc2_b"]


# TODO(synk): act() (epsilon-greedy sampling), the replay buffer, and
# copy_from() are host-side RL bookkeeping, not forward-pass compute, and are
# intentionally not implemented as kernels.

if __name__ == "__main__":
    # Small conv-stride-compatible shapes: obs (4, 44, 44) -> 10 -> 4 -> 2,
    # feature_size = 64 * 2 * 2 = 256.
    batch, in_ch, H, W = 2, 4, 44, 44
    num_actions = 6

    key = jax.random.PRNGKey(0)
    kp_key, kx = jax.random.split(key)
    torch_params, (h3, w3, feat) = init_params(kp_key, in_ch, H, W, num_actions)
    kparams = prepare_params(torch_params, h3, w3)

    x = jax.random.normal(kx, (batch, in_ch, H, W), jnp.float32)   # NCHW input

    fwd = jax.jit(qlearner_forward, static_argnums=(2,))
    q_values = jax.block_until_ready(fwd(x, kparams, num_actions))

    assert q_values.shape == (batch, num_actions), q_values.shape
    assert bool(jnp.all(jnp.isfinite(q_values)))

    q_ref = jax.block_until_ready(reference_forward(x, torch_params))
    assert jnp.allclose(q_values, q_ref, rtol=2e-2, atol=2e-2), \
        float(jnp.max(jnp.abs(q_values - q_ref)))

    print("KERNEL_OK")
</pallas_src>

<mosaic_0001>
module attributes {stable_mosaic.version = 11 : i64} {
  func.func @_conv_taps_kernel(%arg0: i32, %arg1: memref<2x132x64xbf16, #tpu.memory_space<vmem>>, %arg2: memref<4x64x32xbf16, #tpu.memory_space<vmem>>, %arg3: memref<1x32xf32, #tpu.memory_space<vmem>>, %arg4: memref<2x110x32xbf16, #tpu.memory_space<vmem>>) attributes {dimension_semantics = [#tpu.dimension_semantics<parallel>], iteration_bounds = array<i64: 1>, scalar_prefetch = 0 : i64, scratch_operands = 0 : i64, tpu.core_type = #tpu.core_type<tc>, window_params = [{transform_indices = @transform_0, window_bounds = array<i64: 2, 132, 64>}, {pipeline_mode = #tpu.pipeline_mode<synchronous>, transform_indices = @transform_1, window_bounds = array<i64: 4, 64, 32>}, {pipeline_mode = #tpu.pipeline_mode<synchronous>, transform_indices = @transform_2, window_bounds = array<i64: 1, 32>}, {transform_indices = @transform_3, window_bounds = array<i64: 2, 110, 32>}]} {
    %c0 = arith.constant 0 : index
    %c0_0 = arith.constant 0 : index
    %0 = vector.load %arg3[%c0, %c0_0] : memref<1x32xf32, #tpu.memory_space<vmem>>, vector<1x32xf32>
    %cst = arith.constant 0.000000e+00 : f32
    %1 = vector.broadcast %cst : f32 to vector<110x32xf32>
    %c0_1 = arith.constant 0 : index
    %c0_2 = arith.constant 0 : index
    %c0_3 = arith.constant 0 : index
    %2 = vector.load %arg1[%c0_1, %c0_2, %c0_3] : memref<2x132x64xbf16, #tpu.memory_space<vmem>>, vector<1x110x64xbf16>
    %3 = vector.shape_cast %2 : vector<1x110x64xbf16> to vector<110x64xbf16>
    %c0_4 = arith.constant 0 : index
    %c0_5 = arith.constant 0 : index
    %c0_6 = arith.constant 0 : index
    %4 = vector.load %arg2[%c0_4, %c0_5, %c0_6] : memref<4x64x32xbf16, #tpu.memory_space<vmem>>, vector<1x64x32xbf16>
    %5 = vector.shape_cast %4 : vector<1x64x32xbf16> to vector<64x32xbf16>
    %cst_7 = arith.constant dense<0.000000e+00> : vector<110x32xf32>
    %6 = tpu.matmul %3, %5, %cst_7 {dimension_numbers = #tpu.dot_dimension_numbers<[1], [0], [0], [1], [0, 0, 1, 1], [], []>} : vector<110x64xbf16>, vector<64x32xbf16>, vector<110x32xf32> -> vector<110x32xf32>
    %7 = arith.addf %1, %6 : vector<110x32xf32>
    %c0_8 = arith.constant 0 : index
    %c1 = arith.constant 1 : index
    %c0_9 = arith.constant 0 : index
    %8 = vector.load %arg1[%c0_8, %c1, %c0_9] : memref<2x132x64xbf16, #tpu.memory_space<vmem>>, vector<1x110x64xbf16>
    %9 = vector.shape_cast %8 : vector<1x110x64xbf16> to vector<110x64xbf16>
    %c1_10 = arith.constant 1 : index
    %c0_11 = arith.constant 0 : index
    %c0_12 = arith.constant 0 : index
    %10 = vector.load %arg2[%c1_10, %c0_11, %c0_12] : memref<4x64x32xbf16, #tpu.memory_space<vmem>>, vector<1x64x32xbf16>
    %11 = vector.shape_cast %10 : vector<1x64x32xbf16> to vector<64x32xbf16>
    %cst_13 = arith.constant dense<0.000000e+00> : vector<110x32xf32>
    %12 = tpu.matmul %9, %11, %cst_13 {dimension_numbers = #tpu.dot_dimension_numbers<[1], [0], [0], [1], [0, 0, 1, 1], [], []>} : vector<110x64xbf16>, vector<64x32xbf16>, vector<110x32xf32> -> vector<110x32xf32>
    %13 = arith.addf %7, %12 : vector<110x32xf32>
    %c0_14 = arith.constant 0 : index
    %c11 = arith.constant 11 : index
    %c0_15 = arith.constant 0 : index
    %14 = vector.load %arg1[%c0_14, %c11, %c0_15] : memref<2x132x64xbf16, #tpu.memory_space<vmem>>, vector<1x110x64xbf16>
    %15 = vector.shape_cast %14 : vector<1x110x64xbf16> to vector<110x64xbf16>
    %c2 = arith.constant 2 : index
    %c0_16 = arith.constant 0 : index
    %c0_17 = arith.constant 0 : index
    %16 = vector.load %arg2[%c2, %c0_16, %c0_17] : memref<4x64x32xbf16, #tpu.memory_space<vmem>>, vector<1x64x32xbf16>
    %17 = vector.shape_cast %16 : vector<1x64x32xbf16> to vector<64x32xbf16>
    %cst_18 = arith.constant dense<0.000000e+00> : vector<110x32xf32>
    %18 = tpu.matmul %15, %17, %cst_18 {dimension_numbers = #tpu.dot_dimension_numbers<[1], [0], [0], [1], [0, 0, 1, 1], [], []>} : vector<110x64xbf16>, vector<64x32xbf16>, vector<110x32xf32> -> vector<110x32xf32>
    %19 = arith.addf %13, %18 : vector<110x32xf32>
    %c0_19 = arith.constant 0 : index
    %c12 = arith.constant 12 : index
    %c0_20 = arith.constant 0 : index
    %20 = vector.load %arg1[%c0_19, %c12, %c0_20] : memref<2x132x64xbf16, #tpu.memory_space<vmem>>, vector<1x110x64xbf16>
    %21 = vector.shape_cast %20 : vector<1x110x64xbf16> to vector<110x64xbf16>
    %c3 = arith.constant 3 : index
    %c0_21 = arith.constant 0 : index
    %c0_22 = arith.constant 0 : index
    %22 = vector.load %arg2[%c3, %c0_21, %c0_22] : memref<4x64x32xbf16, #tpu.memory_space<vmem>>, vector<1x64x32xbf16>
    %23 = vector.shape_cast %22 : vector<1x64x32xbf16> to vector<64x32xbf16>
    %cst_23 = arith.constant dense<0.000000e+00> : vector<110x32xf32>
    %24 = tpu.matmul %21, %23, %cst_23 {dimension_numbers = #tpu.dot_dimension_numbers<[1], [0], [0], [1], [0, 0, 1, 1], [], []>} : vector<110x64xbf16>, vector<64x32xbf16>, vector<110x32xf32> -> vector<110x32xf32>
    %25 = arith.addf %19, %24 : vector<110x32xf32>
    %26 = vector.broadcast %0 : vector<1x32xf32> to vector<110x32xf32>
    %27 = arith.addf %25, %26 : vector<110x32xf32>
    %cst_24 = arith.constant 0.000000e+00 : f32
    %28 = vector.broadcast %cst_24 : f32 to vector<110x32xf32>
    %29 = arith.maximumf %27, %28 : vector<110x32xf32>
    %30 = arith.truncf %29 : vector<110x32xf32> to vector<110x32xbf16>
    %c0_25 = arith.constant 0 : index
    %c0_26 = arith.constant 0 : index
    %c0_27 = arith.constant 0 : index
    %31 = vector.load %arg4[%c0_25, %c0_26, %c0_27] : memref<2x110x32xbf16, #tpu.memory_space<vmem>>, vector<1x110x32xbf16>
    %32 = vector.shape_cast %31 : vector<1x110x32xbf16> to vector<110x32xbf16>
    %33 = vector.shape_cast %30 : vector<110x32xbf16> to vector<1x110x32xbf16>
    tpu.vector_store %arg4[%c0_25, %c0_26, %c0_27], %33 {strides = array<i32>} : memref<2x110x32xbf16, #tpu.memory_space<vmem>>, vector<1x110x32xbf16>,
    %cst_28 = arith.constant 0.000000e+00 : f32
    %34 = vector.broadcast %cst_28 : f32 to vector<110x32xf32>
    %c1_29 = arith.constant 1 : index
    %c0_30 = arith.constant 0 : index
    %c0_31 = arith.constant 0 : index
    %35 = vector.load %arg1[%c1_29, %c0_30, %c0_31] : memref<2x132x64xbf16, #tpu.memory_space<vmem>>, vector<1x110x64xbf16>
    %36 = vector.shape_cast %35 : vector<1x110x64xbf16> to vector<110x64xbf16>
    %c0_32 = arith.constant 0 : index
    %c0_33 = arith.constant 0 : index
    %c0_34 = arith.constant 0 : index
    %37 = vector.load %arg2[%c0_32, %c0_33, %c0_34] : memref<4x64x32xbf16, #tpu.memory_space<vmem>>, vector<1x64x32xbf16>
    %38 = vector.shape_cast %37 : vector<1x64x32xbf16> to vector<64x32xbf16>
    %cst_35 = arith.constant dense<0.000000e+00> : vector<110x32xf32>
    %39 = tpu.matmul %36, %38, %cst_35 {dimension_numbers = #tpu.dot_dimension_numbers<[1], [0], [0], [1], [0, 0, 1, 1], [], []>} : vector<110x64xbf16>, vector<64x32xbf16>, vector<110x32xf32> -> vector<110x32xf32>
    %40 = arith.addf %34, %39 : vector<110x32xf32>
    %c1_36 = arith.constant 1 : index
    %c1_37 = arith.constant 1 : index
    %c0_38 = arith.constant 0 : index
    %41 = vector.load %arg1[%c1_36, %c1_37, %c0_38] : memref<2x132x64xbf16, #tpu.memory_space<vmem>>, vector<1x110x64xbf16>
    %42 = vector.shape_cast %41 : vector<1x110x64xbf16> to vector<110x64xbf16>
    %c1_39 = arith.constant 1 : index
    %c0_40 = arith.constant 0 : index
    %c0_41 = arith.constant 0 : index
    %43 = vector.load %arg2[%c1_39, %c0_40, %c0_41] : memref<4x64x32xbf16, #tpu.memory_space<vmem>>, vector<1x64x32xbf16>
    %44 = vector.shape_cast %43 : vector<1x64x32xbf16> to vector<64x32xbf16>
    %cst_42 = arith.constant dense<0.000000e+00> : vector<110x32xf32>
    %45 = tpu.matmul %42, %44, %cst_42 {dimension_numbers = #tpu.dot_dimension_numbers<[1], [0], [0], [1], [0, 0, 1, 1], [], []>} : vector<110x64xbf16>, vector<64x32xbf16>, vector<110x32xf32> -> vector<110x32xf32>
    %46 = arith.addf %40, %45 : vector<110x32xf32>
    %c1_43 = arith.constant 1 : index
    %c11_44 = arith.constant 11 : index
    %c0_45 = arith.constant 0 : index
    %47 = vector.load %arg1[%c1_43, %c11_44, %c0_45] : memref<2x132x64xbf16, #tpu.memory_space<vmem>>, vector<1x110x64xbf16>
    %48 = vector.shape_cast %47 : vector<1x110x64xbf16> to vector<110x64xbf16>
    %c2_46 = arith.constant 2 : index
    %c0_47 = arith.constant 0 : index
    %c0_48 = arith.constant 0 : index
    %49 = vector.load %arg2[%c2_46, %c0_47, %c0_48] : memref<4x64x32xbf16, #tpu.memory_space<vmem>>, vector<1x64x32xbf16>
    %50 = vector.shape_cast %49 : vector<1x64x32xbf16> to vector<64x32xbf16>
    %cst_49 = arith.constant dense<0.000000e+00> : vector<110x32xf32>
    %51 = tpu.matmul %48, %50, %cst_49 {dimension_numbers = #tpu.dot_dimension_numbers<[1], [0], [0], [1], [0, 0, 1, 1], [], []>} : vector<110x64xbf16>, vector<64x32xbf16>, vector<110x32xf32> -> vector<110x32xf32>
    %52 = arith.addf %46, %51 : vector<110x32xf32>
    %c1_50 = arith.constant 1 : index
    %c12_51 = arith.constant 12 : index
    %c0_52 = arith.constant 0 : index
    %53 = vector.load %arg1[%c1_50, %c12_51, %c0_52] : memref<2x132x64xbf16, #tpu.memory_space<vmem>>, vector<1x110x64xbf16>
    %54 = vector.shape_cast %53 : vector<1x110x64xbf16> to vector<110x64xbf16>
    %c3_53 = arith.constant 3 : index
    %c0_54 = arith.constant 0 : index
    %c0_55 = arith.constant 0 : index
    %55 = vector.load %arg2[%c3_53, %c0_54, %c0_55] : memref<4x64x32xbf16, #tpu.memory_space<vmem>>, vector<1x64x32xbf16>
    %56 = vector.shape_cast %55 : vector<1x64x32xbf16> to vector<64x32xbf16>
    %cst_56 = arith.constant dense<0.000000e+00> : vector<110x32xf32>
    %57 = tpu.matmul %54, %56, %cst_56 {dimension_numbers = #tpu.dot_dimension_numbers<[1], [0], [0], [1], [0, 0, 1, 1], [], []>} : vector<110x64xbf16>, vector<64x32xbf16>, vector<110x32xf32> -> vector<110x32xf32>
    %58 = arith.addf %52, %57 : vector<110x32xf32>
    %59 = vector.broadcast %0 : vector<1x32xf32> to vector<110x32xf32>
    %60 = arith.addf %58, %59 : vector<110x32xf32>
    %cst_57 = arith.constant 0.000000e+00 : f32
    %61 = vector.broadcast %cst_57 : f32 to vector<110x32xf32>
    %62 = arith.maximumf %60, %61 : vector<110x32xf32>
    %63 = arith.truncf %62 : vector<110x32xf32> to vector<110x32xbf16>
    %c1_58 = arith.constant 1 : index
    %c0_59 = arith.constant 0 : index
    %c0_60 = arith.constant 0 : index
    %64 = vector.load %arg4[%c1_58, %c0_59, %c0_60] : memref<2x110x32xbf16, #tpu.memory_space<vmem>>, vector<1x110x32xbf16>
    %65 = vector.shape_cast %64 : vector<1x110x32xbf16> to vector<110x32xbf16>
    %66 = vector.shape_cast %63 : vector<110x32xbf16> to vector<1x110x32xbf16>
    tpu.vector_store %arg4[%c1_58, %c0_59, %c0_60], %66 {strides = array<i32>} : memref<2x110x32xbf16, #tpu.memory_space<vmem>>, vector<1x110x32xbf16>,
    return
  }
  func.func @transform_0(%arg0: i32) -> (i32, i32, i32) {
    %c0_i32 = arith.constant 0 : i32
    %c0_i32_0 = arith.constant 0 : i32
    %c0_i32_1 = arith.constant 0 : i32
    return %arg0, %c0_i32, %c0_i32_0 : i32, i32, i32
  }
  func.func @transform_1(%arg0: i32) -> (i32, i32, i32) {
    %c0_i32 = arith.constant 0 : i32
    %c0_i32_0 = arith.constant 0 : i32
    %c0_i32_1 = arith.constant 0 : i32
    %c0_i32_2 = arith.constant 0 : i32
    return %c0_i32, %c0_i32_0, %c0_i32_1 : i32, i32, i32
  }
  func.func @transform_2(%arg0: i32) -> (i32, i32) {
    %c0_i32 = arith.constant 0 : i32
    %c0_i32_0 = arith.constant 0 : i32
    %c0_i32_1 = arith.constant 0 : i32
    return %c0_i32, %c0_i32_0 : i32, i32
  }
  func.func @transform_3(%arg0: i32) -> (i32, i32, i32) {
    %c0_i32 = arith.constant 0 : i32
    %c0_i32_0 = arith.constant 0 : i32
    %c0_i32_1 = arith.constant 0 : i32
    return %arg0, %c0_i32, %c0_i32_0 : i32, i32, i32
  }
}

module attributes {stable_mosaic.version = 11 : i64} {
  func.func @_conv_taps_kernel(%arg0: i32, %arg1: memref<2x30x128xbf16, #tpu.memory_space<vmem>>, %arg2: memref<4x128x64xbf16, #tpu.memory_space<vmem>>, %arg3: memref<1x64xf32, #tpu.memory_space<vmem>>, %arg4: memref<2x20x64xbf16, #tpu.memory_space<vmem>>) attributes {dimension_semantics = [#tpu.dimension_semantics<parallel>], iteration_bounds = array<i64: 1>, scalar_prefetch = 0 : i64, scratch_operands = 0 : i64, tpu.core_type = #tpu.core_type<tc>, window_params = [{transform_indices = @transform_0, window_bounds = array<i64: 2, 30, 128>}, {pipeline_mode = #tpu.pipeline_mode<synchronous>, transform_indices = @transform_1, window_bounds = array<i64: 4, 128, 64>}, {pipeline_mode = #tpu.pipeline_mode<synchronous>, transform_indices = @transform_2, window_bounds = array<i64: 1, 64>}, {transform_indices = @transform_3, window_bounds = array<i64: 2, 20, 64>}]} {
    %c0 = arith.constant 0 : index
    %c0_0 = arith.constant 0 : index
    %0 = vector.load %arg3[%c0, %c0_0] : memref<1x64xf32, #tpu.memory_space<vmem>>, vector<1x64xf32>
    %cst = arith.constant 0.000000e+00 : f32
    %1 = vector.broadcast %cst : f32 to vector<20x64xf32>
    %c0_1 = arith.constant 0 : index
    %c0_2 = arith.constant 0 : index
    %c0_3 = arith.constant 0 : index
    %2 = vector.load %arg1[%c0_1, %c0_2, %c0_3] : memref<2x30x128xbf16, #tpu.memory_space<vmem>>, vector<1x20x128xbf16>
    %3 = vector.shape_cast %2 : vector<1x20x128xbf16> to vector<20x128xbf16>
    %c0_4 = arith.constant 0 : index
    %c0_5 = arith.constant 0 : index
    %c0_6 = arith.constant 0 : index
    %4 = vector.load %arg2[%c0_4, %c0_5, %c0_6] : memref<4x128x64xbf16, #tpu.memory_space<vmem>>, vector<1x128x64xbf16>
    %5 = vector.shape_cast %4 : vector<1x128x64xbf16> to vector<128x64xbf16>
    %cst_7 = arith.constant dense<0.000000e+00> : vector<20x64xf32>
    %6 = tpu.matmul %3, %5, %cst_7 {dimension_numbers = #tpu.dot_dimension_numbers<[1], [0], [0], [1], [0, 0, 1, 1], [], []>} : vector<20x128xbf16>, vector<128x64xbf16>, vector<20x64xf32> -> vector<20x64xf32>
    %7 = arith.addf %1, %6 : vector<20x64xf32>
    %c0_8 = arith.constant 0 : index
    %c1 = arith.constant 1 : index
    %c0_9 = arith.constant 0 : index
    %8 = vector.load %arg1[%c0_8, %c1, %c0_9] : memref<2x30x128xbf16, #tpu.memory_space<vmem>>, vector<1x20x128xbf16>
    %9 = vector.shape_cast %8 : vector<1x20x128xbf16> to vector<20x128xbf16>
    %c1_10 = arith.constant 1 : index
    %c0_11 = arith.constant 0 : index
    %c0_12 = arith.constant 0 : index
    %10 = vector.load %arg2[%c1_10, %c0_11, %c0_12] : memref<4x128x64xbf16, #tpu.memory_space<vmem>>, vector<1x128x64xbf16>
    %11 = vector.shape_cast %10 : vector<1x128x64xbf16> to vector<128x64xbf16>
    %cst_13 = arith.constant dense<0.000000e+00> : vector<20x64xf32>
    %12 = tpu.matmul %9, %11, %cst_13 {dimension_numbers = #tpu.dot_dimension_numbers<[1], [0], [0], [1], [0, 0, 1, 1], [], []>} : vector<20x128xbf16>, vector<128x64xbf16>, vector<20x64xf32> -> vector<20x64xf32>
    %13 = arith.addf %7, %12 : vector<20x64xf32>
    %c0_14 = arith.constant 0 : index
    %c5 = arith.constant 5 : index
    %c0_15 = arith.constant 0 : index
    %14 = vector.load %arg1[%c0_14, %c5, %c0_15] : memref<2x30x128xbf16, #tpu.memory_space<vmem>>, vector<1x20x128xbf16>
    %15 = vector.shape_cast %14 : vector<1x20x128xbf16> to vector<20x128xbf16>
    %c2 = arith.constant 2 : index
    %c0_16 = arith.constant 0 : index
    %c0_17 = arith.constant 0 : index
    %16 = vector.load %arg2[%c2, %c0_16, %c0_17] : memref<4x128x64xbf16, #tpu.memory_space<vmem>>, vector<1x128x64xbf16>
    %17 = vector.shape_cast %16 : vector<1x128x64xbf16> to vector<128x64xbf16>
    %cst_18 = arith.constant dense<0.000000e+00> : vector<20x64xf32>
    %18 = tpu.matmul %15, %17, %cst_18 {dimension_numbers = #tpu.dot_dimension_numbers<[1], [0], [0], [1], [0, 0, 1, 1], [], []>} : vector<20x128xbf16>, vector<128x64xbf16>, vector<20x64xf32> -> vector<20x64xf32>
    %19 = arith.addf %13, %18 : vector<20x64xf32>
    %c0_19 = arith.constant 0 : index
    %c6 = arith.constant 6 : index
    %c0_20 = arith.constant 0 : index
    %20 = vector.load %arg1[%c0_19, %c6, %c0_20] : memref<2x30x128xbf16, #tpu.memory_space<vmem>>, vector<1x20x128xbf16>
    %21 = vector.shape_cast %20 : vector<1x20x128xbf16> to vector<20x128xbf16>
    %c3 = arith.constant 3 : index
    %c0_21 = arith.constant 0 : index
    %c0_22 = arith.constant 0 : index
    %22 = vector.load %arg2[%c3, %c0_21, %c0_22] : memref<4x128x64xbf16, #tpu.memory_space<vmem>>, vector<1x128x64xbf16>
    %23 = vector.shape_cast %22 : vector<1x128x64xbf16> to vector<128x64xbf16>
    %cst_23 = arith.constant dense<0.000000e+00> : vector<20x64xf32>
    %24 = tpu.matmul %21, %23, %cst_23 {dimension_numbers = #tpu.dot_dimension_numbers<[1], [0], [0], [1], [0, 0, 1, 1], [], []>} : vector<20x128xbf16>, vector<128x64xbf16>, vector<20x64xf32> -> vector<20x64xf32>
    %25 = arith.addf %19, %24 : vector<20x64xf32>
    %26 = vector.broadcast %0 : vector<1x64xf32> to vector<20x64xf32>
    %27 = arith.addf %25, %26 : vector<20x64xf32>
    %cst_24 = arith.constant 0.000000e+00 : f32
    %28 = vector.broadcast %cst_24 : f32 to vector<20x64xf32>
    %29 = arith.maximumf %27, %28 : vector<20x64xf32>
    %30 = arith.truncf %29 : vector<20x64xf32> to vector<20x64xbf16>
    %c0_25 = arith.constant 0 : index
    %c0_26 = arith.constant 0 : index
    %c0_27 = arith.constant 0 : index
    %31 = vector.load %arg4[%c0_25, %c0_26, %c0_27] : memref<2x20x64xbf16, #tpu.memory_space<vmem>>, vector<1x20x64xbf16>
    %32 = vector.shape_cast %31 : vector<1x20x64xbf16> to vector<20x64xbf16>
    %33 = vector.shape_cast %30 : vector<20x64xbf16> to vector<1x20x64xbf16>
    tpu.vector_store %arg4[%c0_25, %c0_26, %c0_27], %33 {strides = array<i32>} : memref<2x20x64xbf16, #tpu.memory_space<vmem>>, vector<1x20x64xbf16>,
    %cst_28 = arith.constant 0.000000e+00 : f32
    %34 = vector.broadcast %cst_28 : f32 to vector<20x64xf32>
    %c1_29 = arith.constant 1 : index
    %c0_30 = arith.constant 0 : index
    %c0_31 = arith.constant 0 : index
    %35 = vector.load %arg1[%c1_29, %c0_30, %c0_31] : memref<2x30x128xbf16, #tpu.memory_space<vmem>>, vector<1x20x128xbf16>
    %36 = vector.shape_cast %35 : vector<1x20x128xbf16> to vector<20x128xbf16>
    %c0_32 = arith.constant 0 : index
    %c0_33 = arith.constant 0 : index
    %c0_34 = arith.constant 0 : index
    %37 = vector.load %arg2[%c0_32, %c0_33, %c0_34] : memref<4x128x64xbf16, #tpu.memory_space<vmem>>, vector<1x128x64xbf16>
    %38 = vector.shape_cast %37 : vector<1x128x64xbf16> to vector<128x64xbf16>
    %cst_35 = arith.constant dense<0.000000e+00> : vector<20x64xf32>
    %39 = tpu.matmul %36, %38, %cst_35 {dimension_numbers = #tpu.dot_dimension_numbers<[1], [0], [0], [1], [0, 0, 1, 1], [], []>} : vector<20x128xbf16>, vector<128x64xbf16>, vector<20x64xf32> -> vector<20x64xf32>
    %40 = arith.addf %34, %39 : vector<20x64xf32>
    %c1_36 = arith.constant 1 : index
    %c1_37 = arith.constant 1 : index
    %c0_38 = arith.constant 0 : index
    %41 = vector.load %arg1[%c1_36, %c1_37, %c0_38] : memref<2x30x128xbf16, #tpu.memory_space<vmem>>, vector<1x20x128xbf16>
    %42 = vector.shape_cast %41 : vector<1x20x128xbf16> to vector<20x128xbf16>
    %c1_39 = arith.constant 1 : index
    %c0_40 = arith.constant 0 : index
    %c0_41 = arith.constant 0 : index
    %43 = vector.load %arg2[%c1_39, %c0_40, %c0_41] : memref<4x128x64xbf16, #tpu.memory_space<vmem>>, vector<1x128x64xbf16>
    %44 = vector.shape_cast %43 : vector<1x128x64xbf16> to vector<128x64xbf16>
    %cst_42 = arith.constant dense<0.000000e+00> : vector<20x64xf32>
    %45 = tpu.matmul %42, %44, %cst_42 {dimension_numbers = #tpu.dot_dimension_numbers<[1], [0], [0], [1], [0, 0, 1, 1], [], []>} : vector<20x128xbf16>, vector<128x64xbf16>, vector<20x64xf32> -> vector<20x64xf32>
    %46 = arith.addf %40, %45 : vector<20x64xf32>
    %c1_43 = arith.constant 1 : index
    %c5_44 = arith.constant 5 : index
    %c0_45 = arith.constant 0 : index
    %47 = vector.load %arg1[%c1_43, %c5_44, %c0_45] : memref<2x30x128xbf16, #tpu.memory_space<vmem>>, vector<1x20x128xbf16>
    %48 = vector.shape_cast %47 : vector<1x20x128xbf16> to vector<20x128xbf16>
    %c2_46 = arith.constant 2 : index
    %c0_47 = arith.constant 0 : index
    %c0_48 = arith.constant 0 : index
    %49 = vector.load %arg2[%c2_46, %c0_47, %c0_48] : memref<4x128x64xbf16, #tpu.memory_space<vmem>>, vector<1x128x64xbf16>
    %50 = vector.shape_cast %49 : vector<1x128x64xbf16> to vector<128x64xbf16>
    %cst_49 = arith.constant dense<0.000000e+00> : vector<20x64xf32>
    %51 = tpu.matmul %48, %50, %cst_49 {dimension_numbers = #tpu.dot_dimension_numbers<[1], [0], [0], [1], [0, 0, 1, 1], [], []>} : vector<20x128xbf16>, vector<128x64xbf16>, vector<20x64xf32> -> vector<20x64xf32>
    %52 = arith.addf %46, %51 : vector<20x64xf32>
    %c1_50 = arith.constant 1 : index
    %c6_51 = arith.constant 6 : index
    %c0_52 = arith.constant 0 : index
    %53 = vector.load %arg1[%c1_50, %c6_51, %c0_52] : memref<2x30x128xbf16, #tpu.memory_space<vmem>>, vector<1x20x128xbf16>
    %54 = vector.shape_cast %53 : vector<1x20x128xbf16> to vector<20x128xbf16>
    %c3_53 = arith.constant 3 : index
    %c0_54 = arith.constant 0 : index
    %c0_55 = arith.constant 0 : index
    %55 = vector.load %arg2[%c3_53, %c0_54, %c0_55] : memref<4x128x64xbf16, #tpu.memory_space<vmem>>, vector<1x128x64xbf16>
    %56 = vector.shape_cast %55 : vector<1x128x64xbf16> to vector<128x64xbf16>
    %cst_56 = arith.constant dense<0.000000e+00> : vector<20x64xf32>
    %57 = tpu.matmul %54, %56, %cst_56 {dimension_numbers = #tpu.dot_dimension_numbers<[1], [0], [0], [1], [0, 0, 1, 1], [], []>} : vector<20x128xbf16>, vector<128x64xbf16>, vector<20x64xf32> -> vector<20x64xf32>
    %58 = arith.addf %52, %57 : vector<20x64xf32>
    %59 = vector.broadcast %0 : vector<1x64xf32> to vector<20x64xf32>
    %60 = arith.addf %58, %59 : vector<20x64xf32>
    %cst_57 = arith.constant 0.000000e+00 : f32
    %61 = vector.broadcast %cst_57 : f32 to vector<20x64xf32>
    %62 = arith.maximumf %60, %61 : vector<20x64xf32>
    %63 = arith.truncf %62 : vector<20x64xf32> to vector<20x64xbf16>
    %c1_58 = arith.constant 1 : index
    %c0_59 = arith.constant 0 : index
    %c0_60 = arith.constant 0 : index
    %64 = vector.load %arg4[%c1_58, %c0_59, %c0_60] : memref<2x20x64xbf16, #tpu.memory_space<vmem>>, vector<1x20x64xbf16>
    %65 = vector.shape_cast %64 : vector<1x20x64xbf16> to vector<20x64xbf16>
    %66 = vector.shape_cast %63 : vector<20x64xbf16> to vector<1x20x64xbf16>
    tpu.vector_store %arg4[%c1_58, %c0_59, %c0_60], %66 {strides = array<i32>} : memref<2x20x64xbf16, #tpu.memory_space<vmem>>, vector<1x20x64xbf16>,
    return
  }
  func.func @transform_0(%arg0: i32) -> (i32, i32, i32) {
    %c0_i32 = arith.constant 0 : i32
    %c0_i32_0 = arith.constant 0 : i32
    %c0_i32_1 = arith.constant 0 : i32
    return %arg0, %c0_i32, %c0_i32_0 : i32, i32, i32
  }
  func.func @transform_1(%arg0: i32) -> (i32, i32, i32) {
    %c0_i32 = arith.constant 0 : i32
    %c0_i32_0 = arith.constant 0 : i32
    %c0_i32_1 = arith.constant 0 : i32
    %c0_i32_2 = arith.constant 0 : i32
    return %c0_i32, %c0_i32_0, %c0_i32_1 : i32, i32, i32
  }
  func.func @transform_2(%arg0: i32) -> (i32, i32) {
    %c0_i32 = arith.constant 0 : i32
    %c0_i32_0 = arith.constant 0 : i32
    %c0_i32_1 = arith.constant 0 : i32
    return %c0_i32, %c0_i32_0 : i32, i32
  }
  func.func @transform_3(%arg0: i32) -> (i32, i32, i32) {
    %c0_i32 = arith.constant 0 : i32
    %c0_i32_0 = arith.constant 0 : i32
    %c0_i32_1 = arith.constant 0 : i32
    return %arg0, %c0_i32, %c0_i32_0 : i32, i32, i32
  }
}

module attributes {stable_mosaic.version = 11 : i64} {
  func.func @_conv_taps_kernel(%arg0: i32, %arg1: memref<2x20x64xbf16, #tpu.memory_space<vmem>>, %arg2: memref<9x64x64xbf16, #tpu.memory_space<vmem>>, %arg3: memref<1x64xf32, #tpu.memory_space<vmem>>, %arg4: memref<2x8x64xbf16, #tpu.memory_space<vmem>>) attributes {dimension_semantics = [#tpu.dimension_semantics<parallel>], iteration_bounds = array<i64: 1>, scalar_prefetch = 0 : i64, scratch_operands = 0 : i64, tpu.core_type = #tpu.core_type<tc>, window_params = [{transform_indices = @transform_0, window_bounds = array<i64: 2, 20, 64>}, {pipeline_mode = #tpu.pipeline_mode<synchronous>, transform_indices = @transform_1, window_bounds = array<i64: 9, 64, 64>}, {pipeline_mode = #tpu.pipeline_mode<synchronous>, transform_indices = @transform_2, window_bounds = array<i64: 1, 64>}, {transform_indices = @transform_3, window_bounds = array<i64: 2, 8, 64>}]} {
    %c0 = arith.constant 0 : index
    %c0_0 = arith.constant 0 : index
    %0 = vector.load %arg3[%c0, %c0_0] : memref<1x64xf32, #tpu.memory_space<vmem>>, vector<1x64xf32>
    %cst = arith.constant 0.000000e+00 : f32
    %1 = vector.broadcast %cst : f32 to vector<8x64xf32>
    %c0_1 = arith.constant 0 : index
    %c0_2 = arith.constant 0 : index
    %c0_3 = arith.constant 0 : index
    %2 = vector.load %arg1[%c0_1, %c0_2, %c0_3] : memref<2x20x64xbf16, #tpu.memory_space<vmem>>, vector<1x8x64xbf16>
    %3 = vector.shape_cast %2 : vector<1x8x64xbf16> to vector<8x64xbf16>
    %c0_4 = arith.constant 0 : index
    %c0_5 = arith.constant 0 : index
    %c0_6 = arith.constant 0 : index
    %4 = vector.load %arg2[%c0_4, %c0_5, %c0_6] : memref<9x64x64xbf16, #tpu.memory_space<vmem>>, vector<1x64x64xbf16>
    %5 = vector.shape_cast %4 : vector<1x64x64xbf16> to vector<64x64xbf16>
    %cst_7 = arith.constant dense<0.000000e+00> : vector<8x64xf32>
    %6 = tpu.matmul %3, %5, %cst_7 {dimension_numbers = #tpu.dot_dimension_numbers<[1], [0], [0], [1], [0, 0, 1, 1], [], []>} : vector<8x64xbf16>, vector<64x64xbf16>, vector<8x64xf32> -> vector<8x64xf32>
    %7 = arith.addf %1, %6 : vector<8x64xf32>
    %c0_8 = arith.constant 0 : index
    %c1 = arith.constant 1 : index
    %c0_9 = arith.constant 0 : index
    %8 = vector.load %arg1[%c0_8, %c1, %c0_9] : memref<2x20x64xbf16, #tpu.memory_space<vmem>>, vector<1x8x64xbf16>
    %9 = vector.shape_cast %8 : vector<1x8x64xbf16> to vector<8x64xbf16>
    %c1_10 = arith.constant 1 : index
    %c0_11 = arith.constant 0 : index
    %c0_12 = arith.constant 0 : index
    %10 = vector.load %arg2[%c1_10, %c0_11, %c0_12] : memref<9x64x64xbf16, #tpu.memory_space<vmem>>, vector<1x64x64xbf16>
    %11 = vector.shape_cast %10 : vector<1x64x64xbf16> to vector<64x64xbf16>
    %cst_13 = arith.constant dense<0.000000e+00> : vector<8x64xf32>
    %12 = tpu.matmul %9, %11, %cst_13 {dimension_numbers = #tpu.dot_dimension_numbers<[1], [0], [0], [1], [0, 0, 1, 1], [], []>} : vector<8x64xbf16>, vector<64x64xbf16>, vector<8x64xf32> -> vector<8x64xf32>
    %13 = arith.addf %7, %12 : vector<8x64xf32>
    %c0_14 = arith.constant 0 : index
    %c2 = arith.constant 2 : index
    %c0_15 = arith.constant 0 : index
    %14 = vector.load %arg1[%c0_14, %c2, %c0_15] : memref<2x20x64xbf16, #tpu.memory_space<vmem>>, vector<1x8x64xbf16>
    %15 = vector.shape_cast %14 : vector<1x8x64xbf16> to vector<8x64xbf16>
    %c2_16 = arith.constant 2 : index
    %c0_17 = arith.constant 0 : index
    %c0_18 = arith.constant 0 : index
    %16 = vector.load %arg2[%c2_16, %c0_17, %c0_18] : memref<9x64x64xbf16, #tpu.memory_space<vmem>>, vector<1x64x64xbf16>
    %17 = vector.shape_cast %16 : vector<1x64x64xbf16> to vector<64x64xbf16>
    %cst_19 = arith.constant dense<0.000000e+00> : vector<8x64xf32>
    %18 = tpu.matmul %15, %17, %cst_19 {dimension_numbers = #tpu.dot_dimension_numbers<[1], [0], [0], [1], [0, 0, 1, 1], [], []>} : vector<8x64xbf16>, vector<64x64xbf16>, vector<8x64xf32> -> vector<8x64xf32>
    %19 = arith.addf %13, %18 : vector<8x64xf32>
    %c0_20 = arith.constant 0 : index
    %c4 = arith.constant 4 : index
    %c0_21 = arith.constant 0 : index
    %20 = vector.load %arg1[%c0_20, %c4, %c0_21] : memref<2x20x64xbf16, #tpu.memory_space<vmem>>, vector<1x8x64xbf16>
    %21 = vector.shape_cast %20 : vector<1x8x64xbf16> to vector<8x64xbf16>
    %c3 = arith.constant 3 : index
    %c0_22 = arith.constant 0 : index
    %c0_23 = arith.constant 0 : index
    %22 = vector.load %arg2[%c3, %c0_22, %c0_23] : memref<9x64x64xbf16, #tpu.memory_space<vmem>>, vector<1x64x64xbf16>
    %23 = vector.shape_cast %22 : vector<1x64x64xbf16> to vector<64x64xbf16>
    %cst_24 = arith.constant dense<0.000000e+00> : vector<8x64xf32>
    %24 = tpu.matmul %21, %23, %cst_24 {dimension_numbers = #tpu.dot_dimension_numbers<[1], [0], [0], [1], [0, 0, 1, 1], [], []>} : vector<8x64xbf16>, vector<64x64xbf16>, vector<8x64xf32> -> vector<8x64xf32>
    %25 = arith.addf %19, %24 : vector<8x64xf32>
    %c0_25 = arith.constant 0 : index
    %c5 = arith.constant 5 : index
    %c0_26 = arith.constant 0 : index
    %26 = vector.load %arg1[%c0_25, %c5, %c0_26] : memref<2x20x64xbf16, #tpu.memory_space<vmem>>, vector<1x8x64xbf16>
    %27 = vector.shape_cast %26 : vector<1x8x64xbf16> to vector<8x64xbf16>
    %c4_27 = arith.constant 4 : index
    %c0_28 = arith.constant 0 : index
    %c0_29 = arith.constant 0 : index
    %28 = vector.load %arg2[%c4_27, %c0_28, %c0_29] : memref<9x64x64xbf16, #tpu.memory_space<vmem>>, vector<1x64x64xbf16>
    %29 = vector.shape_cast %28 : vector<1x64x64xbf16> to vector<64x64xbf16>
    %cst_30 = arith.constant dense<0.000000e+00> : vector<8x64xf32>
    %30 = tpu.matmul %27, %29, %cst_30 {dimension_numbers = #tpu.dot_dimension_numbers<[1], [0], [0], [1], [0, 0, 1, 1], [], []>} : vector<8x64xbf16>, vector<64x64xbf16>, vector<8x64xf32> -> vector<8x64xf32>
    %31 = arith.addf %25, %30 : vector<8x64xf32>
    %c0_31 = arith.constant 0 : index
    %c6 = arith.constant 6 : index
    %c0_32 = arith.constant 0 : index
    %32 = vector.load %arg1[%c0_31, %c6, %c0_32] : memref<2x20x64xbf16, #tpu.memory_space<vmem>>, vector<1x8x64xbf16>
    %33 = vector.shape_cast %32 : vector<1x8x64xbf16> to vector<8x64xbf16>
    %c5_33 = arith.constant 5 : index
    %c0_34 = arith.constant 0 : index
    %c0_35 = arith.constant 0 : index
    %34 = vector.load %arg2[%c5_33, %c0_34, %c0_35] : memref<9x64x64xbf16, #tpu.memory_space<vmem>>, vector<1x64x64xbf16>
    %35 = vector.shape_cast %34 : vector<1x64x64xbf16> to vector<64x64xbf16>
    %cst_36 = arith.constant dense<0.000000e+00> : vector<8x64xf32>
    %36 = tpu.matmul %33, %35, %cst_36 {dimension_numbers = #tpu.dot_dimension_numbers<[1], [0], [0], [1], [0, 0, 1, 1], [], []>} : vector<8x64xbf16>, vector<64x64xbf16>, vector<8x64xf32> -> vector<8x64xf32>
    %37 = arith.addf %31, %36 : vector<8x64xf32>
    %c0_37 = arith.constant 0 : index
    %c8 = arith.constant 8 : index
    %c0_38 = arith.constant 0 : index
    %38 = vector.load %arg1[%c0_37, %c8, %c0_38] : memref<2x20x64xbf16, #tpu.memory_space<vmem>>, vector<1x8x64xbf16>
    %39 = vector.shape_cast %38 : vector<1x8x64xbf16> to vector<8x64xbf16>
    %c6_39 = arith.constant 6 : index
    %c0_40 = arith.constant 0 : index
    %c0_41 = arith.constant 0 : index
    %40 = vector.load %arg2[%c6_39, %c0_40, %c0_41] : memref<9x64x64xbf16, #tpu.memory_space<vmem>>, vector<1x64x64xbf16>
    %41 = vector.shape_cast %40 : vector<1x64x64xbf16> to vector<64x64xbf16>
    %cst_42 = arith.constant dense<0.000000e+00> : vector<8x64xf32>
    %42 = tpu.matmul %39, %41, %cst_42 {dimension_numbers = #tpu.dot_dimension_numbers<[1], [0], [0], [1], [0, 0, 1, 1], [], []>} : vector<8x64xbf16>, vector<64x64xbf16>, vector<8x64xf32> -> vector<8x64xf32>
    %43 = arith.addf %37, %42 : vector<8x64xf32>
    %c0_43 = arith.constant 0 : index
    %c9 = arith.constant 9 : index
    %c0_44 = arith.constant 0 : index
    %44 = vector.load %arg1[%c0_43, %c9, %c0_44] : memref<2x20x64xbf16, #tpu.memory_space<vmem>>, vector<1x8x64xbf16>
    %45 = vector.shape_cast %44 : vector<1x8x64xbf16> to vector<8x64xbf16>
    %c7 = arith.constant 7 : index
    %c0_45 = arith.constant 0 : index
    %c0_46 = arith.constant 0 : index
    %46 = vector.load %arg2[%c7, %c0_45, %c0_46] : memref<9x64x64xbf16, #tpu.memory_space<vmem>>, vector<1x64x64xbf16>
    %47 = vector.shape_cast %46 : vector<1x64x64xbf16> to vector<64x64xbf16>
    %cst_47 = arith.constant dense<0.000000e+00> : vector<8x64xf32>
    %48 = tpu.matmul %45, %47, %cst_47 {dimension_numbers = #tpu.dot_dimension_numbers<[1], [0], [0], [1], [0, 0, 1, 1], [], []>} : vector<8x64xbf16>, vector<64x64xbf16>, vector<8x64xf32> -> vector<8x64xf32>
    %49 = arith.addf %43, %48 : vector<8x64xf32>
    %c0_48 = arith.constant 0 : index
    %c10 = arith.constant 10 : index
    %c0_49 = arith.constant 0 : index
    %50 = vector.load %arg1[%c0_48, %c10, %c0_49] : memref<2x20x64xbf16, #tpu.memory_space<vmem>>, vector<1x8x64xbf16>
    %51 = vector.shape_cast %50 : vector<1x8x64xbf16> to vector<8x64xbf16>
    %c8_50 = arith.constant 8 : index
    %c0_51 = arith.constant 0 : index
    %c0_52 = arith.constant 0 : index
    %52 = vector.load %arg2[%c8_50, %c0_51, %c0_52] : memref<9x64x64xbf16, #tpu.memory_space<vmem>>, vector<1x64x64xbf16>
    %53 = vector.shape_cast %52 : vector<1x64x64xbf16> to vector<64x64xbf16>
    %cst_53 = arith.constant dense<0.000000e+00> : vector<8x64xf32>
    %54 = tpu.matmul %51, %53, %cst_53 {dimension_numbers = #tpu.dot_dimension_numbers<[1], [0], [0], [1], [0, 0, 1, 1], [], []>} : vector<8x64xbf16>, vector<64x64xbf16>, vector<8x64xf32> -> vector<8x64xf32>
    %55 = arith.addf %49, %54 : vector<8x64xf32>
    %56 = vector.broadcast %0 : vector<1x64xf32> to vector<8x64xf32>
    %57 = arith.addf %55, %56 : vector<8x64xf32>
    %cst_54 = arith.constant 0.000000e+00 : f32
    %58 = vector.broadcast %cst_54 : f32 to vector<8x64xf32>
    %59 = arith.maximumf %57, %58 : vector<8x64xf32>
    %60 = arith.truncf %59 : vector<8x64xf32> to vector<8x64xbf16>
    %c0_55 = arith.constant 0 : index
    %c0_56 = arith.constant 0 : index
    %c0_57 = arith.constant 0 : index
    %61 = vector.load %arg4[%c0_55, %c0_56, %c0_57] : memref<2x8x64xbf16, #tpu.memory_space<vmem>>, vector<1x8x64xbf16>
    %62 = vector.shape_cast %61 : vector<1x8x64xbf16> to vector<8x64xbf16>
    %63 = vector.shape_cast %60 : vector<8x64xbf16> to vector<1x8x64xbf16>
    tpu.vector_store %arg4[%c0_55, %c0_56, %c0_57], %63 {strides = array<i32>} : memref<2x8x64xbf16, #tpu.memory_space<vmem>>, vector<1x8x64xbf16>,
    %cst_58 = arith.constant 0.000000e+00 : f32
    %64 = vector.broadcast %cst_58 : f32 to vector<8x64xf32>
    %c1_59 = arith.constant 1 : index
    %c0_60 = arith.constant 0 : index
    %c0_61 = arith.constant 0 : index
    %65 = vector.load %arg1[%c1_59, %c0_60, %c0_61] : memref<2x20x64xbf16, #tpu.memory_space<vmem>>, vector<1x8x64xbf16>
    %66 = vector.shape_cast %65 : vector<1x8x64xbf16> to vector<8x64xbf16>
    %c0_62 = arith.constant 0 : index
    %c0_63 = arith.constant 0 : index
    %c0_64 = arith.constant 0 : index
    %67 = vector.load %arg2[%c0_62, %c0_63, %c0_64] : memref<9x64x64xbf16, #tpu.memory_space<vmem>>, vector<1x64x64xbf16>
    %68 = vector.shape_cast %67 : vector<1x64x64xbf16> to vector<64x64xbf16>
    %cst_65 = arith.constant dense<0.000000e+00> : vector<8x64xf32>
    %69 = tpu.matmul %66, %68, %cst_65 {dimension_numbers = #tpu.dot_dimension_numbers<[1], [0], [0], [1], [0, 0, 1, 1], [], []>} : vector<8x64xbf16>, vector<64x64xbf16>, vector<8x64xf32> -> vector<8x64xf32>
    %70 = arith.addf %64, %69 : vector<8x64xf32>
    %c1_66 = arith.constant 1 : index
    %c1_67 = arith.constant 1 : index
    %c0_68 = arith.constant 0 : index
    %71 = vector.load %arg1[%c1_66, %c1_67, %c0_68] : memref<2x20x64xbf16, #tpu.memory_space<vmem>>, vector<1x8x64xbf16>
    %72 = vector.shape_cast %71 : vector<1x8x64xbf16> to vector<8x64xbf16>
    %c1_69 = arith.constant 1 : index
    %c0_70 = arith.constant 0 : index
    %c0_71 = arith.constant 0 : index
    %73 = vector.load %arg2[%c1_69, %c0_70, %c0_71] : memref<9x64x64xbf16, #tpu.memory_space<vmem>>, vector<1x64x64xbf16>
    %74 = vector.shape_cast %73 : vector<1x64x64xbf16> to vector<64x64xbf16>
    %cst_72 = arith.constant dense<0.000000e+00> : vector<8x64xf32>
    %75 = tpu.matmul %72, %74, %cst_72 {dimension_numbers = #tpu.dot_dimension_numbers<[1], [0], [0], [1], [0, 0, 1, 1], [], []>} : vector<8x64xbf16>, vector<64x64xbf16>, vector<8x64xf32> -> vector<8x64xf32>
    %76 = arith.addf %70, %75 : vector<8x64xf32>
    %c1_73 = arith.constant 1 : index
    %c2_74 = arith.constant 2 : index
    %c0_75 = arith.constant 0 : index
    %77 = vector.load %arg1[%c1_73, %c2_74, %c0_75] : memref<2x20x64xbf16, #tpu.memory_space<vmem>>, vector<1x8x64xbf16>
    %78 = vector.shape_cast %77 : vector<1x8x64xbf16> to vector<8x64xbf16>
    %c2_76 = arith.constant 2 : index
    %c0_77 = arith.constant 0 : index
    %c0_78 = arith.constant 0 : index
    %79 = vector.load %arg2[%c2_76, %c0_77, %c0_78] : memref<9x64x64xbf16, #tpu.memory_space<vmem>>, vector<1x64x64xbf16>
    %80 = vector.shape_cast %79 : vector<1x64x64xbf16> to vector<64x64xbf16>
    %cst_79 = arith.constant dense<0.000000e+00> : vector<8x64xf32>
    %81 = tpu.matmul %78, %80, %cst_79 {dimension_numbers = #tpu.dot_dimension_numbers<[1], [0], [0], [1], [0, 0, 1, 1], [], []>} : vector<8x64xbf16>, vector<64x64xbf16>, vector<8x64xf32> -> vector<8x64xf32>
    %82 = arith.addf %76, %81 : vector<8x64xf32>
    %c1_80 = arith.constant 1 : index
    %c4_81 = arith.constant 4 : index
    %c0_82 = arith.constant 0 : index
    %83 = vector.load %arg1[%c1_80, %c4_81, %c0_82] : memref<2x20x64xbf16, #tpu.memory_space<vmem>>, vector<1x8x64xbf16>
    %84 = vector.shape_cast %83 : vector<1x8x64xbf16> to vector<8x64xbf16>
    %c3_83 = arith.constant 3 : index
    %c0_84 = arith.constant 0 : index
    %c0_85 = arith.constant 0 : index
    %85 = vector.load %arg2[%c3_83, %c0_84, %c0_85] : memref<9x64x64xbf16, #tpu.memory_space<vmem>>, vector<1x64x64xbf16>
    %86 = vector.shape_cast %85 : vector<1x64x64xbf16> to vector<64x64xbf16>
    %cst_86 = arith.constant dense<0.000000e+00> : vector<8x64xf32>
    %87 = tpu.matmul %84, %86, %cst_86 {dimension_numbers = #tpu.dot_dimension_numbers<[1], [0], [0], [1], [0, 0, 1, 1], [], []>} : vector<8x64xbf16>, vector<64x64xbf16>, vector<8x64xf32> -> vector<8x64xf32>
    %88 = arith.addf %82, %87 : vector<8x64xf32>
    %c1_87 = arith.constant 1 : index
    %c5_88 = arith.constant 5 : index
    %c0_89 = arith.constant 0 : index
    %89 = vector.load %arg1[%c1_87, %c5_88, %c0_89] : memref<2x20x64xbf16, #tpu.memory_space<vmem>>, vector<1x8x64xbf16>
    %90 = vector.shape_cast %89 : vector<1x8x64xbf16> to vector<8x64xbf16>
    %c4_90 = arith.constant 4 : index
    %c0_91 = arith.constant 0 : index
    %c0_92 = arith.constant 0 : index
    %91 = vector.load %arg2[%c4_90, %c0_91, %c0_92] : memref<9x64x64xbf16, #tpu.memory_space<vmem>>, vector<1x64x64xbf16>
    %92 = vector.shape_cast %91 : vector<1x64x64xbf16> to vector<64x64xbf16>
    %cst_93 = arith.constant dense<0.000000e+00> : vector<8x64xf32>
    %93 = tpu.matmul %90, %92, %cst_93 {dimension_numbers = #tpu.dot_dimension_numbers<[1], [0], [0], [1], [0, 0, 1, 1], [], []>} : vector<8x64xbf16>, vector<64x64xbf16>, vector<8x64xf32> -> vector<8x64xf32>
    %94 = arith.addf %88, %93 : vector<8x64xf32>
    %c1_94 = arith.constant 1 : index
    %c6_95 = arith.constant 6 : index
    %c0_96 = arith.constant 0 : index
    %95 = vector.load %arg1[%c1_94, %c6_95, %c0_96] : memref<2x20x64xbf16, #tpu.memory_space<vmem>>, vector<1x8x64xbf16>
    %96 = vector.shape_cast %95 : vector<1x8x64xbf16> to vector<8x64xbf16>
    %c5_97 = arith.constant 5 : index
    %c0_98 = arith.constant 0 : index
    %c0_99 = arith.constant 0 : index
    %97 = vector.load %arg2[%c5_97, %c0_98, %c0_99] : memref<9x64x64xbf16, #tpu.memory_space<vmem>>, vector<1x64x64xbf16>
    %98 = vector.shape_cast %97 : vector<1x64x64xbf16> to vector<64x64xbf16>
    %cst_100 = arith.constant dense<0.000000e+00> : vector<8x64xf32>
    %99 = tpu.matmul %96, %98, %cst_100 {dimension_numbers = #tpu.dot_dimension_numbers<[1], [0], [0], [1], [0, 0, 1, 1], [], []>} : vector<8x64xbf16>, vector<64x64xbf16>, vector<8x64xf32> -> vector<8x64xf32>
    %100 = arith.addf %94, %99 : vector<8x64xf32>
    %c1_101 = arith.constant 1 : index
    %c8_102 = arith.constant 8 : index
    %c0_103 = arith.constant 0 : index
    %101 = vector.load %arg1[%c1_101, %c8_102, %c0_103] : memref<2x20x64xbf16, #tpu.memory_space<vmem>>, vector<1x8x64xbf16>
    %102 = vector.shape_cast %101 : vector<1x8x64xbf16> to vector<8x64xbf16>
    %c6_104 = arith.constant 6 : index
    %c0_105 = arith.constant 0 : index
    %c0_106 = arith.constant 0 : index
    %103 = vector.load %arg2[%c6_104, %c0_105, %c0_106] : memref<9x64x64xbf16, #tpu.memory_space<vmem>>, vector<1x64x64xbf16>
    %104 = vector.shape_cast %103 : vector<1x64x64xbf16> to vector<64x64xbf16>
    %cst_107 = arith.constant dense<0.000000e+00> : vector<8x64xf32>
    %105 = tpu.matmul %102, %104, %cst_107 {dimension_numbers = #tpu.dot_dimension_numbers<[1], [0], [0], [1], [0, 0, 1, 1], [], []>} : vector<8x64xbf16>, vector<64x64xbf16>, vector<8x64xf32> -> vector<8x64xf32>
    %106 = arith.addf %100, %105 : vector<8x64xf32>
    %c1_108 = arith.constant 1 : index
    %c9_109 = arith.constant 9 : index
    %c0_110 = arith.constant 0 : index
    %107 = vector.load %arg1[%c1_108, %c9_109, %c0_110] : memref<2x20x64xbf16, #tpu.memory_space<vmem>>, vector<1x8x64xbf16>
    %108 = vector.shape_cast %107 : vector<1x8x64xbf16> to vector<8x64xbf16>
    %c7_111 = arith.constant 7 : index
    %c0_112 = arith.constant 0 : index
    %c0_113 = arith.constant 0 : index
    %109 = vector.load %arg2[%c7_111, %c0_112, %c0_113] : memref<9x64x64xbf16, #tpu.memory_space<vmem>>, vector<1x64x64xbf16>
    %110 = vector.shape_cast %109 : vector<1x64x64xbf16> to vector<64x64xbf16>
    %cst_114 = arith.constant dense<0.000000e+00> : vector<8x64xf32>
    %111 = tpu.matmul %108, %110, %cst_114 {dimension_numbers = #tpu.dot_dimension_numbers<[1], [0], [0], [1], [0, 0, 1, 1], [], []>} : vector<8x64xbf16>, vector<64x64xbf16>, vector<8x64xf32> -> vector<8x64xf32>
    %112 = arith.addf %106, %111 : vector<8x64xf32>
    %c1_115 = arith.constant 1 : index
    %c10_116 = arith.constant 10 : index
    %c0_117 = arith.constant 0 : index
    %113 = vector.load %arg1[%c1_115, %c10_116, %c0_117] : memref<2x20x64xbf16, #tpu.memory_space<vmem>>, vector<1x8x64xbf16>
    %114 = vector.shape_cast %113 : vector<1x8x64xbf16> to vector<8x64xbf16>
    %c8_118 = arith.constant 8 : index
    %c0_119 = arith.constant 0 : index
    %c0_120 = arith.constant 0 : index
    %115 = vector.load %arg2[%c8_118, %c0_119, %c0_120] : memref<9x64x64xbf16, #tpu.memory_space<vmem>>, vector<1x64x64xbf16>
    %116 = vector.shape_cast %115 : vector<1x64x64xbf16> to vector<64x64xbf16>
    %cst_121 = arith.constant dense<0.000000e+00> : vector<8x64xf32>
    %117 = tpu.matmul %114, %116, %cst_121 {dimension_numbers = #tpu.dot_dimension_numbers<[1], [0], [0], [1], [0, 0, 1, 1], [], []>} : vector<8x64xbf16>, vector<64x64xbf16>, vector<8x64xf32> -> vector<8x64xf32>
    %118 = arith.addf %112, %117 : vector<8x64xf32>
    %119 = vector.broadcast %0 : vector<1x64xf32> to vector<8x64xf32>
    %120 = arith.addf %118, %119 : vector<8x64xf32>
    %cst_122 = arith.constant 0.000000e+00 : f32
    %121 = vector.broadcast %cst_122 : f32 to vector<8x64xf32>
    %122 = arith.maximumf %120, %121 : vector<8x64xf32>
    %123 = arith.truncf %122 : vector<8x64xf32> to vector<8x64xbf16>
    %c1_123 = arith.constant 1 : index
    %c0_124 = arith.constant 0 : index
    %c0_125 = arith.constant 0 : index
    %124 = vector.load %arg4[%c1_123, %c0_124, %c0_125] : memref<2x8x64xbf16, #tpu.memory_space<vmem>>, vector<1x8x64xbf16>
    %125 = vector.shape_cast %124 : vector<1x8x64xbf16> to vector<8x64xbf16>
    %126 = vector.shape_cast %123 : vector<8x64xbf16> to vector<1x8x64xbf16>
    tpu.vector_store %arg4[%c1_123, %c0_124, %c0_125], %126 {strides = array<i32>} : memref<2x8x64xbf16, #tpu.memory_space<vmem>>, vector<1x8x64xbf16>,
    return
  }
  func.func @transform_0(%arg0: i32) -> (i32, i32, i32) {
    %c0_i32 = arith.constant 0 : i32
    %c0_i32_0 = arith.constant 0 : i32
    %c0_i32_1 = arith.constant 0 : i32
    return %arg0, %c0_i32, %c0_i32_0 : i32, i32, i32
  }
  func.func @transform_1(%arg0: i32) -> (i32, i32, i32) {
    %c0_i32 = arith.constant 0 : i32
    %c0_i32_0 = arith.constant 0 : i32
    %c0_i32_1 = arith.constant 0 : i32
    %c0_i32_2 = arith.constant 0 : i32
    return %c0_i32, %c0_i32_0, %c0_i32_1 : i32, i32, i32
  }
  func.func @transform_2(%arg0: i32) -> (i32, i32) {
    %c0_i32 = arith.constant 0 : i32
    %c0_i32_0 = arith.constant 0 : i32
    %c0_i32_1 = arith.constant 0 : i32
    return %c0_i32, %c0_i32_0 : i32, i32
  }
  func.func @transform_3(%arg0: i32) -> (i32, i32, i32) {
    %c0_i32 = arith.constant 0 : i32
    %c0_i32_0 = arith.constant 0 : i32
    %c0_i32_1 = arith.constant 0 : i32
    return %arg0, %c0_i32, %c0_i32_0 : i32, i32, i32
  }
}

module attributes {stable_mosaic.version = 11 : i64} {
  func.func @_fc_head_kernel(%arg0: i32, %arg1: memref<2x256xbf16, #tpu.memory_space<vmem>>, %arg2: memref<256x512xbf16, #tpu.memory_space<vmem>>, %arg3: memref<1x512xf32, #tpu.memory_space<vmem>>, %arg4: memref<512x128xbf16, #tpu.memory_space<vmem>>, %arg5: memref<1x128xf32, #tpu.memory_space<vmem>>, %arg6: memref<2x128xf32, #tpu.memory_space<vmem>>, %arg7: memref<2x512xbf16, #tpu.memory_space<vmem>>) attributes {dimension_semantics = [#tpu.dimension_semantics<parallel>], iteration_bounds = array<i64: 1>, scalar_prefetch = 0 : i64, scratch_operands = 1 : i64, tpu.core_type = #tpu.core_type<tc>, window_params = [{transform_indices = @transform_0, window_bounds = array<i64: 2, 256>}, {pipeline_mode = #tpu.pipeline_mode<synchronous>, transform_indices = @transform_1, window_bounds = array<i64: 256, 512>}, {pipeline_mode = #tpu.pipeline_mode<synchronous>, transform_indices = @transform_2, window_bounds = array<i64: 1, 512>}, {pipeline_mode = #tpu.pipeline_mode<synchronous>, transform_indices = @transform_3, window_bounds = array<i64: 512, 128>}, {pipeline_mode = #tpu.pipeline_mode<synchronous>, transform_indices = @transform_4, window_bounds = array<i64: 1, 128>}, {transform_indices = @transform_5, window_bounds = array<i64: 2, 128>}]} {
    %c0 = arith.constant 0 : index
    %c0_0 = arith.constant 0 : index
    %0 = vector.load %arg1[%c0, %c0_0] : memref<2x256xbf16, #tpu.memory_space<vmem>>, vector<2x256xbf16>
    %c0_1 = arith.constant 0 : index
    %c0_2 = arith.constant 0 : index
    %1 = vector.load %arg2[%c0_1, %c0_2] : memref<256x512xbf16, #tpu.memory_space<vmem>>, vector<256x512xbf16>
    %cst = arith.constant dense<0.000000e+00> : vector<2x512xf32>
    %2 = tpu.matmul %0, %1, %cst {dimension_numbers = #tpu.dot_dimension_numbers<[1], [0], [0], [1], [0, 0, 1, 1], [], []>} : vector<2x256xbf16>, vector<256x512xbf16>, vector<2x512xf32> -> vector<2x512xf32>
    %c0_3 = arith.constant 0 : index
    %c0_4 = arith.constant 0 : index
    %3 = vector.load %arg3[%c0_3, %c0_4] : memref<1x512xf32, #tpu.memory_space<vmem>>, vector<1x512xf32>
    %4 = vector.broadcast %3 : vector<1x512xf32> to vector<2x512xf32>
    %5 = arith.addf %2, %4 : vector<2x512xf32>
    %cst_5 = arith.constant 0.000000e+00 : f32
    %6 = vector.broadcast %cst_5 : f32 to vector<2x512xf32>
    %7 = arith.maximumf %5, %6 : vector<2x512xf32>
    %8 = arith.truncf %7 : vector<2x512xf32> to vector<2x512xbf16>
    %c0_6 = arith.constant 0 : index
    %c0_7 = arith.constant 0 : index
    %9 = vector.load %arg7[%c0_6, %c0_7] : memref<2x512xbf16, #tpu.memory_space<vmem>>, vector<2x512xbf16>
    tpu.vector_store %arg7[%c0_6, %c0_7], %8 {strides = array<i32>} : memref<2x512xbf16, #tpu.memory_space<vmem>>, vector<2x512xbf16>,
    %c0_8 = arith.constant 0 : index
    %c0_9 = arith.constant 0 : index
    %10 = vector.load %arg7[%c0_8, %c0_9] : memref<2x512xbf16, #tpu.memory_space<vmem>>, vector<2x512xbf16>
    %c0_10 = arith.constant 0 : index
    %c0_11 = arith.constant 0 : index
    %11 = vector.load %arg4[%c0_10, %c0_11] : memref<512x128xbf16, #tpu.memory_space<vmem>>, vector<512x128xbf16>
    %cst_12 = arith.constant dense<0.000000e+00> : vector<2x128xf32>
    %12 = tpu.matmul %10, %11, %cst_12 {dimension_numbers = #tpu.dot_dimension_numbers<[1], [0], [0], [1], [0, 0, 1, 1], [], []>} : vector<2x512xbf16>, vector<512x128xbf16>, vector<2x128xf32> -> vector<2x128xf32>
    %c0_13 = arith.constant 0 : index
    %c0_14 = arith.constant 0 : index
    %13 = vector.load %arg5[%c0_13, %c0_14] : memref<1x128xf32, #tpu.memory_space<vmem>>, vector<1x128xf32>
    %14 = vector.broadcast %13 : vector<1x128xf32> to vector<2x128xf32>
    %15 = arith.addf %12, %14 : vector<2x128xf32>
    %c0_15 = arith.constant 0 : index
    %c0_16 = arith.constant 0 : index
    %16 = vector.load %arg6[%c0_15, %c0_16] : memref<2x128xf32, #tpu.memory_space<vmem>>, vector<2x128xf32>
    tpu.vector_store %arg6[%c0_15, %c0_16], %15 {strides = array<i32>} : memref<2x128xf32, #tpu.memory_space<vmem>>, vector<2x128xf32>,
    return
  }
  func.func @transform_0(%arg0: i32) -> (i32, i32) {
    %c0_i32 = arith.constant 0 : i32
    %c0_i32_0 = arith.constant 0 : i32
    return %arg0, %c0_i32 : i32, i32
  }
  func.func @transform_1(%arg0: i32) -> (i32, i32) {
    %c0_i32 = arith.constant 0 : i32
    %c0_i32_0 = arith.constant 0 : i32
    %c0_i32_1 = arith.constant 0 : i32
    return %c0_i32, %c0_i32_0 : i32, i32
  }
  func.func @transform_2(%arg0: i32) -> (i32, i32) {
    %c0_i32 = arith.constant 0 : i32
    %c0_i32_0 = arith.constant 0 : i32
    %c0_i32_1 = arith.constant 0 : i32
    return %c0_i32, %c0_i32_0 : i32, i32
  }
  func.func @transform_3(%arg0: i32) -> (i32, i32) {
    %c0_i32 = arith.constant 0 : i32
    %c0_i32_0 = arith.constant 0 : i32
    %c0_i32_1 = arith.constant 0 : i32
    return %c0_i32, %c0_i32_0 : i32, i32
  }
  func.func @transform_4(%arg0: i32) -> (i32, i32) {
    %c0_i32 = arith.constant 0 : i32
    %c0_i32_0 = arith.constant 0 : i32
    %c0_i32_1 = arith.constant 0 : i32
    return %c0_i32, %c0_i32_0 : i32, i32
  }
  func.func @transform_5(%arg0: i32) -> (i32, i32) {
    %c0_i32 = arith.constant 0 : i32
    %c0_i32_0 = arith.constant 0 : i32
    return %arg0, %c0_i32 : i32, i32
  }
}

</mosaic_0001>

<llo_original>
// kernel: qlearner_forward.4
$region0: #{qlearner_forward.4}
  #allocation0 [shape = 'u32[]', space=smem, size = 0x4, offset = 0x4, fixed_abs, tag = 'smem constant byte address 0x4 - core index']
  #allocation1 [shape = 'u32[144,128]{1,0:T(1,128)}', space=vmem, size = 0x12000, scoped, tag = 'internal scratch']
  %s0 = inlined_call_operand.vmem [shape: bf16[2,132,64], index: 0, kind: input, shape index: {}]
  %s1 = inlined_call_operand.vmem [shape: bf16[4,64,32], index: 1, kind: input, shape index: {}]
  %s2 = inlined_call_operand.vmem [shape: f32[1,32], index: 2, kind: input, shape index: {}]
  %s3 = inlined_call_operand.vmem [shape: bf16[2,110,32], index: 3, kind: output, shape index: {}]
  %s4 = sld [smem:[#allocation0]]
  $region22: #{qlearner_forward.4} parent=0
    _
  %s6 = ssub.s32 1, %s4
  %s7 = scalar_select 0, %s6, %s4
  // Predicated region
  $region2: #{qlearner_forward.4} parent=0 // pred_check
    _
  $region3: #{qlearner_forward.4} parent=0 // pred_check_branch
    %9 = sbr.rel (0) target = $region5
  $region4: #{qlearner_forward.4} parent=0 // pred_region
    _
  $region5: #{qlearner_forward.4} parent=0 // pred_fallthru
    _
  // Predicated region
  $region6: #{qlearner_forward.4} parent=0 // pred_check
    _
  $region7: #{qlearner_forward.4} parent=0 // pred_check_branch
    %11 = sbr.rel (0) target = $region9
  $region8: #{qlearner_forward.4} parent=0 // pred_region
    _
  $region9: #{qlearner_forward.4} parent=0 // pred_fallthru
    _
  // Predicated region
  $region10: #{qlearner_forward.4} parent=0 // pred_check
    _
  $region11: #{qlearner_forward.4} parent=0 // pred_check_branch
    %13 = sbr.rel (0) target = $region13
  $region12: #{qlearner_forward.4} parent=0 // pred_region
    _
  $region13: #{qlearner_forward.4} parent=0 // pred_fallthru
    _
  %v15 = vld [vmem:[%s2] sm:$0x1]
  %v16 = vld [vmem:[%s0] sm:$0xf]
  %v17 = vld [vmem:[%s0 + $0x4] sm:$0xf]
  %v18 = vld [vmem:[%s0 + $0x8] sm:$0xf]
  %v19 = vld [vmem:[%s0 + $0xc] sm:$0xf]
  %v20 = vld [vmem:[%s0 + $0x10] sm:$0xf]
  %v21 = vld [vmem:[%s0 + $0x14] sm:$0xf]
  %v22 = vld [vmem:[%s0 + $0x18] sm:$0xf]
  %v23 = vld [vmem:[%s0 + $0x1c] sm:$0xf]
  %v24 = vld [vmem:[%s0 + $0x20] sm:$0xf]
  %v25 = vld [vmem:[%s0 + $0x24] sm:$0xf]
  %v26 = vld [vmem:[%s0 + $0x28] sm:$0xf]
  %v27 = vld [vmem:[%s0 + $0x2c] sm:$0xf]
  %v28 = vld [vmem:[%s0 + $0x30] sm:$0xf]
  %v29 = vld [vmem:[%s0 + $0x34] sm:$0x7]
  %v30 = vld [vmem:[%s1] sm:$0xf]
  %v31 = vld [vmem:[%s1 + $0x4] sm:$0xf]
  %v32 = vld [vmem:[%s1 + $0x8] sm:$0xf]
  %v33 = vld [vmem:[%s1 + $0xc] sm:$0xf]
  %v34 = vld [vmem:[%s1 + $0x10] sm:$0xf]
  %v35 = vld [vmem:[%s1 + $0x14] sm:$0xf]
  %v36 = vld [vmem:[%s1 + $0x18] sm:$0xf]
  %v37 = vld [vmem:[%s1 + $0x1c] sm:$0xf]
  %v38 = vld [vmem:[%s0 + $0x34] sm:$0xf]
  %s39 = scalar_lea.vmem %s1, 32
  %v40 = vld [vmem:[%s39] sm:$0xf]
  %v41 = vld [vmem:[%s39 + $0x4] sm:$0xf]
  %v42 = vld [vmem:[%s39 + $0x8] sm:$0xf]
  %v43 = vld [vmem:[%s39 + $0xc] sm:$0xf]
  %v44 = vld [vmem:[%s39 + $0x10] sm:$0xf]
  %v45 = vld [vmem:[%s39 + $0x14] sm:$0xf]
  %v46 = vld [vmem:[%s39 + $0x18] sm:$0xf]
  %v47 = vld [vmem:[%s39 + $0x1c] sm:$0xf]
  %v62 = vunpack.c.l.b16 %v16
  %v63 = vunpack.c.l.b16 %v17
  %v64 = vunpack.c.l.b16 %v18
  %v65 = vunpack.c.l.b16 %v19
  %v66 = vunpack.c.l.b16 %v20
  %v67 = vunpack.c.l.b16 %v21
  %v68 = vunpack.c.l.b16 %v22
  %v69 = vunpack.c.l.b16 %v23
  %v70 = vunpack.c.l.b16 %v24
  %v71 = vunpack.c.l.b16 %v25
  %v72 = vunpack.c.l.b16 %v26
  %v73 = vunpack.c.l.b16 %v27
  %v74 = vunpack.c.l.b16 %v28
  %v75 = vunpack.c.l.b16 %v38
  %v76 = vpack.c.b16 %v63, %v62
  %v77 = vpack.c.b16 %v65, %v64
  %v78 = vpack.c.b16 %v67, %v66
  %v79 = vpack.c.b16 %v69, %v68
  %v80 = vpack.c.b16 %v71, %v70
  %v81 = vpack.c.b16 %v73, %v72
  %v82 = vpack.c.b16 %v75, %v74
  %vm83 = vsmask.f32 7424
  %v85 = vshrl.u32 %v76, 16
  %v87 = vshll.u32 %v76, 16
  %v89 = vrot.slane %v87, 1
  %v90 = vor.u32 %v85, %v89
  %v92 = vshll.u32 %v77, 16
  %v94 = vrot.slane %v92, 1
  %v95 = vsel %vm83, %v90, %v94
  %v96 = vshrl.u32 %v77, 16
  %v98 = vor.u32 %v96, %v94
  %v100 = vshll.u32 %v78, 16
  %v102 = vrot.slane %v100, 1
  %v103 = vsel %vm83, %v98, %v102
  %v104 = vshrl.u32 %v78, 16
  %v106 = vor.u32 %v104, %v102
  %v108 = vshll.u32 %v79, 16
  %v110 = vrot.slane %v108, 1
  %v111 = vsel %vm83, %v106, %v110
  %v112 = vshrl.u32 %v79, 16
  %v114 = vor.u32 %v112, %v110
  %v116 = vshll.u32 %v80, 16
  %v118 = vrot.slane %v116, 1
  %v119 = vsel %vm83, %v114, %v118
  %v120 = vshrl.u32 %v80, 16
  %v122 = vor.u32 %v120, %v118
  %v124 = vshll.u32 %v81, 16
  %v126 = vrot.slane %v124, 1
  %v127 = vsel %vm83, %v122, %v126
  %v128 = vshrl.u32 %v81, 16
  %v130 = vor.u32 %v128, %v126
  %v132 = vshll.u32 %v82, 16
  %v134 = vrot.slane %v132, 1
  %v135 = vsel %vm83, %v130, %v134
  %v136 = vshrl.u32 %v82, 16
  %v138 = vor.u32 %v136, %v134
  %v147 = vunpack.c.l.b16 %v40
  %v148 = vunpack.c.l.b16 %v41
  %v149 = vunpack.c.l.b16 %v42
  %v150 = vunpack.c.l.b16 %v43
  %v151 = vunpack.c.l.b16 %v44
  %v152 = vunpack.c.l.b16 %v45
  %v153 = vunpack.c.l.b16 %v46
  %v154 = vunpack.c.l.b16 %v47
  %v155 = vpack.c.b16 %v148, %v147
  %v156 = vpack.c.b16 %v150, %v149
  %v157 = vpack.c.b16 %v152, %v151
  %v158 = vpack.c.b16 %v154, %v153
  %vm163 = vcmask 523264
  %v165 = vsel %vm163, %v95, 0
  %v168 = vsel %vm163, %v103, 0
  %v171 = vsel %vm163, %v111, 0
  %v174 = vsel %vm163, %v119, 0
  %v177 = vsel %vm163, %v127, 0
  %v180 = vsel %vm163, %v135, 0
  %v183 = vsel %vm163, %v138, 0
  %185 = vmatprep.subr.bf16.mxu0 0
  %186 = vmatpush1.bf16.msra.mxu0 0
  %187 = vmatprep.subr.bf16.mxu0 0
  %188 = vmatpush1.bf16.msra.mxu0 0
  %189 = vmatprep.subr.bf16.mxu0 0
  %190 = vmatpush1.bf16.msra.mxu0 0
  %191 = vmatprep.subr.bf16.mxu0 0
  %192 = vmatpush1.bf16.msra.mxu0 0
  %193 = vmatprep.subr.bf16.mxu0 0
  %194 = vmatpush1.bf16.msra.mxu0 %v158
  %195 = vmatprep.subr.bf16.mxu0 0
  %196 = vmatpush1.bf16.msra.mxu0 %v157
  %197 = vmatprep.subr.bf16.mxu0 0
  %198 = vmatpush1.bf16.msra.mxu0 %v156
  %199 = vmatprep.subr.bf16.mxu0 0
  %200 = vmatpush1.bf16.msra.mxu0 %v155
  %201 = vmatprep.subr.bf16.mxu0 0
  %202 = vmatpush2.bf16.msra.mxu0 0
  %203 = vmatprep.subr.bf16.mxu0 0
  %204 = vmatpush2.bf16.msra.mxu0 0
  %205 = vmatprep.subr.bf16.mxu0 0
  %206 = vmatpush2.bf16.msra.mxu0 0
  %207 = vmatprep.subr.bf16.mxu0 0
  %208 = vmatpush2.bf16.msra.mxu0 0
  %209 = vmatprep.subr.bf16.mxu0 0
  %210 = vmatpush2.bf16.msra.mxu0 0
  %211 = vmatprep.subr.bf16.mxu0 0
  %212 = vmatpush2.bf16.msra.mxu0 0
  %213 = vmatprep.subr.bf16.mxu0 0
  %214 = vmatpush2.bf16.msra.mxu0 0
  %215 = vmatprep.subr.bf16.mxu0 0
  %216 = vmatpush2.bf16.msra.mxu0 0
  %217 = vmatprep.mubr.bf16.mxu0 0
  %218 = vmatmul.mubr.bf16.gmra.mxu0 %v165
  %v219 = vpop.f32.mrf.mxu0
  %v220 = vadd.f32 0.0, %v219
  %v221 = vpop.f32.mrf.mxu0
  %v222 = vpop.f32.mrf.mxu0
  %v223 = vadd.f32 0.0, %v222
  %v224 = vpop.f32.mrf.mxu0
  %225 = vmatprep.mubr.bf16.mxu0 0
  %226 = vmatmul.mubr.bf16.gmra.mxu0 %v168
  %v227 = vpop.f32.mrf.mxu0
  %v228 = vadd.f32 0.0, %v227
  %v229 = vpop.f32.mrf.mxu0
  %v230 = vpop.f32.mrf.mxu0
  %v231 = vadd.f32 0.0, %v230
  %v232 = vpop.f32.mrf.mxu0
  %233 = vmatprep.mubr.bf16.mxu0 0
  %234 = vmatmul.mubr.bf16.gmra.mxu0 %v171
  %v235 = vpop.f32.mrf.mxu0
  %v236 = vadd.f32 0.0, %v235
  %v237 = vpop.f32.mrf.mxu0
  %v238 = vpop.f32.mrf.mxu0
  %v239 = vadd.f32 0.0, %v238
  %v240 = vpop.f32.mrf.mxu0
  %241 = vmatprep.mubr.bf16.mxu0 0
  %242 = vmatmul.mubr.bf16.gmra.mxu0 %v174
  %v243 = vpop.f32.mrf.mxu0
  %v244 = vadd.f32 0.0, %v243
  %v245 = vpop.f32.mrf.mxu0
  %v246 = vpop.f32.mrf.mxu0
  %v247 = vadd.f32 0.0, %v246
  %v248 = vpop.f32.mrf.mxu0
  %249 = vmatprep.mubr.bf16.mxu0 0
  %250 = vmatmul.mubr.bf16.gmra.mxu0 %v177
  %v251 = vpop.f32.mrf.mxu0
  %v252 = vadd.f32 0.0, %v251
  %v253 = vpop.f32.mrf.mxu0
  %v254 = vpop.f32.mrf.mxu0
  %v255 = vadd.f32 0.0, %v254
  %v256 = vpop.f32.mrf.mxu0
  %257 = vmatprep.mubr.bf16.mxu0 0
  %258 = vmatmul.mubr.bf16.gmra.mxu0 %v180
  %v259 = vpop.f32.mrf.mxu0
  %v260 = vadd.f32 0.0, %v259
  %v261 = vpop.f32.mrf.mxu0
  %v262 = vpop.f32.mrf.mxu0
  %v263 = vadd.f32 0.0, %v262
  %v264 = vpop.f32.mrf.mxu0
  %265 = vmatprep.mubr.bf16.mxu0 0
  %266 = vmatmul.mubr.bf16.gmra.mxu0 %v183
  %v267 = vpop.f32.mrf.mxu0
  %v268 = vadd.f32 0.0, %v267
  %v269 = vpop.f32.mrf.mxu0
  %v270 = vpop.f32.mrf.mxu0
  %v271 = vadd.f32 0.0, %v270
  %v272 = vpop.f32.mrf.mxu0
  %273 = vdwg.mxu0
  %v275 = vunpack.c.l.b16 %v29
  %v276 = vpack.c.b16 %v275, %v74
  %v285 = vunpack.c.l.b16 %v30
  %v286 = vunpack.c.l.b16 %v31
  %v287 = vunpack.c.l.b16 %v32
  %v288 = vunpack.c.l.b16 %v33
  %v289 = vunpack.c.l.b16 %v34
  %v290 = vunpack.c.l.b16 %v35
  %v291 = vunpack.c.l.b16 %v36
  %v292 = vunpack.c.l.b16 %v37
  %v293 = vpack.c.b16 %v286, %v285
  %v294 = vpack.c.b16 %v288, %v287
  %v295 = vpack.c.b16 %v290, %v289
  %v296 = vpack.c.b16 %v292, %v291
  %v301 = vsel %vm163, %v76, 0
  %v303 = vsel %vm163, %v77, 0
  %v305 = vsel %vm163, %v78, 0
  %v307 = vsel %vm163, %v79, 0
  %v309 = vsel %vm163, %v80, 0
  %v311 = vsel %vm163, %v81, 0
  %v314 = vsel %vm163, %v276, 0
  %316 = vmatprep.subr.bf16.mxu0 0
  %317 = vmatpush1.bf16.msra.mxu0 0
  %318 = vmatprep.subr.bf16.mxu0 0
  %319 = vmatpush1.bf16.msra.mxu0 0
  %320 = vmatprep.subr.bf16.mxu0 0
  %321 = vmatpush1.bf16.msra.mxu0 0
  %322 = vmatprep.subr.bf16.mxu0 0
  %323 = vmatpush1.bf16.msra.mxu0 0
  %324 = vmatprep.subr.bf16.mxu0 0
  %325 = vmatpush1.bf16.msra.mxu0 %v296
  %326 = vmatprep.subr.bf16.mxu0 0
  %327 = vmatpush1.bf16.msra.mxu0 %v295
  %328 = vmatprep.subr.bf16.mxu0 0
  %329 = vmatpush1.bf16.msra.mxu0 %v294
  %330 = vmatprep.subr.bf16.mxu0 0
  %331 = vmatpush1.bf16.msra.mxu0 %v293
  %332 = vmatprep.subr.bf16.mxu0 0
  %333 = vmatpush2.bf16.msra.mxu0 0
  %334 = vmatprep.subr.bf16.mxu0 0
  %335 = vmatpush2.bf16.msra.mxu0 0
  %336 = vmatprep.subr.bf16.mxu0 0
  %337 = vmatpush2.bf16.msra.mxu0 0
  %338 = vmatprep.subr.bf16.mxu0 0
  %339 = vmatpush2.bf16.msra.mxu0 0
  %340 = vmatprep.subr.bf16.mxu0 0
  %341 = vmatpush2.bf16.msra.mxu0 0
  %342 = vmatprep.subr.bf16.mxu0 0
  %343 = vmatpush2.bf16.msra.mxu0 0
  %344 = vmatprep.subr.bf16.mxu0 0
  %345 = vmatpush2.bf16.msra.mxu0 0
  %346 = vmatprep.subr.bf16.mxu0 0
  %347 = vmatpush2.bf16.msra.mxu0 0
  %348 = vmatprep.mubr.bf16.mxu0 0
  %349 = vmatmul.mubr.bf16.gmra.mxu0 %v301
  %v350 = vpop.f32.mrf.mxu0
  %v351 = vadd.f32 %v220, %v350
  %v352 = vpop.f32.mrf.mxu0
  %v353 = vpop.f32.mrf.mxu0
  %v354 = vadd.f32 %v223, %v353
  %v355 = vpop.f32.mrf.mxu0
  %356 = vmatprep.mubr.bf16.mxu0 0
  %357 = vmatmul.mubr.bf16.gmra.mxu0 %v303
  %v358 = vpop.f32.mrf.mxu0
  %v359 = vadd.f32 %v228, %v358
  %v360 = vpop.f32.mrf.mxu0
  %v361 = vpop.f32.mrf.mxu0
  %v362 = vadd.f32 %v231, %v361
  %v363 = vpop.f32.mrf.mxu0
  %364 = vmatprep.mubr.bf16.mxu0 0
  %365 = vmatmul.mubr.bf16.gmra.mxu0 %v305
  %v366 = vpop.f32.mrf.mxu0
  %v367 = vadd.f32 %v236, %v366
  %v368 = vpop.f32.mrf.mxu0
  %v369 = vpop.f32.mrf.mxu0
  %v370 = vadd.f32 %v239, %v369
  %v371 = vpop.f32.mrf.mxu0
  %372 = vmatprep.mubr.bf16.mxu0 0
  %373 = vmatmul.mubr.bf16.gmra.mxu0 %v307
  %v374 = vpop.f32.mrf.mxu0
  %v375 = vadd.f32 %v244, %v374
  %v376 = vpop.f32.mrf.mxu0
  %v377 = vpop.f32.mrf.mxu0
  %v378 = vadd.f32 %v247, %v377
  %v379 = vpop.f32.mrf.mxu0
  %380 = vmatprep.mubr.bf16.mxu0 0
  %381 = vmatmul.mubr.bf16.gmra.mxu0 %v309
  %v382 = vpop.f32.mrf.mxu0
  %v383 = vadd.f32 %v252, %v382
  %v384 = vpop.f32.mrf.mxu0
  %v385 = vpop.f32.mrf.mxu0
  %v386 = vadd.f32 %v255, %v385
  %v387 = vpop.f32.mrf.mxu0
  %388 = vmatprep.mubr.bf16.mxu0 0
  %389 = vmatmul.mubr.bf16.gmra.mxu0 %v311
  %v390 = vpop.f32.mrf.mxu0
  %v391 = vadd.f32 %v260, %v390
  %v392 = vpop.f32.mrf.mxu0
  %v393 = vpop.f32.mrf.mxu0
  %v394 = vadd.f32 %v263, %v393
  %v395 = vpop.f32.mrf.mxu0
  %396 = vmatprep.mubr.bf16.mxu0 0
  %397 = vmatmul.mubr.bf16.gmra.mxu0 %v314
  %v398 = vpop.f32.mrf.mxu0
  %v399 = vadd.f32 %v268, %v398
  %v400 = vpop.f32.mrf.mxu0
  %v401 = vpop.f32.mrf.mxu0
  %v402 = vadd.f32 %v271, %v401
  %v403 = vpop.f32.mrf.mxu0
  %404 = vdwg.mxu0
  %v405 = vld [vmem:[%s0 + $0x4] sm:$0xe]
  %v406 = vld [vmem:[%s0 + $0x8] sm:$0xf]
  %v407 = vld [vmem:[%s0 + $0xc] sm:$0xf]
  %v408 = vld [vmem:[%s0 + $0x10] sm:$0xf]
  %v409 = vld [vmem:[%s0 + $0x14] sm:$0xf]
  %v410 = vld [vmem:[%s0 + $0x18] sm:$0xf]
  %v411 = vld [vmem:[%s0 + $0x1c] sm:$0xf]
  %v412 = vld [vmem:[%s0 + $0x20] sm:$0xf]
  %v413 = vld [vmem:[%s0 + $0x24] sm:$0xf]
  %v414 = vld [vmem:[%s0 + $0x28] sm:$0xf]
  %v415 = vld [vmem:[%s0 + $0x2c] sm:$0xf]
  %v416 = vld [vmem:[%s0 + $0x30] sm:$0xf]
  %v417 = vld [vmem:[%s0 + $0x34] sm:$0xf]
  %v418 = vld [vmem:[%s0 + $0x38] sm:$0xf]
  %v419 = vld [vmem:[%s0 + $0x3c] sm:$0x1]
  %s420 = scalar_lea.vmem %s1, 64
  %v421 = vld [vmem:[%s420] sm:$0xf]
  %v422 = vld [vmem:[%s420 + $0x4] sm:$0xf]
  %v423 = vld [vmem:[%s420 + $0x8] sm:$0xf]
  %v424 = vld [vmem:[%s420 + $0xc] sm:$0xf]
  %v425 = vld [vmem:[%s420 + $0x10] sm:$0xf]
  %v426 = vld [vmem:[%s420 + $0x14] sm:$0xf]
  %v427 = vld [vmem:[%s420 + $0x18] sm:$0xf]
  %v428 = vld [vmem:[%s420 + $0x1c] sm:$0xf]
  %v444 = vunpack.c.l.b16 %v405
  %v445 = vunpack.c.l.b16 %v406
  %v446 = vunpack.c.l.b16 %v407
  %v447 = vunpack.c.l.b16 %v408
  %v448 = vunpack.c.l.b16 %v409
  %v449 = vunpack.c.l.b16 %v410
  %v450 = vunpack.c.l.b16 %v411
  %v451 = vunpack.c.l.b16 %v412
  %v452 = vunpack.c.l.b16 %v413
  %v453 = vunpack.c.l.b16 %v414
  %v454 = vunpack.c.l.b16 %v415
  %v455 = vunpack.c.l.b16 %v416
  %v456 = vunpack.c.l.b16 %v417
  %v457 = vunpack.c.l.b16 %v418
  %v458 = vunpack.c.l.b16 %v419
  %v459 = vpack.c.b16 %v445, %v444
  %v460 = vpack.c.b16 %v447, %v446
  %v461 = vpack.c.b16 %v449, %v448
  %v462 = vpack.c.b16 %v451, %v450
  %v463 = vpack.c.b16 %v453, %v452
  %v464 = vpack.c.b16 %v455, %v454
  %v465 = vpack.c.b16 %v457, %v456
  %v466 = vpack.c.b16 %v458, %v458
  %vm467 = vsmask.f32 6400
  %v469 = vshrl.u32 %v459, 16
  %v471 = vrot.slane %v469, 1
  %v472 = vshll.u32 %v459, 16
  %v474 = vrot.slane %v472, 2
  %v475 = vor.u32 %v471, %v474
  %v477 = vshrl.u32 %v460, 16
  %v479 = vrot.slane %v477, 1
  %v480 = vshll.u32 %v460, 16
  %v482 = vrot.slane %v480, 2
  %v483 = vor.u32 %v479, %v482
  %v484 = vsel %vm467, %v475, %v483
  %v486 = vshrl.u32 %v461, 16
  %v488 = vrot.slane %v486, 1
  %v489 = vshll.u32 %v461, 16
  %v491 = vrot.slane %v489, 2
  %v492 = vor.u32 %v488, %v491
  %v493 = vsel %vm467, %v483, %v492
  %v495 = vshrl.u32 %v462, 16
  %v497 = vrot.slane %v495, 1
  %v498 = vshll.u32 %v462, 16
  %v500 = vrot.slane %v498, 2
  %v501 = vor.u32 %v497, %v500
  %v502 = vsel %vm467, %v492, %v501
  %v504 = vshrl.u32 %v463, 16
  %v506 = vrot.slane %v504, 1
  %v507 = vshll.u32 %v463, 16
  %v509 = vrot.slane %v507, 2
  %v510 = vor.u32 %v506, %v509
  %v511 = vsel %vm467, %v501, %v510
  %v513 = vshrl.u32 %v464, 16
  %v515 = vrot.slane %v513, 1
  %v516 = vshll.u32 %v464, 16
  %v518 = vrot.slane %v516, 2
  %v519 = vor.u32 %v515, %v518
  %v520 = vsel %vm467, %v510, %v519
  %v522 = vshrl.u32 %v465, 16
  %v524 = vrot.slane %v522, 1
  %v525 = vshll.u32 %v465, 16
  %v527 = vrot.slane %v525, 2
  %v528 = vor.u32 %v524, %v527
  %v529 = vsel %vm467, %v519, %v528
  %v531 = vshll.u32 %v466, 16
  %v533 = vrot.slane %v531, 2
  %v534 = vsel %vm467, %v528, %v533
  %v543 = vunpack.c.l.b16 %v421
  %v544 = vunpack.c.l.b16 %v422
  %v545 = vunpack.c.l.b16 %v423
  %v546 = vunpack.c.l.b16 %v424
  %v547 = vunpack.c.l.b16 %v425
  %v548 = vunpack.c.l.b16 %v426
  %v549 = vunpack.c.l.b16 %v427
  %v550 = vunpack.c.l.b16 %v428
  %v551 = vpack.c.b16 %v544, %v543
  %v552 = vpack.c.b16 %v546, %v545
  %v553 = vpack.c.b16 %v548, %v547
  %v554 = vpack.c.b16 %v550, %v549
  %v560 = vsel %vm163, %v484, 0
  %v563 = vsel %vm163, %v493, 0
  %v566 = vsel %vm163, %v502, 0
  %v569 = vsel %vm163, %v511, 0
  %v572 = vsel %vm163, %v520, 0
  %v575 = vsel %vm163, %v529, 0
  %v578 = vsel %vm163, %v534, 0
  %580 = vmatprep.subr.bf16.mxu0 0
  %581 = vmatpush1.bf16.msra.mxu0 0
  %582 = vmatprep.subr.bf16.mxu0 0
  %583 = vmatpush1.bf16.msra.mxu0 0
  %584 = vmatprep.subr.bf16.mxu0 0
  %585 = vmatpush1.bf16.msra.mxu0 0
  %586 = vmatprep.subr.bf16.mxu0 0
  %587 = vmatpush1.bf16.msra.mxu0 0
  %588 = vmatprep.subr.bf16.mxu0 0
  %589 = vmatpush1.bf16.msra.mxu0 %v554
  %590 = vmatprep.subr.bf16.mxu0 0
  %591 = vmatpush1.bf16.msra.mxu0 %v553
  %592 = vmatprep.subr.bf16.mxu0 0
  %593 = vmatpush1.bf16.msra.mxu0 %v552
  %594 = vmatprep.subr.bf16.mxu0 0
  %595 = vmatpush1.bf16.msra.mxu0 %v551
  %596 = vmatprep.subr.bf16.mxu0 0
  %597 = vmatpush2.bf16.msra.mxu0 0
  %598 = vmatprep.subr.bf16.mxu0 0
  %599 = vmatpush2.bf16.msra.mxu0 0
  %600 = vmatprep.subr.bf16.mxu0 0
  %601 = vmatpush2.bf16.msra.mxu0 0
  %602 = vmatprep.subr.bf16.mxu0 0
  %603 = vmatpush2.bf16.msra.mxu0 0
  %604 = vmatprep.subr.bf16.mxu0 0
  %605 = vmatpush2.bf16.msra.mxu0 0
  %606 = vmatprep.subr.bf16.mxu0 0
  %607 = vmatpush2.bf16.msra.mxu0 0
  %608 = vmatprep.subr.bf16.mxu0 0
  %609 = vmatpush2.bf16.msra.mxu0 0
  %610 = vmatprep.subr.bf16.mxu0 0
  %611 = vmatpush2.bf16.msra.mxu0 0
  %612 = vmatprep.mubr.bf16.mxu0 0
  %613 = vmatmul.mubr.bf16.gmra.mxu0 %v560
  %v614 = vpop.f32.mrf.mxu0
  %v615 = vadd.f32 0.0, %v614
  %v616 = vpop.f32.mrf.mxu0
  %v617 = vpop.f32.mrf.mxu0
  %v618 = vadd.f32 0.0, %v617
  %v619 = vpop.f32.mrf.mxu0
  %620 = vmatprep.mubr.bf16.mxu0 0
  %621 = vmatmul.mubr.bf16.gmra.mxu0 %v563
  %v622 = vpop.f32.mrf.mxu0
  %v623 = vadd.f32 0.0, %v622
  %v624 = vpop.f32.mrf.mxu0
  %v625 = vpop.f32.mrf.mxu0
  %v626 = vadd.f32 0.0, %v625
  %v627 = vpop.f32.mrf.mxu0
  %628 = vmatprep.mubr.bf16.mxu0 0
  %629 = vmatmul.mubr.bf16.gmra.mxu0 %v566
  %v630 = vpop.f32.mrf.mxu0
  %v631 = vadd.f32 0.0, %v630
  %v632 = vpop.f32.mrf.mxu0
  %v633 = vpop.f32.mrf.mxu0
  %v634 = vadd.f32 0.0, %v633
  %v635 = vpop.f32.mrf.mxu0
  %636 = vmatprep.mubr.bf16.mxu0 0
  %637 = vmatmul.mubr.bf16.gmra.mxu0 %v569
  %v638 = vpop.f32.mrf.mxu0
  %v639 = vadd.f32 0.0, %v638
  %v640 = vpop.f32.mrf.mxu0
  %v641 = vpop.f32.mrf.mxu0
  %v642 = vadd.f32 0.0, %v641
  %v643 = vpop.f32.mrf.mxu0
  %644 = vmatprep.mubr.bf16.mxu0 0
  %645 = vmatmul.mubr.bf16.gmra.mxu0 %v572
  %v646 = vpop.f32.mrf.mxu0
  %v647 = vadd.f32 0.0, %v646
  %v648 = vpop.f32.mrf.mxu0
  %v649 = vpop.f32.mrf.mxu0
  %v650 = vadd.f32 0.0, %v649
  %v651 = vpop.f32.mrf.mxu0
  %652 = vmatprep.mubr.bf16.mxu0 0
  %653 = vmatmul.mubr.bf16.gmra.mxu0 %v575
  %v654 = vpop.f32.mrf.mxu0
  %v655 = vadd.f32 0.0, %v654
  %v656 = vpop.f32.mrf.mxu0
  %v657 = vpop.f32.mrf.mxu0
  %v658 = vadd.f32 0.0, %v657
  %v659 = vpop.f32.mrf.mxu0
  %660 = vmatprep.mubr.bf16.mxu0 0
  %661 = vmatmul.mubr.bf16.gmra.mxu0 %v578
  %v662 = vpop.f32.mrf.mxu0
  %v663 = vadd.f32 0.0, %v662
  %v664 = vpop.f32.mrf.mxu0
  %v665 = vpop.f32.mrf.mxu0
  %v666 = vadd.f32 0.0, %v665
  %v667 = vpop.f32.mrf.mxu0
  %668 = vdwg.mxu0
  %v669 = vadd.f32 %v351, %v615
  %v670 = vadd.f32 %v354, %v618
  %v671 = vadd.f32 %v359, %v623
  %v672 = vadd.f32 %v362, %v626
  %v673 = vadd.f32 %v367, %v631
  %v674 = vadd.f32 %v370, %v634
  %v675 = vadd.f32 %v375, %v639
  %v676 = vadd.f32 %v378, %v642
  %v677 = vadd.f32 %v383, %v647
  %v678 = vadd.f32 %v386, %v650
  %v679 = vadd.f32 %v391, %v655
  %v680 = vadd.f32 %v394, %v658
  %v681 = vadd.f32 %v399, %v663
  %v682 = vadd.f32 %v402, %v666
  %v683 = vld [vmem:[%s0 + $0x4] sm:$0xc]
  %s684 = scalar_lea.vmem %s1, 96
  %v685 = vld [vmem:[%s684] sm:$0xf]
  %v686 = vld [vmem:[%s684 + $0x4] sm:$0xf]
  %v687 = vld [vmem:[%s684 + $0x8] sm:$0xf]
  %v688 = vld [vmem:[%s684 + $0xc] sm:$0xf]
  %v689 = vld [vmem:[%s684 + $0x10] sm:$0xf]
  %v690 = vld [vmem:[%s684 + $0x14] sm:$0xf]
  %v691 = vld [vmem:[%s684 + $0x18] sm:$0xf]
  %v692 = vld [vmem:[%s684 + $0x1c] sm:$0xf]
  %v694 = vunpack.c.l.b16 %v683
  %v695 = vpack.c.b16 %v445, %v694
  %vm696 = vcmask 1045504
  %v697 = vrot.slane %v695, 2
  %v698 = vrot.slane %v460, 2
  %v699 = vsel %vm696, %v697, %v698
  %v700 = vrot.slane %v461, 2
  %v701 = vsel %vm696, %v698, %v700
  %v702 = vrot.slane %v462, 2
  %v703 = vsel %vm696, %v700, %v702
  %v704 = vrot.slane %v463, 2
  %v705 = vsel %vm696, %v702, %v704
  %v706 = vrot.slane %v464, 2
  %v707 = vsel %vm696, %v704, %v706
  %v708 = vrot.slane %v465, 2
  %v709 = vsel %vm696, %v706, %v708
  %v710 = vrot.slane %v466, 2
  %v711 = vsel %vm696, %v708, %v710
  %v720 = vunpack.c.l.b16 %v685
  %v721 = vunpack.c.l.b16 %v686
  %v722 = vunpack.c.l.b16 %v687
  %v723 = vunpack.c.l.b16 %v688
  %v724 = vunpack.c.l.b16 %v689
  %v725 = vunpack.c.l.b16 %v690
  %v726 = vunpack.c.l.b16 %v691
  %v727 = vunpack.c.l.b16 %v692
  %v728 = vpack.c.b16 %v721, %v720
  %v729 = vpack.c.b16 %v723, %v722
  %v730 = vpack.c.b16 %v725, %v724
  %v731 = vpack.c.b16 %v727, %v726
  %v737 = vsel %vm163, %v699, 0
  %v740 = vsel %vm163, %v701, 0
  %v743 = vsel %vm163, %v703, 0
  %v746 = vsel %vm163, %v705, 0
  %v749 = vsel %vm163, %v707, 0
  %v752 = vsel %vm163, %v709, 0
  %v755 = vsel %vm163, %v711, 0
  %757 = vmatprep.subr.bf16.mxu0 0
  %758 = vmatpush1.bf16.msra.mxu0 0
  %759 = vmatprep.subr.bf16.mxu0 0
  %760 = vmatpush1.bf16.msra.mxu0 0
  %761 = vmatprep.subr.bf16.mxu0 0
  %762 = vmatpush1.bf16.msra.mxu0 0
  %763 = vmatprep.subr.bf16.mxu0 0
  %764 = vmatpush1.bf16.msra.mxu0 0
  %765 = vmatprep.subr.bf16.mxu0 0
  %766 = vmatpush1.bf16.msra.mxu0 %v731
  %767 = vmatprep.subr.bf16.mxu0 0
  %768 = vmatpush1.bf16.msra.mxu0 %v730
  %769 = vmatprep.subr.bf16.mxu0 0
  %770 = vmatpush1.bf16.msra.mxu0 %v729
  %771 = vmatprep.subr.bf16.mxu0 0
  %772 = vmatpush1.bf16.msra.mxu0 %v728
  %773 = vmatprep.subr.bf16.mxu0 0
  %774 = vmatpush2.bf16.msra.mxu0 0
  %775 = vmatprep.subr.bf16.mxu0 0
  %776 = vmatpush2.bf16.msra.mxu0 0
  %777 = vmatprep.subr.bf16.mxu0 0
  %778 = vmatpush2.bf16.msra.mxu0 0
  %779 = vmatprep.subr.bf16.mxu0 0
  %780 = vmatpush2.bf16.msra.mxu0 0
  %781 = vmatprep.subr.bf16.mxu0 0
  %782 = vmatpush2.bf16.msra.mxu0 0
  %783 = vmatprep.subr.bf16.mxu0 0
  %784 = vmatpush2.bf16.msra.mxu0 0
  %785 = vmatprep.subr.bf16.mxu0 0
  %786 = vmatpush2.bf16.msra.mxu0 0
  %787 = vmatprep.subr.bf16.mxu0 0
  %788 = vmatpush2.bf16.msra.mxu0 0
  %789 = vmatprep.mubr.bf16.mxu0 0
  %790 = vmatmul.mubr.bf16.gmra.mxu0 %v737
  %v791 = vpop.f32.mrf.mxu0
  %v792 = vadd.f32 0.0, %v791
  %v793 = vpop.f32.mrf.mxu0
  %v794 = vpop.f32.mrf.mxu0
  %v795 = vadd.f32 0.0, %v794
  %v796 = vpop.f32.mrf.mxu0
  %797 = vmatprep.mubr.bf16.mxu0 0
  %798 = vmatmul.mubr.bf16.gmra.mxu0 %v740
  %v799 = vpop.f32.mrf.mxu0
  %v800 = vadd.f32 0.0, %v799
  %v801 = vpop.f32.mrf.mxu0
  %v802 = vpop.f32.mrf.mxu0
  %v803 = vadd.f32 0.0, %v802
  %v804 = vpop.f32.mrf.mxu0
  %805 = vmatprep.mubr.bf16.mxu0 0
  %806 = vmatmul.mubr.bf16.gmra.mxu0 %v743
  %v807 = vpop.f32.mrf.mxu0
  %v808 = vadd.f32 0.0, %v807
  %v809 = vpop.f32.mrf.mxu0
  %v810 = vpop.f32.mrf.mxu0
  %v811 = vadd.f32 0.0, %v810
  %v812 = vpop.f32.mrf.mxu0
  %813 = vmatprep.mubr.bf16.mxu0 0
  %814 = vmatmul.mubr.bf16.gmra.mxu0 %v746
  %v815 = vpop.f32.mrf.mxu0
  %v816 = vadd.f32 0.0, %v815
  %v817 = vpop.f32.mrf.mxu0
  %v818 = vpop.f32.mrf.mxu0
  %v819 = vadd.f32 0.0, %v818
  %v820 = vpop.f32.mrf.mxu0
  %821 = vmatprep.mubr.bf16.mxu0 0
  %822 = vmatmul.mubr.bf16.gmra.mxu0 %v749
  %v823 = vpop.f32.mrf.mxu0
  %v824 = vadd.f32 0.0, %v823
  %v825 = vpop.f32.mrf.mxu0
  %v826 = vpop.f32.mrf.mxu0
  %v827 = vadd.f32 0.0, %v826
  %v828 = vpop.f32.mrf.mxu0
  %829 = vmatprep.mubr.bf16.mxu0 0
  %830 = vmatmul.mubr.bf16.gmra.mxu0 %v752
  %v831 = vpop.f32.mrf.mxu0
  %v832 = vadd.f32 0.0, %v831
  %v833 = vpop.f32.mrf.mxu0
  %v834 = vpop.f32.mrf.mxu0
  %v835 = vadd.f32 0.0, %v834
  %v836 = vpop.f32.mrf.mxu0
  %837 = vmatprep.mubr.bf16.mxu0 0
  %838 = vmatmul.mubr.bf16.gmra.mxu0 %v755
  %v839 = vpop.f32.mrf.mxu0
  %v840 = vadd.f32 0.0, %v839
  %v841 = vpop.f32.mrf.mxu0
  %v842 = vpop.f32.mrf.mxu0
  %v843 = vadd.f32 0.0, %v842
  %v844 = vpop.f32.mrf.mxu0
  %845 = vdwg.mxu0
  %v846 = vadd.f32 %v669, %v792
  %v847 = vadd.f32 %v670, %v795
  %v848 = vadd.f32 %v671, %v800
  %v849 = vadd.f32 %v672, %v803
  %v850 = vadd.f32 %v673, %v808
  %v851 = vadd.f32 %v674, %v811
  %v852 = vadd.f32 %v675, %v816
  %v853 = vadd.f32 %v676, %v819
  %v854 = vadd.f32 %v677, %v824
  %v855 = vadd.f32 %v678, %v827
  %v856 = vadd.f32 %v679, %v832
  %v857 = vadd.f32 %v680, %v835
  %v858 = vadd.f32 %v681, %v840
  %v859 = vadd.f32 %v682, %v843
  %v861 = vlaneseq
  %v862 = vshrl.u32 %v861, 7
  %v863 = vsub.s32 0, %v862
  %v864 = vrot.slane %v15, %v863
  %v866 = vadd.f32 %v846, %v864
  %v867 = vadd.f32 %v847, %v864
  %v868 = vadd.f32 %v848, %v864
  %v869 = vadd.f32 %v849, %v864
  %v870 = vadd.f32 %v850, %v864
  %v871 = vadd.f32 %v851, %v864
  %v872 = vadd.f32 %v852, %v864
  %v873 = vadd.f32 %v853, %v864
  %v874 = vadd.f32 %v854, %v864
  %v875 = vadd.f32 %v855, %v864
  %v876 = vadd.f32 %v856, %v864
  %v877 = vadd.f32 %v857, %v864
  %v878 = vadd.f32 %v858, %v864
  %v879 = vadd.f32 %v859, %v864
  %v880 = vmax.f32 %v866, 0.0
  %v881 = vmax.f32 %v867, 0.0
  %v882 = vmax.f32 %v868, 0.0
  %v883 = vmax.f32 %v869, 0.0
  %v884 = vmax.f32 %v870, 0.0
  %v885 = vmax.f32 %v871, 0.0
  %v886 = vmax.f32 %v872, 0.0
  %v887 = vmax.f32 %v873, 0.0
  %v888 = vmax.f32 %v874, 0.0
  %v889 = vmax.f32 %v875, 0.0
  %v890 = vmax.f32 %v876, 0.0
  %v891 = vmax.f32 %v877, 0.0
  %v892 = vmax.f32 %v878, 0.0
  %v893 = vmax.f32 %v879, 0.0
  %v894 = vpack.c.bf16 %v881, %v880
  %v895 = vpack.c.bf16 %v883, %v882
  %v896 = vpack.c.bf16 %v885, %v884
  %v897 = vpack.c.bf16 %v887, %v886
  %v898 = vpack.c.bf16 %v889, %v888
  %v899 = vpack.c.bf16 %v891, %v890
  %v900 = vpack.c.bf16 %v893, %v892
  %v908 = vunpack.c.l.b16 %v894
  %v909 = vunpack.c.h.b16 %v894
  %v910 = vunpack.c.l.b16 %v895
  %v911 = vunpack.c.h.b16 %v895
  %v912 = vunpack.c.l.b16 %v896
  %v913 = vunpack.c.h.b16 %v896
  %v914 = vunpack.c.l.b16 %v897
  %v915 = vunpack.c.h.b16 %v897
  %v916 = vunpack.c.l.b16 %v898
  %v917 = vunpack.c.h.b16 %v898
  %v918 = vunpack.c.l.b16 %v899
  %v919 = vunpack.c.h.b16 %v899
  %v920 = vunpack.c.l.b16 %v900
  %v921 = vunpack.c.h.b16 %v900
  %v922 = vpack.c.b16 %v908, %v908
  %v923 = vpack.c.b16 %v909, %v909
  %v924 = vpack.c.b16 %v910, %v910
  %v925 = vpack.c.b16 %v911, %v911
  %v926 = vpack.c.b16 %v912, %v912
  %v927 = vpack.c.b16 %v913, %v913
  %v928 = vpack.c.b16 %v914, %v914
  %v929 = vpack.c.b16 %v915, %v915
  %v930 = vpack.c.b16 %v916, %v916
  %v931 = vpack.c.b16 %v917, %v917
  %v932 = vpack.c.b16 %v918, %v918
  %v933 = vpack.c.b16 %v919, %v919
  %v934 = vpack.c.b16 %v920, %v920
  %v935 = vpack.c.b16 %v921, %v921
  %vm950 = vcmask 257024
  %951 = vst.msk [vmem:[%s3] sm:$0xf] %vm950, %v922
  %952 = vst.msk [vmem:[%s3 + $0x4] sm:$0xf] %vm950, %v923
  %953 = vst.msk [vmem:[%s3 + $0x8] sm:$0xf] %vm950, %v924
  %954 = vst.msk [vmem:[%s3 + $0xc] sm:$0xf] %vm950, %v925
  %955 = vst.msk [vmem:[%s3 + $0x10] sm:$0xf] %vm950, %v926
  %956 = vst.msk [vmem:[%s3 + $0x14] sm:$0xf] %vm950, %v927
  %957 = vst.msk [vmem:[%s3 + $0x18] sm:$0xf] %vm950, %v928
  %958 = vst.msk [vmem:[%s3 + $0x1c] sm:$0xf] %vm950, %v929
  %959 = vst.msk [vmem:[%s3 + $0x20] sm:$0xf] %vm950, %v930
  %960 = vst.msk [vmem:[%s3 + $0x24] sm:$0xf] %vm950, %v931
  %961 = vst.msk [vmem:[%s3 + $0x28] sm:$0xf] %vm950, %v932
  %962 = vst.msk [vmem:[%s3 + $0x2c] sm:$0xf] %vm950, %v933
  %963 = vst.msk [vmem:[%s3 + $0x30] sm:$0xf] %vm950, %v934
  %vm964 = vcmask 256000
  %965 = vst.msk [vmem:[%s3 + $0x34] sm:$0x7] %vm964, %v935
  %s966 = scalar_lea.vmem %s0, 68
  %v967 = vld [vmem:[%s966] sm:$0xf]
  %v968 = vld [vmem:[%s966 + $0x4] sm:$0xf]
  %v969 = vld [vmem:[%s966 + $0x8] sm:$0xf]
  %v970 = vld [vmem:[%s966 + $0xc] sm:$0xf]
  %v971 = vld [vmem:[%s966 + $0x10] sm:$0xf]
  %v972 = vld [vmem:[%s966 + $0x14] sm:$0xf]
  %v973 = vld [vmem:[%s966 + $0x18] sm:$0xf]
  %v974 = vld [vmem:[%s966 + $0x1c] sm:$0xf]
  %v975 = vld [vmem:[%s966 + $0x20] sm:$0xf]
  %v976 = vld [vmem:[%s966 + $0x24] sm:$0xf]
  %v977 = vld [vmem:[%s966 + $0x28] sm:$0xf]
  %v978 = vld [vmem:[%s966 + $0x2c] sm:$0xf]
  %v979 = vld [vmem:[%s966 + $0x30] sm:$0xf]
  %v980 = vld [vmem:[%s966 + $0x34] sm:$0x7]
  %v981 = vld [vmem:[%s1] sm:$0xf]
  %v982 = vld [vmem:[%s1 + $0x4] sm:$0xf]
  %v983 = vld [vmem:[%s1 + $0x8] sm:$0xf]
  %v984 = vld [vmem:[%s1 + $0xc] sm:$0xf]
  %v985 = vld [vmem:[%s1 + $0x10] sm:$0xf]
  %v986 = vld [vmem:[%s1 + $0x14] sm:$0xf]
  %v987 = vld [vmem:[%s1 + $0x18] sm:$0xf]
  %v988 = vld [vmem:[%s1 + $0x1c] sm:$0xf]
  %v989 = vld [vmem:[%s966 + $0x34] sm:$0xf]
  %v990 = vld [vmem:[%s39] sm:$0xf]
  %v991 = vld [vmem:[%s39 + $0x4] sm:$0xf]
  %v992 = vld [vmem:[%s39 + $0x8] sm:$0xf]
  %v993 = vld [vmem:[%s39 + $0xc] sm:$0xf]
  %v994 = vld [vmem:[%s39 + $0x10] sm:$0xf]
  %v995 = vld [vmem:[%s39 + $0x14] sm:$0xf]
  %v996 = vld [vmem:[%s39 + $0x18] sm:$0xf]
  %v997 = vld [vmem:[%s39 + $0x1c] sm:$0xf]
  %v1012 = vunpack.c.l.b16 %v967
  %v1013 = vunpack.c.l.b16 %v968
  %v1014 = vunpack.c.l.b16 %v969
  %v1015 = vunpack.c.l.b16 %v970
  %v1016 = vunpack.c.l.b16 %v971
  %v1017 = vunpack.c.l.b16 %v972
  %v1018 = vunpack.c.l.b16 %v973
  %v1019 = vunpack.c.l.b16 %v974
  %v1020 = vunpack.c.l.b16 %v975
  %v1021 = vunpack.c.l.b16 %v976
  %v1022 = vunpack.c.l.b16 %v977
  %v1023 = vunpack.c.l.b16 %v978
  %v1024 = vunpack.c.l.b16 %v979
  %v1025 = vunpack.c.l.b16 %v989
  %v1026 = vpack.c.b16 %v1013, %v1012
  %v1027 = vpack.c.b16 %v1015, %v1014
  %v1028 = vpack.c.b16 %v1017, %v1016
  %v1029 = vpack.c.b16 %v1019, %v1018
  %v1030 = vpack.c.b16 %v1021, %v1020
  %v1031 = vpack.c.b16 %v1023, %v1022
  %v1032 = vpack.c.b16 %v1025, %v1024
  %v1034 = vshrl.u32 %v1026, 16
  %v1036 = vshll.u32 %v1026, 16
  %v1038 = vrot.slane %v1036, 1
  %v1039 = vor.u32 %v1034, %v1038
  %v1041 = vshll.u32 %v1027, 16
  %v1043 = vrot.slane %v1041, 1
  %v1044 = vsel %vm83, %v1039, %v1043
  %v1045 = vshrl.u32 %v1027, 16
  %v1047 = vor.u32 %v1045, %v1043
  %v1049 = vshll.u32 %v1028, 16
  %v1051 = vrot.slane %v1049, 1
  %v1052 = vsel %vm83, %v1047, %v1051
  %v1053 = vshrl.u32 %v1028, 16
  %v1055 = vor.u32 %v1053, %v1051
  %v1057 = vshll.u32 %v1029, 16
  %v1059 = vrot.slane %v1057, 1
  %v1060 = vsel %vm83, %v1055, %v1059
  %v1061 = vshrl.u32 %v1029, 16
  %v1063 = vor.u32 %v1061, %v1059
  %v1065 = vshll.u32 %v1030, 16
  %v1067 = vrot.slane %v1065, 1
  %v1068 = vsel %vm83, %v1063, %v1067
  %v1069 = vshrl.u32 %v1030, 16
  %v1071 = vor.u32 %v1069, %v1067
  %v1073 = vshll.u32 %v1031, 16
  %v1075 = vrot.slane %v1073, 1
  %v1076 = vsel %vm83, %v1071, %v1075
  %v1077 = vshrl.u32 %v1031, 16
  %v1079 = vor.u32 %v1077, %v1075
  %v1081 = vshll.u32 %v1032, 16
  %v1083 = vrot.slane %v1081, 1
  %v1084 = vsel %vm83, %v1079, %v1083
  %v1085 = vshrl.u32 %v1032, 16
  %v1087 = vor.u32 %v1085, %v1083
  %v1096 = vunpack.c.l.b16 %v990
  %v1097 = vunpack.c.l.b16 %v991
  %v1098 = vunpack.c.l.b16 %v992
  %v1099 = vunpack.c.l.b16 %v993
  %v1100 = vunpack.c.l.b16 %v994
  %v1101 = vunpack.c.l.b16 %v995
  %v1102 = vunpack.c.l.b16 %v996
  %v1103 = vunpack.c.l.b16 %v997
  %v1104 = vpack.c.b16 %v1097, %v1096
  %v1105 = vpack.c.b16 %v1099, %v1098
  %v1106 = vpack.c.b16 %v1101, %v1100
  %v1107 = vpack.c.b16 %v1103, %v1102
  %v1113 = vsel %vm163, %v1044, 0
  %v1116 = vsel %vm163, %v1052, 0
  %v1119 = vsel %vm163, %v1060, 0
  %v1122 = vsel %vm163, %v1068, 0
  %v1125 = vsel %vm163, %v1076, 0
  %v1128 = vsel %vm163, %v1084, 0
  %v1131 = vsel %vm163, %v1087, 0
  %1133 = vmatprep.subr.bf16.mxu0 0
  %1134 = vmatpush1.bf16.msra.mxu0 0
  %1135 = vmatprep.subr.bf16.mxu0 0
  %1136 = vmatpush1.bf16.msra.mxu0 0
  %1137 = vmatprep.subr.bf16.mxu0 0
  %1138 = vmatpush1.bf16.msra.mxu0 0
  %1139 = vmatprep.subr.bf16.mxu0 0
  %1140 = vmatpush1.bf16.msra.mxu0 0
  %1141 = vmatprep.subr.bf16.mxu0 0
  %1142 = vmatpush1.bf16.msra.mxu0 %v1107
  %1143 = vmatprep.subr.bf16.mxu0 0
  %1144 = vmatpush1.bf16.msra.mxu0 %v1106
  %1145 = vmatprep.subr.bf16.mxu0 0
  %1146 = vmatpush1.bf16.msra.mxu0 %v1105
  %1147 = vmatprep.subr.bf16.mxu0 0
  %1148 = vmatpush1.bf16.msra.mxu0 %v1104
  %1149 = vmatprep.subr.bf16.mxu0 0
  %1150 = vmatpush2.bf16.msra.mxu0 0
  %1151 = vmatprep.subr.bf16.mxu0 0
  %1152 = vmatpush2.bf16.msra.mxu0 0
  %1153 = vmatprep.subr.bf16.mxu0 0
  %1154 = vmatpush2.bf16.msra.mxu0 0
  %1155 = vmatprep.subr.bf16.mxu0 0
  %1156 = vmatpush2.bf16.msra.mxu0 0
  %1157 = vmatprep.subr.bf16.mxu0 0
  %1158 = vmatpush2.bf16.msra.mxu0 0
  %1159 = vmatprep.subr.bf16.mxu0 0
  %1160 = vmatpush2.bf16.msra.mxu0 0
  %1161 = vmatprep.subr.bf16.mxu0 0
  %1162 = vmatpush2.bf16.msra.mxu0 0
  %1163 = vmatprep.subr.bf16.mxu0 0
  %1164 = vmatpush2.bf16.msra.mxu0 0
  %1165 = vmatprep.mubr.bf16.mxu0 0
  %1166 = vmatmul.mubr.bf16.gmra.mxu0 %v1113
  %v1167 = vpop.f32.mrf.mxu0
  %v1168 = vadd.f32 0.0, %v1167
  %v1169 = vpop.f32.mrf.mxu0
  %v1170 = vpop.f32.mrf.mxu0
  %v1171 = vadd.f32 0.0, %v1170
  %v1172 = vpop.f32.mrf.mxu0
  %1173 = vmatprep.mubr.bf16.mxu0 0
  %1174 = vmatmul.mubr.bf16.gmra.mxu0 %v1116
  %v1175 = vpop.f32.mrf.mxu0
  %v1176 = vadd.f32 0.0, %v1175
  %v1177 = vpop.f32.mrf.mxu0
  %v1178 = vpop.f32.mrf.mxu0
  %v1179 = vadd.f32 0.0, %v1178
  %v1180 = vpop.f32.mrf.mxu0
  %1181 = vmatprep.mubr.bf16.mxu0 0
  %1182 = vmatmul.mubr.bf16.gmra.mxu0 %v1119
  %v1183 = vpop.f32.mrf.mxu0
  %v1184 = vadd.f32 0.0, %v1183
  %v1185 = vpop.f32.mrf.mxu0
  %v1186 = vpop.f32.mrf.mxu0
  %v1187 = vadd.f32 0.0, %v1186
  %v1188 = vpop.f32.mrf.mxu0
  %1189 = vmatprep.mubr.bf16.mxu0 0
  %1190 = vmatmul.mubr.bf16.gmra.mxu0 %v1122
  %v1191 = vpop.f32.mrf.mxu0
  %v1192 = vadd.f32 0.0, %v1191
  %v1193 = vpop.f32.mrf.mxu0
  %v1194 = vpop.f32.mrf.mxu0
  %v1195 = vadd.f32 0.0, %v1194
  %v1196 = vpop.f32.mrf.mxu0
  %1197 = vmatprep.mubr.bf16.mxu0 0
  %1198 = vmatmul.mubr.bf16.gmra.mxu0 %v1125
  %v1199 = vpop.f32.mrf.mxu0
  %v1200 = vadd.f32 0.0, %v1199
  %v1201 = vpop.f32.mrf.mxu0
  %v1202 = vpop.f32.mrf.mxu0
  %v1203 = vadd.f32 0.0, %v1202
  %v1204 = vpop.f32.mrf.mxu0
  %1205 = vmatprep.mubr.bf16.mxu0 0
  %1206 = vmatmul.mubr.bf16.gmra.mxu0 %v1128
  %v1207 = vpop.f32.mrf.mxu0
  %v1208 = vadd.f32 0.0, %v1207
  %v1209 = vpop.f32.mrf.mxu0
  %v1210 = vpop.f32.mrf.mxu0
  %v1211 = vadd.f32 0.0, %v1210
  %v1212 = vpop.f32.mrf.mxu0
  %1213 = vmatprep.mubr.bf16.mxu0 0
  %1214 = vmatmul.mubr.bf16.gmra.mxu0 %v1131
  %v1215 = vpop.f32.mrf.mxu0
  %v1216 = vadd.f32 0.0, %v1215
  %v1217 = vpop.f32.mrf.mxu0
  %v1218 = vpop.f32.mrf.mxu0
  %v1219 = vadd.f32 0.0, %v1218
  %v1220 = vpop.f32.mrf.mxu0
  %1221 = vdwg.mxu0
  %v1223 = vunpack.c.l.b16 %v980
  %v1224 = vpack.c.b16 %v1223, %v1024
  %v1233 = vunpack.c.l.b16 %v981
  %v1234 = vunpack.c.l.b16 %v982
  %v1235 = vunpack.c.l.b16 %v983
  %v1236 = vunpack.c.l.b16 %v984
  %v1237 = vunpack.c.l.b16 %v985
  %v1238 = vunpack.c.l.b16 %v986
  %v1239 = vunpack.c.l.b16 %v987
  %v1240 = vunpack.c.l.b16 %v988
  %v1241 = vpack.c.b16 %v1234, %v1233
  %v1242 = vpack.c.b16 %v1236, %v1235
  %v1243 = vpack.c.b16 %v1238, %v1237
  %v1244 = vpack.c.b16 %v1240, %v1239
  %v1249 = vsel %vm163, %v1026, 0
  %v1251 = vsel %vm163, %v1027, 0
  %v1253 = vsel %vm163, %v1028, 0
  %v1255 = vsel %vm163, %v1029, 0
  %v1257 = vsel %vm163, %v1030, 0
  %v1259 = vsel %vm163, %v1031, 0
  %v1262 = vsel %vm163, %v1224, 0
  %1264 = vmatprep.subr.bf16.mxu0 0
  %1265 = vmatpush1.bf16.msra.mxu0 0
  %1266 = vmatprep.subr.bf16.mxu0 0
  %1267 = vmatpush1.bf16.msra.mxu0 0
  %1268 = vmatprep.subr.bf16.mxu0 0
  %1269 = vmatpush1.bf16.msra.mxu0 0
  %1270 = vmatprep.subr.bf16.mxu0 0
  %1271 = vmatpush1.bf16.msra.mxu0 0
  %1272 = vmatprep.subr.bf16.mxu0 0
  %1273 = vmatpush1.bf16.msra.mxu0 %v1244
  %1274 = vmatprep.subr.bf16.mxu0 0
  %1275 = vmatpush1.bf16.msra.mxu0 %v1243
  %1276 = vmatprep.subr.bf16.mxu0 0
  %1277 = vmatpush1.bf16.msra.mxu0 %v1242
  %1278 = vmatprep.subr.bf16.mxu0 0
  %1279 = vmatpush1.bf16.msra.mxu0 %v1241
  %1280 = vmatprep.subr.bf16.mxu0 0
  %1281 = vmatpush2.bf16.msra.mxu0 0
  %1282 = vmatprep.subr.bf16.mxu0 0
  %1283 = vmatpush2.bf16.msra.mxu0 0
  %1284 = vmatprep.subr.bf16.mxu0 0
  %1285 = vmatpush2.bf16.msra.mxu0 0
  %1286 = vmatprep.subr.bf16.mxu0 0
  %1287 = vmatpush2.bf16.msra.mxu0 0
  %1288 = vmatprep.subr.bf16.mxu0 0
  %1289 = vmatpush2.bf16.msra.mxu0 0
  %1290 = vmatprep.subr.bf16.mxu0 0
  %1291 = vmatpush2.bf16.msra.mxu0 0
  %1292 = vmatprep.subr.bf16.mxu0 0
  %1293 = vmatpush2.bf16.msra.mxu0 0
  %1294 = vmatprep.subr.bf16.mxu0 0
  %1295 = vmatpush2.bf16.msra.mxu0 0
  %1296 = vmatprep.mubr.bf16.mxu0 0
  %1297 = vmatmul.mubr.bf16.gmra.mxu0 %v1249
  %v1298 = vpop.f32.mrf.mxu0
  %v1299 = vadd.f32 %v1168, %v1298
  %v1300 = vpop.f32.mrf.mxu0
  %v1301 = vpop.f32.mrf.mxu0
  %v1302 = vadd.f32 %v1171, %v1301
  %v1303 = vpop.f32.mrf.mxu0
  %1304 = vmatprep.mubr.bf16.mxu0 0
  %1305 = vmatmul.mubr.bf16.gmra.mxu0 %v1251
  %v1306 = vpop.f32.mrf.mxu0
  %v1307 = vadd.f32 %v1176, %v1306
  %v1308 = vpop.f32.mrf.mxu0
  %v1309 = vpop.f32.mrf.mxu0
  %v1310 = vadd.f32 %v1179, %v1309
  %v1311 = vpop.f32.mrf.mxu0
  %1312 = vmatprep.mubr.bf16.mxu0 0
  %1313 = vmatmul.mubr.bf16.gmra.mxu0 %v1253
  %v1314 = vpop.f32.mrf.mxu0
  %v1315 = vadd.f32 %v1184, %v1314
  %v1316 = vpop.f32.mrf.mxu0
  %v1317 = vpop.f32.mrf.mxu0
  %v1318 = vadd.f32 %v1187, %v1317
  %v1319 = vpop.f32.mrf.mxu0
  %1320 = vmatprep.mubr.bf16.mxu0 0
  %1321 = vmatmul.mubr.bf16.gmra.mxu0 %v1255
  %v1322 = vpop.f32.mrf.mxu0
  %v1323 = vadd.f32 %v1192, %v1322
  %v1324 = vpop.f32.mrf.mxu0
  %v1325 = vpop.f32.mrf.mxu0
  %v1326 = vadd.f32 %v1195, %v1325
  %v1327 = vpop.f32.mrf.mxu0
  %1328 = vmatprep.mubr.bf16.mxu0 0
  %1329 = vmatmul.mubr.bf16.gmra.mxu0 %v1257
  %v1330 = vpop.f32.mrf.mxu0
  %v1331 = vadd.f32 %v1200, %v1330
  %v1332 = vpop.f32.mrf.mxu0
  %v1333 = vpop.f32.mrf.mxu0
  %v1334 = vadd.f32 %v1203, %v1333
  %v1335 = vpop.f32.mrf.mxu0
  %1336 = vmatprep.mubr.bf16.mxu0 0
  %1337 = vmatmul.mubr.bf16.gmra.mxu0 %v1259
  %v1338 = vpop.f32.mrf.mxu0
  %v1339 = vadd.f32 %v1208, %v1338
  %v1340 = vpop.f32.mrf.mxu0
  %v1341 = vpop.f32.mrf.mxu0
  %v1342 = vadd.f32 %v1211, %v1341
  %v1343 = vpop.f32.mrf.mxu0
  %1344 = vmatprep.mubr.bf16.mxu0 0
  %1345 = vmatmul.mubr.bf16.gmra.mxu0 %v1262
  %v1346 = vpop.f32.mrf.mxu0
  %v1347 = vadd.f32 %v1216, %v1346
  %v1348 = vpop.f32.mrf.mxu0
  %v1349 = vpop.f32.mrf.mxu0
  %v1350 = vadd.f32 %v1219, %v1349
  %v1351 = vpop.f32.mrf.mxu0
  %1352 = vdwg.mxu0
  %v1353 = vld [vmem:[%s966 + $0x4] sm:$0xe]
  %v1354 = vld [vmem:[%s966 + $0x8] sm:$0xf]
  %v1355 = vld [vmem:[%s966 + $0xc] sm:$0xf]
  %v1356 = vld [vmem:[%s966 + $0x10] sm:$0xf]
  %v1357 = vld [vmem:[%s966 + $0x14] sm:$0xf]
  %v1358 = vld [vmem:[%s966 + $0x18] sm:$0xf]
  %v1359 = vld [vmem:[%s966 + $0x1c] sm:$0xf]
  %v1360 = vld [vmem:[%s966 + $0x20] sm:$0xf]
  %v1361 = vld [vmem:[%s966 + $0x24] sm:$0xf]
  %v1362 = vld [vmem:[%s966 + $0x28] sm:$0xf]
  %v1363 = vld [vmem:[%s966 + $0x2c] sm:$0xf]
  %v1364 = vld [vmem:[%s966 + $0x30] sm:$0xf]
  %v1365 = vld [vmem:[%s966 + $0x34] sm:$0xf]
  %v1366 = vld [vmem:[%s966 + $0x38] sm:$0xf]
  %v1367 = vld [vmem:[%s966 + $0x3c] sm:$0x1]
  %v1368 = vld [vmem:[%s420] sm:$0xf]
  %v1369 = vld [vmem:[%s420 + $0x4] sm:$0xf]
  %v1370 = vld [vmem:[%s420 + $0x8] sm:$0xf]
  %v1371 = vld [vmem:[%s420 + $0xc] sm:$0xf]
  %v1372 = vld [vmem:[%s420 + $0x10] sm:$0xf]
  %v1373 = vld [vmem:[%s420 + $0x14] sm:$0xf]
  %v1374 = vld [vmem:[%s420 + $0x18] sm:$0xf]
  %v1375 = vld [vmem:[%s420 + $0x1c] sm:$0xf]
  %v1391 = vunpack.c.l.b16 %v1353
  %v1392 = vunpack.c.l.b16 %v1354
  %v1393 = vunpack.c.l.b16 %v1355
  %v1394 = vunpack.c.l.b16 %v1356
  %v1395 = vunpack.c.l.b16 %v1357
  %v1396 = vunpack.c.l.b16 %v1358
  %v1397 = vunpack.c.l.b16 %v1359
  %v1398 = vunpack.c.l.b16 %v1360
  %v1399 = vunpack.c.l.b16 %v1361
  %v1400 = vunpack.c.l.b16 %v1362
  %v1401 = vunpack.c.l.b16 %v1363
  %v1402 = vunpack.c.l.b16 %v1364
  %v1403 = vunpack.c.l.b16 %v1365
  %v1404 = vunpack.c.l.b16 %v1366
  %v1405 = vunpack.c.l.b16 %v1367
  %v1406 = vpack.c.b16 %v1392, %v1391
  %v1407 = vpack.c.b16 %v1394, %v1393
  %v1408 = vpack.c.b16 %v1396, %v1395
  %v1409 = vpack.c.b16 %v1398, %v1397
  %v1410 = vpack.c.b16 %v1400, %v1399
  %v1411 = vpack.c.b16 %v1402, %v1401
  %v1412 = vpack.c.b16 %v1404, %v1403
  %v1413 = vpack.c.b16 %v1405, %v1405
  %v1415 = vshrl.u32 %v1406, 16
  %v1417 = vrot.slane %v1415, 1
  %v1418 = vshll.u32 %v1406, 16
  %v1420 = vrot.slane %v1418, 2
  %v1421 = vor.u32 %v1417, %v1420
  %v1423 = vshrl.u32 %v1407, 16
  %v1425 = vrot.slane %v1423, 1
  %v1426 = vshll.u32 %v1407, 16
  %v1428 = vrot.slane %v1426, 2
  %v1429 = vor.u32 %v1425, %v1428
  %v1430 = vsel %vm467, %v1421, %v1429
  %v1432 = vshrl.u32 %v1408, 16
  %v1434 = vrot.slane %v1432, 1
  %v1435 = vshll.u32 %v1408, 16
  %v1437 = vrot.slane %v1435, 2
  %v1438 = vor.u32 %v1434, %v1437
  %v1439 = vsel %vm467, %v1429, %v1438
  %v1441 = vshrl.u32 %v1409, 16
  %v1443 = vrot.slane %v1441, 1
  %v1444 = vshll.u32 %v1409, 16
  %v1446 = vrot.slane %v1444, 2
  %v1447 = vor.u32 %v1443, %v1446
  %v1448 = vsel %vm467, %v1438, %v1447
  %v1450 = vshrl.u32 %v1410, 16
  %v1452 = vrot.slane %v1450, 1
  %v1453 = vshll.u32 %v1410, 16
  %v1455 = vrot.slane %v1453, 2
  %v1456 = vor.u32 %v1452, %v1455
  %v1457 = vsel %vm467, %v1447, %v1456
  %v1459 = vshrl.u32 %v1411, 16
  %v1461 = vrot.slane %v1459, 1
  %v1462 = vshll.u32 %v1411, 16
  %v1464 = vrot.slane %v1462, 2
  %v1465 = vor.u32 %v1461, %v1464
  %v1466 = vsel %vm467, %v1456, %v1465
  %v1468 = vshrl.u32 %v1412, 16
  %v1470 = vrot.slane %v1468, 1
  %v1471 = vshll.u32 %v1412, 16
  %v1473 = vrot.slane %v1471, 2
  %v1474 = vor.u32 %v1470, %v1473
  %v1475 = vsel %vm467, %v1465, %v1474
  %v1477 = vshll.u32 %v1413, 16
  %v1479 = vrot.slane %v1477, 2
  %v1480 = vsel %vm467, %v1474, %v1479
  %v1489 = vunpack.c.l.b16 %v1368
  %v1490 = vunpack.c.l.b16 %v1369
  %v1491 = vunpack.c.l.b16 %v1370
  %v1492 = vunpack.c.l.b16 %v1371
  %v1493 = vunpack.c.l.b16 %v1372
  %v1494 = vunpack.c.l.b16 %v1373
  %v1495 = vunpack.c.l.b16 %v1374
  %v1496 = vunpack.c.l.b16 %v1375
  %v1497 = vpack.c.b16 %v1490, %v1489
  %v1498 = vpack.c.b16 %v1492, %v1491
  %v1499 = vpack.c.b16 %v1494, %v1493
  %v1500 = vpack.c.b16 %v1496, %v1495
  %v1506 = vsel %vm163, %v1430, 0
  %v1509 = vsel %vm163, %v1439, 0
  %v1512 = vsel %vm163, %v1448, 0
  %v1515 = vsel %vm163, %v1457, 0
  %v1518 = vsel %vm163, %v1466, 0
  %v1521 = vsel %vm163, %v1475, 0
  %v1524 = vsel %vm163, %v1480, 0
  %1526 = vmatprep.subr.bf16.mxu0 0
  %1527 = vmatpush1.bf16.msra.mxu0 0
  %1528 = vmatprep.subr.bf16.mxu0 0
  %1529 = vmatpush1.bf16.msra.mxu0 0
  %1530 = vmatprep.subr.bf16.mxu0 0
  %1531 = vmatpush1.bf16.msra.mxu0 0
  %1532 = vmatprep.subr.bf16.mxu0 0
  %1533 = vmatpush1.bf16.msra.mxu0 0
  %1534 = vmatprep.subr.bf16.mxu0 0
  %1535 = vmatpush1.bf16.msra.mxu0 %v1500
  %1536 = vmatprep.subr.bf16.mxu0 0
  %1537 = vmatpush1.bf16.msra.mxu0 %v1499
  %1538 = vmatprep.subr.bf16.mxu0 0
  %1539 = vmatpush1.bf16.msra.mxu0 %v1498
  %1540 = vmatprep.subr.bf16.mxu0 0
  %1541 = vmatpush1.bf16.msra.mxu0 %v1497
  %1542 = vmatprep.subr.bf16.mxu0 0
  %1543 = vmatpush2.bf16.msra.mxu0 0
  %1544 = vmatprep.subr.bf16.mxu0 0
  %1545 = vmatpush2.bf16.msra.mxu0 0
  %1546 = vmatprep.subr.bf16.mxu0 0
  %1547 = vmatpush2.bf16.msra.mxu0 0
  %1548 = vmatprep.subr.bf16.mxu0 0
  %1549 = vmatpush2.bf16.msra.mxu0 0
  %1550 = vmatprep.subr.bf16.mxu0 0
  %1551 = vmatpush2.bf16.msra.mxu0 0
  %1552 = vmatprep.subr.bf16.mxu0 0
  %1553 = vmatpush2.bf16.msra.mxu0 0
  %1554 = vmatprep.subr.bf16.mxu0 0
  %1555 = vmatpush2.bf16.msra.mxu0 0
  %1556 = vmatprep.subr.bf16.mxu0 0
  %1557 = vmatpush2.bf16.msra.mxu0 0
  %1558 = vmatprep.mubr.bf16.mxu0 0
  %1559 = vmatmul.mubr.bf16.gmra.mxu0 %v1506
  %v1560 = vpop.f32.mrf.mxu0
  %v1561 = vadd.f32 0.0, %v1560
  %v1562 = vpop.f32.mrf.mxu0
  %v1563 = vpop.f32.mrf.mxu0
  %v1564 = vadd.f32 0.0, %v1563
  %v1565 = vpop.f32.mrf.mxu0
  %1566 = vmatprep.mubr.bf16.mxu0 0
  %1567 = vmatmul.mubr.bf16.gmra.mxu0 %v1509
  %v1568 = vpop.f32.mrf.mxu0
  %v1569 = vadd.f32 0.0, %v1568
  %v1570 = vpop.f32.mrf.mxu0
  %v1571 = vpop.f32.mrf.mxu0
  %v1572 = vadd.f32 0.0, %v1571
  %v1573 = vpop.f32.mrf.mxu0
  %1574 = vmatprep.mubr.bf16.mxu0 0
  %1575 = vmatmul.mubr.bf16.gmra.mxu0 %v1512
  %v1576 = vpop.f32.mrf.mxu0
  %v1577 = vadd.f32 0.0, %v1576
  %v1578 = vpop.f32.mrf.mxu0
  %v1579 = vpop.f32.mrf.mxu0
  %v1580 = vadd.f32 0.0, %v1579
  %v1581 = vpop.f32.mrf.mxu0
  %1582 = vmatprep.mubr.bf16.mxu0 0
  %1583 = vmatmul.mubr.bf16.gmra.mxu0 %v1515
  %v1584 = vpop.f32.mrf.mxu0
  %v1585 = vadd.f32 0.0, %v1584
  %v1586 = vpop.f32.mrf.mxu0
  %v1587 = vpop.f32.mrf.mxu0
  %v1588 = vadd.f32 0.0, %v1587
  %v1589 = vpop.f32.mrf.mxu0
  %1590 = vmatprep.mubr.bf16.mxu0 0
  %1591 = vmatmul.mubr.bf16.gmra.mxu0 %v1518
  %v1592 = vpop.f32.mrf.mxu0
  %v1593 = vadd.f32 0.0, %v1592
  %v1594 = vpop.f32.mrf.mxu0
  %v1595 = vpop.f32.mrf.mxu0
  %v1596 = vadd.f32 0.0, %v1595
  %v1597 = vpop.f32.mrf.mxu0
  %1598 = vmatprep.mubr.bf16.mxu0 0
  %1599 = vmatmul.mubr.bf16.gmra.mxu0 %v1521
  %v1600 = vpop.f32.mrf.mxu0
  %v1601 = vadd.f32 0.0, %v1600
  %v1602 = vpop.f32.mrf.mxu0
  %v1603 = vpop.f32.mrf.mxu0
  %v1604 = vadd.f32 0.0, %v1603
  %v1605 = vpop.f32.mrf.mxu0
  %1606 = vmatprep.mubr.bf16.mxu0 0
  %1607 = vmatmul.mubr.bf16.gmra.mxu0 %v1524
  %v1608 = vpop.f32.mrf.mxu0
  %v1609 = vadd.f32 0.0, %v1608
  %v1610 = vpop.f32.mrf.mxu0
  %v1611 = vpop.f32.mrf.mxu0
  %v1612 = vadd.f32 0.0, %v1611
  %v1613 = vpop.f32.mrf.mxu0
  %1614 = vdwg.mxu0
  %v1615 = vadd.f32 %v1299, %v1561
  %v1616 = vadd.f32 %v1302, %v1564
  %v1617 = vadd.f32 %v1307, %v1569
  %v1618 = vadd.f32 %v1310, %v1572
  %v1619 = vadd.f32 %v1315, %v1577
  %v1620 = vadd.f32 %v1318, %v1580
  %v1621 = vadd.f32 %v1323, %v1585
  %v1622 = vadd.f32 %v1326, %v1588
  %v1623 = vadd.f32 %v1331, %v1593
  %v1624 = vadd.f32 %v1334, %v1596
  %v1625 = vadd.f32 %v1339, %v1601
  %v1626 = vadd.f32 %v1342, %v1604
  %v1627 = vadd.f32 %v1347, %v1609
  %v1628 = vadd.f32 %v1350, %v1612
  %v1629 = vld [vmem:[%s966 + $0x4] sm:$0xc]
  %v1630 = vld [vmem:[%s684] sm:$0xf]
  %v1631 = vld [vmem:[%s684 + $0x4] sm:$0xf]
  %v1632 = vld [vmem:[%s684 + $0x8] sm:$0xf]
  %v1633 = vld [vmem:[%s684 + $0xc] sm:$0xf]
  %v1634 = vld [vmem:[%s684 + $0x10] sm:$0xf]
  %v1635 = vld [vmem:[%s684 + $0x14] sm:$0xf]
  %v1636 = vld [vmem:[%s684 + $0x18] sm:$0xf]
  %v1637 = vld [vmem:[%s684 + $0x1c] sm:$0xf]
  %v1639 = vunpack.c.l.b16 %v1629
  %v1640 = vpack.c.b16 %v1392, %v1639
  %v1641 = vrot.slane %v1640, 2
  %v1642 = vrot.slane %v1407, 2
  %v1643 = vsel %vm696, %v1641, %v1642
  %v1644 = vrot.slane %v1408, 2
  %v1645 = vsel %vm696, %v1642, %v1644
  %v1646 = vrot.slane %v1409, 2
  %v1647 = vsel %vm696, %v1644, %v1646
  %v1648 = vrot.slane %v1410, 2
  %v1649 = vsel %vm696, %v1646, %v1648
  %v1650 = vrot.slane %v1411, 2
  %v1651 = vsel %vm696, %v1648, %v1650
  %v1652 = vrot.slane %v1412, 2
  %v1653 = vsel %vm696, %v1650, %v1652
  %v1654 = vrot.slane %v1413, 2
  %v1655 = vsel %vm696, %v1652, %v1654
  %v1664 = vunpack.c.l.b16 %v1630
  %v1665 = vunpack.c.l.b16 %v1631
  %v1666 = vunpack.c.l.b16 %v1632
  %v1667 = vunpack.c.l.b16 %v1633
  %v1668 = vunpack.c.l.b16 %v1634
  %v1669 = vunpack.c.l.b16 %v1635
  %v1670 = vunpack.c.l.b16 %v1636
  %v1671 = vunpack.c.l.b16 %v1637
  %v1672 = vpack.c.b16 %v1665, %v1664
  %v1673 = vpack.c.b16 %v1667, %v1666
  %v1674 = vpack.c.b16 %v1669, %v1668
  %v1675 = vpack.c.b16 %v1671, %v1670
  %v1681 = vsel %vm163, %v1643, 0
  %v1684 = vsel %vm163, %v1645, 0
  %v1687 = vsel %vm163, %v1647, 0
  %v1690 = vsel %vm163, %v1649, 0
  %v1693 = vsel %vm163, %v1651, 0
  %v1696 = vsel %vm163, %v1653, 0
  %v1699 = vsel %vm163, %v1655, 0
  %1701 = vmatprep.subr.bf16.mxu0 0
  %1702 = vmatpush1.bf16.msra.mxu0 0
  %1703 = vmatprep.subr.bf16.mxu0 0
  %1704 = vmatpush1.bf16.msra.mxu0 0
  %1705 = vmatprep.subr.bf16.mxu0 0
  %1706 = vmatpush1.bf16.msra.mxu0 0
  %1707 = vmatprep.subr.bf16.mxu0 0
  %1708 = vmatpush1.bf16.msra.mxu0 0
  %1709 = vmatprep.subr.bf16.mxu0 0
  %1710 = vmatpush1.bf16.msra.mxu0 %v1675
  %1711 = vmatprep.subr.bf16.mxu0 0
  %1712 = vmatpush1.bf16.msra.mxu0 %v1674
  %1713 = vmatprep.subr.bf16.mxu0 0
  %1714 = vmatpush1.bf16.msra.mxu0 %v1673
  %1715 = vmatprep.subr.bf16.mxu0 0
  %1716 = vmatpush1.bf16.msra.mxu0 %v1672
  %1717 = vmatprep.subr.bf16.mxu0 0
  %1718 = vmatpush2.bf16.msra.mxu0 0
  %1719 = vmatprep.subr.bf16.mxu0 0
  %1720 = vmatpush2.bf16.msra.mxu0 0
  %1721 = vmatprep.subr.bf16.mxu0 0
  %1722 = vmatpush2.bf16.msra.mxu0 0
  %1723 = vmatprep.subr.bf16.mxu0 0
  %1724 = vmatpush2.bf16.msra.mxu0 0
  %1725 = vmatprep.subr.bf16.mxu0 0
  %1726 = vmatpush2.bf16.msra.mxu0 0
  %1727 = vmatprep.subr.bf16.mxu0 0
  %1728 = vmatpush2.bf16.msra.mxu0 0
  %1729 = vmatprep.subr.bf16.mxu0 0
  %1730 = vmatpush2.bf16.msra.mxu0 0
  %1731 = vmatprep.subr.bf16.mxu0 0
  %1732 = vmatpush2.bf16.msra.mxu0 0
  %1733 = vmatprep.mubr.bf16.mxu0 0
  %1734 = vmatmul.mubr.bf16.gmra.mxu0 %v1681
  %v1735 = vpop.f32.mrf.mxu0
  %v1736 = vadd.f32 0.0, %v1735
  %v1737 = vpop.f32.mrf.mxu0
  %v1738 = vpop.f32.mrf.mxu0
  %v1739 = vadd.f32 0.0, %v1738
  %v1740 = vpop.f32.mrf.mxu0
  %1741 = vmatprep.mubr.bf16.mxu0 0
  %1742 = vmatmul.mubr.bf16.gmra.mxu0 %v1684
  %v1743 = vpop.f32.mrf.mxu0
  %v1744 = vadd.f32 0.0, %v1743
  %v1745 = vpop.f32.mrf.mxu0
  %v1746 = vpop.f32.mrf.mxu0
  %v1747 = vadd.f32 0.0, %v1746
  %v1748 = vpop.f32.mrf.mxu0
  %1749 = vmatprep.mubr.bf16.mxu0 0
  %1750 = vmatmul.mubr.bf16.gmra.mxu0 %v1687
  %v1751 = vpop.f32.mrf.mxu0
  %v1752 = vadd.f32 0.0, %v1751
  %v1753 = vpop.f32.mrf.mxu0
  %v1754 = vpop.f32.mrf.mxu0
  %v1755 = vadd.f32 0.0, %v1754
  %v1756 = vpop.f32.mrf.mxu0
  %1757 = vmatprep.mubr.bf16.mxu0 0
  %1758 = vmatmul.mubr.bf16.gmra.mxu0 %v1690
  %v1759 = vpop.f32.mrf.mxu0
  %v1760 = vadd.f32 0.0, %v1759
  %v1761 = vpop.f32.mrf.mxu0
  %v1762 = vpop.f32.mrf.mxu0
  %v1763 = vadd.f32 0.0, %v1762
  %v1764 = vpop.f32.mrf.mxu0
  %1765 = vmatprep.mubr.bf16.mxu0 0
  %1766 = vmatmul.mubr.bf16.gmra.mxu0 %v1693
  %v1767 = vpop.f32.mrf.mxu0
  %v1768 = vadd.f32 0.0, %v1767
  %v1769 = vpop.f32.mrf.mxu0
  %v1770 = vpop.f32.mrf.mxu0
  %v1771 = vadd.f32 0.0, %v1770
  %v1772 = vpop.f32.mrf.mxu0
  %1773 = vmatprep.mubr.bf16.mxu0 0
  %1774 = vmatmul.mubr.bf16.gmra.mxu0 %v1696
  %v1775 = vpop.f32.mrf.mxu0
  %v1776 = vadd.f32 0.0, %v1775
  %v1777 = vpop.f32.mrf.mxu0
  %v1778 = vpop.f32.mrf.mxu0
  %v1779 = vadd.f32 0.0, %v1778
  %v1780 = vpop.f32.mrf.mxu0
  %1781 = vmatprep.mubr.bf16.mxu0 0
  %1782 = vmatmul.mubr.bf16.gmra.mxu0 %v1699
  %v1783 = vpop.f32.mrf.mxu0
  %v1784 = vadd.f32 0.0, %v1783
  %v1785 = vpop.f32.mrf.mxu0
  %v1786 = vpop.f32.mrf.mxu0
  %v1787 = vadd.f32 0.0, %v1786
  %v1788 = vpop.f32.mrf.mxu0
  %1789 = vdwg.mxu0
  %v1790 = vadd.f32 %v1615, %v1736
  %v1791 = vadd.f32 %v1616, %v1739
  %v1792 = vadd.f32 %v1617, %v1744
  %v1793 = vadd.f32 %v1618, %v1747
  %v1794 = vadd.f32 %v1619, %v1752
  %v1795 = vadd.f32 %v1620, %v1755
  %v1796 = vadd.f32 %v1621, %v1760
  %v1797 = vadd.f32 %v1622, %v1763
  %v1798 = vadd.f32 %v1623, %v1768
  %v1799 = vadd.f32 %v1624, %v1771
  %v1800 = vadd.f32 %v1625, %v1776
  %v1801 = vadd.f32 %v1626, %v1779
  %v1802 = vadd.f32 %v1627, %v1784
  %v1803 = vadd.f32 %v1628, %v1787
  %v1804 = vadd.f32 %v1790, %v864
  %v1805 = vadd.f32 %v1791, %v864
  %v1806 = vadd.f32 %v1792, %v864
  %v1807 = vadd.f32 %v1793, %v864
  %v1808 = vadd.f32 %v1794, %v864
  %v1809 = vadd.f32 %v1795, %v864
  %v1810 = vadd.f32 %v1796, %v864
  %v1811 = vadd.f32 %v1797, %v864
  %v1812 = vadd.f32 %v1798, %v864
  %v1813 = vadd.f32 %v1799, %v864
  %v1814 = vadd.f32 %v1800, %v864
  %v1815 = vadd.f32 %v1801, %v864
  %v1816 = vadd.f32 %v1802, %v864
  %v1817 = vadd.f32 %v1803, %v864
  %v1818 = vmax.f32 %v1804, 0.0
  %v1819 = vmax.f32 %v1805, 0.0
  %v1820 = vmax.f32 %v1806, 0.0
  %v1821 = vmax.f32 %v1807, 0.0
  %v1822 = vmax.f32 %v1808, 0.0
  %v1823 = vmax.f32 %v1809, 0.0
  %v1824 = vmax.f32 %v1810, 0.0
  %v1825 = vmax.f32 %v1811, 0.0
  %v1826 = vmax.f32 %v1812, 0.0
  %v1827 = vmax.f32 %v1813, 0.0
  %v1828 = vmax.f32 %v1814, 0.0
  %v1829 = vmax.f32 %v1815, 0.0
  %v1830 = vmax.f32 %v1816, 0.0
  %v1831 = vmax.f32 %v1817, 0.0
  %v1832 = vpack.c.bf16 %v1819, %v1818
  %v1833 = vpack.c.bf16 %v1821, %v1820
  %v1834 = vpack.c.bf16 %v1823, %v1822
  %v1835 = vpack.c.bf16 %v1825, %v1824
  %v1836 = vpack.c.bf16 %v1827, %v1826
  %v1837 = vpack.c.bf16 %v1829, %v1828
  %v1838 = vpack.c.bf16 %v1831, %v1830
  %v1846 = vunpack.c.l.b16 %v1832
  %v1847 = vunpack.c.h.b16 %v1832
  %v1848 = vunpack.c.l.b16 %v1833
  %v1849 = vunpack.c.h.b16 %v1833
  %v1850 = vunpack.c.l.b16 %v1834
  %v1851 = vunpack.c.h.b16 %v1834
  %v1852 = vunpack.c.l.b16 %v1835
  %v1853 = vunpack.c.h.b16 %v1835
  %v1854 = vunpack.c.l.b16 %v1836
  %v1855 = vunpack.c.h.b16 %v1836
  %v1856 = vunpack.c.l.b16 %v1837
  %v1857 = vunpack.c.h.b16 %v1837
  %v1858 = vunpack.c.l.b16 %v1838
  %v1859 = vunpack.c.h.b16 %v1838
  %v1860 = vpack.c.b16 %v1846, %v1846
  %v1861 = vpack.c.b16 %v1847, %v1847
  %v1862 = vpack.c.b16 %v1848, %v1848
  %v1863 = vpack.c.b16 %v1849, %v1849
  %v1864 = vpack.c.b16 %v1850, %v1850
  %v1865 = vpack.c.b16 %v1851, %v1851
  %v1866 = vpack.c.b16 %v1852, %v1852
  %v1867 = vpack.c.b16 %v1853, %v1853
  %v1868 = vpack.c.b16 %v1854, %v1854
  %v1869 = vpack.c.b16 %v1855, %v1855
  %v1870 = vpack.c.b16 %v1856, %v1856
  %v1871 = vpack.c.b16 %v1857, %v1857
  %v1872 = vpack.c.b16 %v1858, %v1858
  %v1873 = vpack.c.b16 %v1859, %v1859
  %s1888 = scalar_lea.vmem %s3, 56
  %1889 = vst.msk [vmem:[%s1888] sm:$0xf] %vm950, %v1860
  %1890 = vst.msk [vmem:[%s1888 + $0x4] sm:$0xf] %vm950, %v1861
  %1891 = vst.msk [vmem:[%s1888 + $0x8] sm:$0xf] %vm950, %v1862
  %1892 = vst.msk [vmem:[%s1888 + $0xc] sm:$0xf] %vm950, %v1863
  %1893 = vst.msk [vmem:[%s1888 + $0x10] sm:$0xf] %vm950, %v1864
  %1894 = vst.msk [vmem:[%s1888 + $0x14] sm:$0xf] %vm950, %v1865
  %1895 = vst.msk [vmem:[%s1888 + $0x18] sm:$0xf] %vm950, %v1866
  %1896 = vst.msk [vmem:[%s1888 + $0x1c] sm:$0xf] %vm950, %v1867
  %1897 = vst.msk [vmem:[%s1888 + $0x20] sm:$0xf] %vm950, %v1868
  %1898 = vst.msk [vmem:[%s1888 + $0x24] sm:$0xf] %vm950, %v1869
  %1899 = vst.msk [vmem:[%s1888 + $0x28] sm:$0xf] %vm950, %v1870
  %1900 = vst.msk [vmem:[%s1888 + $0x2c] sm:$0xf] %vm950, %v1871
  %1901 = vst.msk [vmem:[%s1888 + $0x30] sm:$0xf] %vm950, %v1872
  %1902 = vst.msk [vmem:[%s1888 + $0x34] sm:$0x7] %vm964, %v1873
  // Predicated region
  $region14: #{qlearner_forward.4} parent=0 // pred_check
    _
  $region15: #{qlearner_forward.4} parent=0 // pred_check_branch
    %1904 = sbr.rel (0) target = $region17
  $region16: #{qlearner_forward.4} parent=0 // pred_region
    _
  $region17: #{qlearner_forward.4} parent=0 // pred_fallthru
    _
  // Predicated region
  $region18: #{qlearner_forward.4} parent=0 // pred_check
    _
  $region19: #{qlearner_forward.4} parent=0 // pred_check_branch
    %1906 = sbr.rel (0) target = $region21
  $region20: #{qlearner_forward.4} parent=0 // pred_region
    _
  $region21: #{qlearner_forward.4} parent=0 // pred_fallthru
    _

// kernel: qlearner_forward.5
$region0: #{qlearner_forward.5}
  #allocation0 [shape = 'u32[]', space=smem, size = 0x4, offset = 0x4, fixed_abs, tag = 'smem constant byte address 0x4 - core index']
  #allocation1 [shape = 'u32[144,128]{1,0:T(1,128)}', space=vmem, size = 0x12000, scoped, tag = 'internal scratch']
  %s0 = inlined_call_operand.vmem [shape: bf16[2,30,128], index: 0, kind: input, shape index: {}]
  %s1 = inlined_call_operand.vmem [shape: bf16[4,128,64], index: 1, kind: input, shape index: {}]
  %s2 = inlined_call_operand.vmem [shape: f32[1,64], index: 2, kind: input, shape index: {}]
  %s3 = inlined_call_operand.vmem [shape: bf16[2,20,64], index: 3, kind: output, shape index: {}]
  %s4 = sld [smem:[#allocation0]]
  $region22: #{qlearner_forward.5} parent=0
    _
  %s6 = ssub.s32 1, %s4
  %s7 = scalar_select 0, %s6, %s4
  // Predicated region
  $region2: #{qlearner_forward.5} parent=0 // pred_check
    _
  $region3: #{qlearner_forward.5} parent=0 // pred_check_branch
    %9 = sbr.rel (0) target = $region5
  $region4: #{qlearner_forward.5} parent=0 // pred_region
    _
  $region5: #{qlearner_forward.5} parent=0 // pred_fallthru
    _
  // Predicated region
  $region6: #{qlearner_forward.5} parent=0 // pred_check
    _
  $region7: #{qlearner_forward.5} parent=0 // pred_check_branch
    %11 = sbr.rel (0) target = $region9
  $region8: #{qlearner_forward.5} parent=0 // pred_region
    _
  $region9: #{qlearner_forward.5} parent=0 // pred_fallthru
    _
  // Predicated region
  $region10: #{qlearner_forward.5} parent=0 // pred_check
    _
  $region11: #{qlearner_forward.5} parent=0 // pred_check_branch
    %13 = sbr.rel (0) target = $region13
  $region12: #{qlearner_forward.5} parent=0 // pred_region
    _
  $region13: #{qlearner_forward.5} parent=0 // pred_fallthru
    _
  %v15 = vld [vmem:[%s2] sm:$0x1]
  %v16 = vld [vmem:[%s0] sm:$0xf]
  %v17 = vld [vmem:[%s0 + $0x4] sm:$0xf]
  %v18 = vld [vmem:[%s0 + $0x8] sm:$0x3]
  %v19 = vld [vmem:[%s1] sm:$0xf]
  %v20 = vld [vmem:[%s1 + $0x4] sm:$0xf]
  %v21 = vld [vmem:[%s1 + $0x8] sm:$0xf]
  %v22 = vld [vmem:[%s1 + $0xc] sm:$0xf]
  %v23 = vld [vmem:[%s1 + $0x10] sm:$0xf]
  %v24 = vld [vmem:[%s1 + $0x14] sm:$0xf]
  %v25 = vld [vmem:[%s1 + $0x18] sm:$0xf]
  %v26 = vld [vmem:[%s1 + $0x1c] sm:$0xf]
  %v27 = vld [vmem:[%s1 + $0x20] sm:$0xf]
  %v28 = vld [vmem:[%s1 + $0x24] sm:$0xf]
  %v29 = vld [vmem:[%s1 + $0x28] sm:$0xf]
  %v30 = vld [vmem:[%s1 + $0x2c] sm:$0xf]
  %v31 = vld [vmem:[%s1 + $0x30] sm:$0xf]
  %v32 = vld [vmem:[%s1 + $0x34] sm:$0xf]
  %v33 = vld [vmem:[%s1 + $0x38] sm:$0xf]
  %v34 = vld [vmem:[%s1 + $0x3c] sm:$0xf]
  %v35 = vld [vmem:[%s0 + $0x8] sm:$0x7]
  %s36 = scalar_lea.vmem %s1, 64
  %v37 = vld [vmem:[%s36] sm:$0xf]
  %v38 = vld [vmem:[%s36 + $0x4] sm:$0xf]
  %v39 = vld [vmem:[%s36 + $0x8] sm:$0xf]
  %v40 = vld [vmem:[%s36 + $0xc] sm:$0xf]
  %v41 = vld [vmem:[%s36 + $0x10] sm:$0xf]
  %v42 = vld [vmem:[%s36 + $0x14] sm:$0xf]
  %v43 = vld [vmem:[%s36 + $0x18] sm:$0xf]
  %v44 = vld [vmem:[%s36 + $0x1c] sm:$0xf]
  %v45 = vld [vmem:[%s36 + $0x20] sm:$0xf]
  %v46 = vld [vmem:[%s36 + $0x24] sm:$0xf]
  %v47 = vld [vmem:[%s36 + $0x28] sm:$0xf]
  %v48 = vld [vmem:[%s36 + $0x2c] sm:$0xf]
  %v49 = vld [vmem:[%s36 + $0x30] sm:$0xf]
  %v50 = vld [vmem:[%s36 + $0x34] sm:$0xf]
  %v51 = vld [vmem:[%s36 + $0x38] sm:$0xf]
  %v52 = vld [vmem:[%s36 + $0x3c] sm:$0xf]
  %v56 = vunpack.c.l.b16 %v16
  %v57 = vunpack.c.l.b16 %v17
  %v58 = vunpack.c.l.b16 %v35
  %v59 = vpack.c.b16 %v57, %v56
  %v60 = vpack.c.b16 %v58, %v58
  %vm61 = vsmask.f32 7424
  %v63 = vshrl.u32 %v59, 16
  %v65 = vshll.u32 %v59, 16
  %v67 = vrot.slane %v65, 1
  %v68 = vor.u32 %v63, %v67
  %v70 = vshll.u32 %v60, 16
  %v72 = vrot.slane %v70, 1
  %v73 = vsel %vm61, %v68, %v72
  %v74 = vshrl.u32 %v60, 16
  %v76 = vor.u32 %v74, %v72
  %v95 = vunpack.c.l.b16 %v37
  %v96 = vunpack.c.l.b16 %v38
  %v97 = vunpack.c.l.b16 %v39
  %v98 = vunpack.c.l.b16 %v40
  %v99 = vunpack.c.l.b16 %v41
  %v100 = vunpack.c.l.b16 %v42
  %v101 = vunpack.c.l.b16 %v43
  %v102 = vunpack.c.l.b16 %v44
  %v103 = vunpack.c.l.b16 %v45
  %v104 = vunpack.c.l.b16 %v46
  %v105 = vunpack.c.l.b16 %v47
  %v106 = vunpack.c.l.b16 %v48
  %v107 = vunpack.c.l.b16 %v49
  %v108 = vunpack.c.l.b16 %v50
  %v109 = vunpack.c.l.b16 %v51
  %v110 = vunpack.c.l.b16 %v52
  %v111 = vpack.c.b16 %v96, %v95
  %v112 = vpack.c.b16 %v98, %v97
  %v113 = vpack.c.b16 %v100, %v99
  %v114 = vpack.c.b16 %v102, %v101
  %v115 = vpack.c.b16 %v104, %v103
  %v116 = vpack.c.b16 %v106, %v105
  %v117 = vpack.c.b16 %v108, %v107
  %v118 = vpack.c.b16 %v110, %v109
  %127 = vmatprep.subr.bf16.mxu0 0
  %128 = vmatpush1.bf16.msra.mxu0 %v118
  %129 = vmatprep.subr.bf16.mxu0 0
  %130 = vmatpush1.bf16.msra.mxu0 %v117
  %131 = vmatprep.subr.bf16.mxu0 0
  %132 = vmatpush1.bf16.msra.mxu0 %v116
  %133 = vmatprep.subr.bf16.mxu0 0
  %134 = vmatpush1.bf16.msra.mxu0 %v115
  %135 = vmatprep.subr.bf16.mxu0 0
  %136 = vmatpush1.bf16.msra.mxu0 %v114
  %137 = vmatprep.subr.bf16.mxu0 0
  %138 = vmatpush1.bf16.msra.mxu0 %v113
  %139 = vmatprep.subr.bf16.mxu0 0
  %140 = vmatpush1.bf16.msra.mxu0 %v112
  %141 = vmatprep.subr.bf16.mxu0 0
  %142 = vmatpush1.bf16.msra.mxu0 %v111
  %143 = vmatprep.subr.bf16.mxu0 0
  %144 = vmatpush2.bf16.msra.mxu0 0
  %145 = vmatprep.subr.bf16.mxu0 0
  %146 = vmatpush2.bf16.msra.mxu0 0
  %147 = vmatprep.subr.bf16.mxu0 0
  %148 = vmatpush2.bf16.msra.mxu0 0
  %149 = vmatprep.subr.bf16.mxu0 0
  %150 = vmatpush2.bf16.msra.mxu0 0
  %151 = vmatprep.subr.bf16.mxu0 0
  %152 = vmatpush2.bf16.msra.mxu0 0
  %153 = vmatprep.subr.bf16.mxu0 0
  %154 = vmatpush2.bf16.msra.mxu0 0
  %155 = vmatprep.subr.bf16.mxu0 0
  %156 = vmatpush2.bf16.msra.mxu0 0
  %157 = vmatprep.subr.bf16.mxu0 0
  %158 = vmatpush2.bf16.msra.mxu0 0
  %159 = vmatprep.mubr.bf16.mxu0 0
  %160 = vmatmul.mubr.bf16.gmra.mxu0 %v73
  %v161 = vpop.f32.mrf.mxu0
  %v162 = vadd.f32 0.0, %v161
  %v163 = vpop.f32.mrf.mxu0
  %v164 = vpop.f32.mrf.mxu0
  %v165 = vadd.f32 0.0, %v164
  %v166 = vpop.f32.mrf.mxu0
  %167 = vmatprep.mubr.bf16.mxu0 0
  %168 = vmatmul.mubr.bf16.gmra.mxu0 %v76
  %v169 = vpop.f32.mrf.mxu0
  %v170 = vadd.f32 0.0, %v169
  %v171 = vpop.f32.mrf.mxu0
  %v172 = vpop.f32.mrf.mxu0
  %v173 = vpop.f32.mrf.mxu0
  %174 = vdwg.mxu0
  %v176 = vunpack.c.l.b16 %v18
  %v177 = vpack.c.b16 %v176, %v176
  %v196 = vunpack.c.l.b16 %v19
  %v197 = vunpack.c.l.b16 %v20
  %v198 = vunpack.c.l.b16 %v21
  %v199 = vunpack.c.l.b16 %v22
  %v200 = vunpack.c.l.b16 %v23
  %v201 = vunpack.c.l.b16 %v24
  %v202 = vunpack.c.l.b16 %v25
  %v203 = vunpack.c.l.b16 %v26
  %v204 = vunpack.c.l.b16 %v27
  %v205 = vunpack.c.l.b16 %v28
  %v206 = vunpack.c.l.b16 %v29
  %v207 = vunpack.c.l.b16 %v30
  %v208 = vunpack.c.l.b16 %v31
  %v209 = vunpack.c.l.b16 %v32
  %v210 = vunpack.c.l.b16 %v33
  %v211 = vunpack.c.l.b16 %v34
  %v212 = vpack.c.b16 %v197, %v196
  %v213 = vpack.c.b16 %v199, %v198
  %v214 = vpack.c.b16 %v201, %v200
  %v215 = vpack.c.b16 %v203, %v202
  %v216 = vpack.c.b16 %v205, %v204
  %v217 = vpack.c.b16 %v207, %v206
  %v218 = vpack.c.b16 %v209, %v208
  %v219 = vpack.c.b16 %v211, %v210
  %228 = vmatprep.subr.bf16.mxu0 0
  %229 = vmatpush1.bf16.msra.mxu0 %v219
  %230 = vmatprep.subr.bf16.mxu0 0
  %231 = vmatpush1.bf16.msra.mxu0 %v218
  %232 = vmatprep.subr.bf16.mxu0 0
  %233 = vmatpush1.bf16.msra.mxu0 %v217
  %234 = vmatprep.subr.bf16.mxu0 0
  %235 = vmatpush1.bf16.msra.mxu0 %v216
  %236 = vmatprep.subr.bf16.mxu0 0
  %237 = vmatpush1.bf16.msra.mxu0 %v215
  %238 = vmatprep.subr.bf16.mxu0 0
  %239 = vmatpush1.bf16.msra.mxu0 %v214
  %240 = vmatprep.subr.bf16.mxu0 0
  %241 = vmatpush1.bf16.msra.mxu0 %v213
  %242 = vmatprep.subr.bf16.mxu0 0
  %243 = vmatpush1.bf16.msra.mxu0 %v212
  %244 = vmatprep.subr.bf16.mxu0 0
  %245 = vmatpush2.bf16.msra.mxu0 0
  %246 = vmatprep.subr.bf16.mxu0 0
  %247 = vmatpush2.bf16.msra.mxu0 0
  %248 = vmatprep.subr.bf16.mxu0 0
  %249 = vmatpush2.bf16.msra.mxu0 0
  %250 = vmatprep.subr.bf16.mxu0 0
  %251 = vmatpush2.bf16.msra.mxu0 0
  %252 = vmatprep.subr.bf16.mxu0 0
  %253 = vmatpush2.bf16.msra.mxu0 0
  %254 = vmatprep.subr.bf16.mxu0 0
  %255 = vmatpush2.bf16.msra.mxu0 0
  %256 = vmatprep.subr.bf16.mxu0 0
  %257 = vmatpush2.bf16.msra.mxu0 0
  %258 = vmatprep.subr.bf16.mxu0 0
  %259 = vmatpush2.bf16.msra.mxu0 0
  %260 = vmatprep.mubr.bf16.mxu0 0
  %261 = vmatmul.mubr.bf16.gmra.mxu0 %v59
  %v262 = vpop.f32.mrf.mxu0
  %v263 = vadd.f32 %v162, %v262
  %v264 = vpop.f32.mrf.mxu0
  %v265 = vpop.f32.mrf.mxu0
  %v266 = vadd.f32 %v165, %v265
  %v267 = vpop.f32.mrf.mxu0
  %268 = vmatprep.mubr.bf16.mxu0 0
  %269 = vmatmul.mubr.bf16.gmra.mxu0 %v177
  %v270 = vpop.f32.mrf.mxu0
  %v271 = vadd.f32 %v170, %v270
  %v272 = vpop.f32.mrf.mxu0
  %v273 = vpop.f32.mrf.mxu0
  %v274 = vpop.f32.mrf.mxu0
  %275 = vdwg.mxu0
  %v276 = vld [vmem:[%s0] sm:$0xc]
  %v277 = vld [vmem:[%s0 + $0x4] sm:$0xf]
  %v278 = vld [vmem:[%s0 + $0x8] sm:$0xf]
  %v279 = vld [vmem:[%s0 + $0xc] sm:$0x1]
  %s280 = scalar_lea.vmem %s1, 128
  %v281 = vld [vmem:[%s280] sm:$0xf]
  %v282 = vld [vmem:[%s280 + $0x4] sm:$0xf]
  %v283 = vld [vmem:[%s280 + $0x8] sm:$0xf]
  %v284 = vld [vmem:[%s280 + $0xc] sm:$0xf]
  %v285 = vld [vmem:[%s280 + $0x10] sm:$0xf]
  %v286 = vld [vmem:[%s280 + $0x14] sm:$0xf]
  %v287 = vld [vmem:[%s280 + $0x18] sm:$0xf]
  %v288 = vld [vmem:[%s280 + $0x1c] sm:$0xf]
  %v289 = vld [vmem:[%s280 + $0x20] sm:$0xf]
  %v290 = vld [vmem:[%s280 + $0x24] sm:$0xf]
  %v291 = vld [vmem:[%s280 + $0x28] sm:$0xf]
  %v292 = vld [vmem:[%s280 + $0x2c] sm:$0xf]
  %v293 = vld [vmem:[%s280 + $0x30] sm:$0xf]
  %v294 = vld [vmem:[%s280 + $0x34] sm:$0xf]
  %v295 = vld [vmem:[%s280 + $0x38] sm:$0xf]
  %v296 = vld [vmem:[%s280 + $0x3c] sm:$0xf]
  %v301 = vunpack.c.l.b16 %v276
  %v302 = vunpack.c.l.b16 %v277
  %v303 = vunpack.c.l.b16 %v278
  %v304 = vunpack.c.l.b16 %v279
  %v305 = vpack.c.b16 %v302, %v301
  %v306 = vpack.c.b16 %v304, %v303
  %vm307 = vsmask.f32 5376
  %v309 = vshrl.u32 %v305, 16
  %v311 = vrot.slane %v309, 2
  %v312 = vshll.u32 %v305, 16
  %v314 = vrot.slane %v312, 3
  %v315 = vor.u32 %v311, %v314
  %v317 = vshrl.u32 %v306, 16
  %v319 = vrot.slane %v317, 2
  %v320 = vshll.u32 %v306, 16
  %v322 = vrot.slane %v320, 3
  %v323 = vor.u32 %v319, %v322
  %v324 = vsel %vm307, %v315, %v323
  %v343 = vunpack.c.l.b16 %v281
  %v344 = vunpack.c.l.b16 %v282
  %v345 = vunpack.c.l.b16 %v283
  %v346 = vunpack.c.l.b16 %v284
  %v347 = vunpack.c.l.b16 %v285
  %v348 = vunpack.c.l.b16 %v286
  %v349 = vunpack.c.l.b16 %v287
  %v350 = vunpack.c.l.b16 %v288
  %v351 = vunpack.c.l.b16 %v289
  %v352 = vunpack.c.l.b16 %v290
  %v353 = vunpack.c.l.b16 %v291
  %v354 = vunpack.c.l.b16 %v292
  %v355 = vunpack.c.l.b16 %v293
  %v356 = vunpack.c.l.b16 %v294
  %v357 = vunpack.c.l.b16 %v295
  %v358 = vunpack.c.l.b16 %v296
  %v359 = vpack.c.b16 %v344, %v343
  %v360 = vpack.c.b16 %v346, %v345
  %v361 = vpack.c.b16 %v348, %v347
  %v362 = vpack.c.b16 %v350, %v349
  %v363 = vpack.c.b16 %v352, %v351
  %v364 = vpack.c.b16 %v354, %v353
  %v365 = vpack.c.b16 %v356, %v355
  %v366 = vpack.c.b16 %v358, %v357
  %375 = vmatprep.subr.bf16.mxu0 0
  %376 = vmatpush1.bf16.msra.mxu0 %v366
  %377 = vmatprep.subr.bf16.mxu0 0
  %378 = vmatpush1.bf16.msra.mxu0 %v365
  %379 = vmatprep.subr.bf16.mxu0 0
  %380 = vmatpush1.bf16.msra.mxu0 %v364
  %381 = vmatprep.subr.bf16.mxu0 0
  %382 = vmatpush1.bf16.msra.mxu0 %v363
  %383 = vmatprep.subr.bf16.mxu0 0
  %384 = vmatpush1.bf16.msra.mxu0 %v362
  %385 = vmatprep.subr.bf16.mxu0 0
  %386 = vmatpush1.bf16.msra.mxu0 %v361
  %387 = vmatprep.subr.bf16.mxu0 0
  %388 = vmatpush1.bf16.msra.mxu0 %v360
  %389 = vmatprep.subr.bf16.mxu0 0
  %390 = vmatpush1.bf16.msra.mxu0 %v359
  %391 = vmatprep.subr.bf16.mxu0 0
  %392 = vmatpush2.bf16.msra.mxu0 0
  %393 = vmatprep.subr.bf16.mxu0 0
  %394 = vmatpush2.bf16.msra.mxu0 0
  %395 = vmatprep.subr.bf16.mxu0 0
  %396 = vmatpush2.bf16.msra.mxu0 0
  %397 = vmatprep.subr.bf16.mxu0 0
  %398 = vmatpush2.bf16.msra.mxu0 0
  %399 = vmatprep.subr.bf16.mxu0 0
  %400 = vmatpush2.bf16.msra.mxu0 0
  %401 = vmatprep.subr.bf16.mxu0 0
  %402 = vmatpush2.bf16.msra.mxu0 0
  %403 = vmatprep.subr.bf16.mxu0 0
  %404 = vmatpush2.bf16.msra.mxu0 0
  %405 = vmatprep.subr.bf16.mxu0 0
  %406 = vmatpush2.bf16.msra.mxu0 0
  %407 = vmatprep.mubr.bf16.mxu0 0
  %408 = vmatmul.mubr.bf16.gmra.mxu0 %v324
  %v409 = vpop.f32.mrf.mxu0
  %v410 = vadd.f32 0.0, %v409
  %v411 = vpop.f32.mrf.mxu0
  %v412 = vpop.f32.mrf.mxu0
  %v413 = vadd.f32 0.0, %v412
  %v414 = vpop.f32.mrf.mxu0
  %415 = vmatprep.mubr.bf16.mxu0 0
  %416 = vmatmul.mubr.bf16.gmra.mxu0 %v323
  %v417 = vpop.f32.mrf.mxu0
  %v418 = vadd.f32 0.0, %v417
  %v419 = vpop.f32.mrf.mxu0
  %v420 = vpop.f32.mrf.mxu0
  %v421 = vpop.f32.mrf.mxu0
  %422 = vdwg.mxu0
  %v423 = vadd.f32 %v263, %v410
  %v424 = vadd.f32 %v266, %v413
  %v425 = vadd.f32 %v271, %v418
  %v426 = vld [vmem:[%s0] sm:$0x8]
  %s427 = scalar_lea.vmem %s1, 192
  %v428 = vld [vmem:[%s427] sm:$0xf]
  %v429 = vld [vmem:[%s427 + $0x4] sm:$0xf]
  %v430 = vld [vmem:[%s427 + $0x8] sm:$0xf]
  %v431 = vld [vmem:[%s427 + $0xc] sm:$0xf]
  %v432 = vld [vmem:[%s427 + $0x10] sm:$0xf]
  %v433 = vld [vmem:[%s427 + $0x14] sm:$0xf]
  %v434 = vld [vmem:[%s427 + $0x18] sm:$0xf]
  %v435 = vld [vmem:[%s427 + $0x1c] sm:$0xf]
  %v436 = vld [vmem:[%s427 + $0x20] sm:$0xf]
  %v437 = vld [vmem:[%s427 + $0x24] sm:$0xf]
  %v438 = vld [vmem:[%s427 + $0x28] sm:$0xf]
  %v439 = vld [vmem:[%s427 + $0x2c] sm:$0xf]
  %v440 = vld [vmem:[%s427 + $0x30] sm:$0xf]
  %v441 = vld [vmem:[%s427 + $0x34] sm:$0xf]
  %v442 = vld [vmem:[%s427 + $0x38] sm:$0xf]
  %v443 = vld [vmem:[%s427 + $0x3c] sm:$0xf]
  %v445 = vunpack.c.l.b16 %v426
  %v446 = vpack.c.b16 %v302, %v445
  %vm447 = vcmask 1044480
  %v448 = vrot.slane %v446, 3
  %v449 = vrot.slane %v306, 3
  %v450 = vsel %vm447, %v448, %v449
  %v469 = vunpack.c.l.b16 %v428
  %v470 = vunpack.c.l.b16 %v429
  %v471 = vunpack.c.l.b16 %v430
  %v472 = vunpack.c.l.b16 %v431
  %v473 = vunpack.c.l.b16 %v432
  %v474 = vunpack.c.l.b16 %v433
  %v475 = vunpack.c.l.b16 %v434
  %v476 = vunpack.c.l.b16 %v435
  %v477 = vunpack.c.l.b16 %v436
  %v478 = vunpack.c.l.b16 %v437
  %v479 = vunpack.c.l.b16 %v438
  %v480 = vunpack.c.l.b16 %v439
  %v481 = vunpack.c.l.b16 %v440
  %v482 = vunpack.c.l.b16 %v441
  %v483 = vunpack.c.l.b16 %v442
  %v484 = vunpack.c.l.b16 %v443
  %v485 = vpack.c.b16 %v470, %v469
  %v486 = vpack.c.b16 %v472, %v471
  %v487 = vpack.c.b16 %v474, %v473
  %v488 = vpack.c.b16 %v476, %v475
  %v489 = vpack.c.b16 %v478, %v477
  %v490 = vpack.c.b16 %v480, %v479
  %v491 = vpack.c.b16 %v482, %v481
  %v492 = vpack.c.b16 %v484, %v483
  %501 = vmatprep.subr.bf16.mxu0 0
  %502 = vmatpush1.bf16.msra.mxu0 %v492
  %503 = vmatprep.subr.bf16.mxu0 0
  %504 = vmatpush1.bf16.msra.mxu0 %v491
  %505 = vmatprep.subr.bf16.mxu0 0
  %506 = vmatpush1.bf16.msra.mxu0 %v490
  %507 = vmatprep.subr.bf16.mxu0 0
  %508 = vmatpush1.bf16.msra.mxu0 %v489
  %509 = vmatprep.subr.bf16.mxu0 0
  %510 = vmatpush1.bf16.msra.mxu0 %v488
  %511 = vmatprep.subr.bf16.mxu0 0
  %512 = vmatpush1.bf16.msra.mxu0 %v487
  %513 = vmatprep.subr.bf16.mxu0 0
  %514 = vmatpush1.bf16.msra.mxu0 %v486
  %515 = vmatprep.subr.bf16.mxu0 0
  %516 = vmatpush1.bf16.msra.mxu0 %v485
  %517 = vmatprep.subr.bf16.mxu0 0
  %518 = vmatpush2.bf16.msra.mxu0 0
  %519 = vmatprep.subr.bf16.mxu0 0
  %520 = vmatpush2.bf16.msra.mxu0 0
  %521 = vmatprep.subr.bf16.mxu0 0
  %522 = vmatpush2.bf16.msra.mxu0 0
  %523 = vmatprep.subr.bf16.mxu0 0
  %524 = vmatpush2.bf16.msra.mxu0 0
  %525 = vmatprep.subr.bf16.mxu0 0
  %526 = vmatpush2.bf16.msra.mxu0 0
  %527 = vmatprep.subr.bf16.mxu0 0
  %528 = vmatpush2.bf16.msra.mxu0 0
  %529 = vmatprep.subr.bf16.mxu0 0
  %530 = vmatpush2.bf16.msra.mxu0 0
  %531 = vmatprep.subr.bf16.mxu0 0
  %532 = vmatpush2.bf16.msra.mxu0 0
  %533 = vmatprep.mubr.bf16.mxu0 0
  %534 = vmatmul.mubr.bf16.gmra.mxu0 %v450
  %v535 = vpop.f32.mrf.mxu0
  %v536 = vadd.f32 0.0, %v535
  %v537 = vpop.f32.mrf.mxu0
  %v538 = vpop.f32.mrf.mxu0
  %v539 = vadd.f32 0.0, %v538
  %v540 = vpop.f32.mrf.mxu0
  %541 = vmatprep.mubr.bf16.mxu0 0
  %542 = vmatmul.mubr.bf16.gmra.mxu0 %v449
  %v543 = vpop.f32.mrf.mxu0
  %v544 = vadd.f32 0.0, %v543
  %v545 = vpop.f32.mrf.mxu0
  %v546 = vpop.f32.mrf.mxu0
  %v547 = vpop.f32.mrf.mxu0
  %548 = vdwg.mxu0
  %v549 = vadd.f32 %v423, %v536
  %v550 = vadd.f32 %v424, %v539
  %v551 = vadd.f32 %v425, %v544
  %v553 = vlaneseq
  %v554 = vshrl.u32 %v553, 7
  %v555 = vsub.s32 0, %v554
  %v556 = vrot.slane %v15, %v555
  %v558 = vadd.f32 %v549, %v556
  %v559 = vadd.f32 %v550, %v556
  %v560 = vadd.f32 %v551, %v556
  %v561 = vmax.f32 %v558, 0.0
  %v562 = vmax.f32 %v559, 0.0
  %v563 = vmax.f32 %v560, 0.0
  %v564 = vpack.c.bf16 %v562, %v561
  %v565 = vpack.c.bf16 %v563, %v563
  %v568 = vunpack.c.l.b16 %v564
  %v569 = vunpack.c.h.b16 %v564
  %v570 = vunpack.c.l.b16 %v565
  %v571 = vpack.c.b16 %v568, %v568
  %v572 = vpack.c.b16 %v569, %v569
  %v573 = vpack.c.b16 %v570, %v570
  %vm577 = vcmask 519168
  %578 = vst.msk [vmem:[%s3] sm:$0xf] %vm577, %v571
  %579 = vst.msk [vmem:[%s3 + $0x4] sm:$0xf] %vm577, %v572
  %vm580 = vcmask 517120
  %581 = vst.msk [vmem:[%s3 + $0x8] sm:$0x3] %vm580, %v573
  %s582 = scalar_lea.vmem %s0, 16
  %v583 = vld [vmem:[%s582] sm:$0xf]
  %v584 = vld [vmem:[%s582 + $0x4] sm:$0xf]
  %v585 = vld [vmem:[%s582 + $0x8] sm:$0x3]
  %v586 = vld [vmem:[%s1] sm:$0xf]
  %v587 = vld [vmem:[%s1 + $0x4] sm:$0xf]
  %v588 = vld [vmem:[%s1 + $0x8] sm:$0xf]
  %v589 = vld [vmem:[%s1 + $0xc] sm:$0xf]
  %v590 = vld [vmem:[%s1 + $0x10] sm:$0xf]
  %v591 = vld [vmem:[%s1 + $0x14] sm:$0xf]
  %v592 = vld [vmem:[%s1 + $0x18] sm:$0xf]
  %v593 = vld [vmem:[%s1 + $0x1c] sm:$0xf]
  %v594 = vld [vmem:[%s1 + $0x20] sm:$0xf]
  %v595 = vld [vmem:[%s1 + $0x24] sm:$0xf]
  %v596 = vld [vmem:[%s1 + $0x28] sm:$0xf]
  %v597 = vld [vmem:[%s1 + $0x2c] sm:$0xf]
  %v598 = vld [vmem:[%s1 + $0x30] sm:$0xf]
  %v599 = vld [vmem:[%s1 + $0x34] sm:$0xf]
  %v600 = vld [vmem:[%s1 + $0x38] sm:$0xf]
  %v601 = vld [vmem:[%s1 + $0x3c] sm:$0xf]
  %v602 = vld [vmem:[%s582 + $0x8] sm:$0x7]
  %v603 = vld [vmem:[%s36] sm:$0xf]
  %v604 = vld [vmem:[%s36 + $0x4] sm:$0xf]
  %v605 = vld [vmem:[%s36 + $0x8] sm:$0xf]
  %v606 = vld [vmem:[%s36 + $0xc] sm:$0xf]
  %v607 = vld [vmem:[%s36 + $0x10] sm:$0xf]
  %v608 = vld [vmem:[%s36 + $0x14] sm:$0xf]
  %v609 = vld [vmem:[%s36 + $0x18] sm:$0xf]
  %v610 = vld [vmem:[%s36 + $0x1c] sm:$0xf]
  %v611 = vld [vmem:[%s36 + $0x20] sm:$0xf]
  %v612 = vld [vmem:[%s36 + $0x24] sm:$0xf]
  %v613 = vld [vmem:[%s36 + $0x28] sm:$0xf]
  %v614 = vld [vmem:[%s36 + $0x2c] sm:$0xf]
  %v615 = vld [vmem:[%s36 + $0x30] sm:$0xf]
  %v616 = vld [vmem:[%s36 + $0x34] sm:$0xf]
  %v617 = vld [vmem:[%s36 + $0x38] sm:$0xf]
  %v618 = vld [vmem:[%s36 + $0x3c] sm:$0xf]
  %v622 = vunpack.c.l.b16 %v583
  %v623 = vunpack.c.l.b16 %v584
  %v624 = vunpack.c.l.b16 %v602
  %v625 = vpack.c.b16 %v623, %v622
  %v626 = vpack.c.b16 %v624, %v624
  %v628 = vshrl.u32 %v625, 16
  %v630 = vshll.u32 %v625, 16
  %v632 = vrot.slane %v630, 1
  %v633 = vor.u32 %v628, %v632
  %v635 = vshll.u32 %v626, 16
  %v637 = vrot.slane %v635, 1
  %v638 = vsel %vm61, %v633, %v637
  %v639 = vshrl.u32 %v626, 16
  %v641 = vor.u32 %v639, %v637
  %v660 = vunpack.c.l.b16 %v603
  %v661 = vunpack.c.l.b16 %v604
  %v662 = vunpack.c.l.b16 %v605
  %v663 = vunpack.c.l.b16 %v606
  %v664 = vunpack.c.l.b16 %v607
  %v665 = vunpack.c.l.b16 %v608
  %v666 = vunpack.c.l.b16 %v609
  %v667 = vunpack.c.l.b16 %v610
  %v668 = vunpack.c.l.b16 %v611
  %v669 = vunpack.c.l.b16 %v612
  %v670 = vunpack.c.l.b16 %v613
  %v671 = vunpack.c.l.b16 %v614
  %v672 = vunpack.c.l.b16 %v615
  %v673 = vunpack.c.l.b16 %v616
  %v674 = vunpack.c.l.b16 %v617
  %v675 = vunpack.c.l.b16 %v618
  %v676 = vpack.c.b16 %v661, %v660
  %v677 = vpack.c.b16 %v663, %v662
  %v678 = vpack.c.b16 %v665, %v664
  %v679 = vpack.c.b16 %v667, %v666
  %v680 = vpack.c.b16 %v669, %v668
  %v681 = vpack.c.b16 %v671, %v670
  %v682 = vpack.c.b16 %v673, %v672
  %v683 = vpack.c.b16 %v675, %v674
  %692 = vmatprep.subr.bf16.mxu0 0
  %693 = vmatpush1.bf16.msra.mxu0 %v683
  %694 = vmatprep.subr.bf16.mxu0 0
  %695 = vmatpush1.bf16.msra.mxu0 %v682
  %696 = vmatprep.subr.bf16.mxu0 0
  %697 = vmatpush1.bf16.msra.mxu0 %v681
  %698 = vmatprep.subr.bf16.mxu0 0
  %699 = vmatpush1.bf16.msra.mxu0 %v680
  %700 = vmatprep.subr.bf16.mxu0 0
  %701 = vmatpush1.bf16.msra.mxu0 %v679
  %702 = vmatprep.subr.bf16.mxu0 0
  %703 = vmatpush1.bf16.msra.mxu0 %v678
  %704 = vmatprep.subr.bf16.mxu0 0
  %705 = vmatpush1.bf16.msra.mxu0 %v677
  %706 = vmatprep.subr.bf16.mxu0 0
  %707 = vmatpush1.bf16.msra.mxu0 %v676
  %708 = vmatprep.subr.bf16.mxu0 0
  %709 = vmatpush2.bf16.msra.mxu0 0
  %710 = vmatprep.subr.bf16.mxu0 0
  %711 = vmatpush2.bf16.msra.mxu0 0
  %712 = vmatprep.subr.bf16.mxu0 0
  %713 = vmatpush2.bf16.msra.mxu0 0
  %714 = vmatprep.subr.bf16.mxu0 0
  %715 = vmatpush2.bf16.msra.mxu0 0
  %716 = vmatprep.subr.bf16.mxu0 0
  %717 = vmatpush2.bf16.msra.mxu0 0
  %718 = vmatprep.subr.bf16.mxu0 0
  %719 = vmatpush2.bf16.msra.mxu0 0
  %720 = vmatprep.subr.bf16.mxu0 0
  %721 = vmatpush2.bf16.msra.mxu0 0
  %722 = vmatprep.subr.bf16.mxu0 0
  %723 = vmatpush2.bf16.msra.mxu0 0
  %724 = vmatprep.mubr.bf16.mxu0 0
  %725 = vmatmul.mubr.bf16.gmra.mxu0 %v638
  %v726 = vpop.f32.mrf.mxu0
  %v727 = vadd.f32 0.0, %v726
  %v728 = vpop.f32.mrf.mxu0
  %v729 = vpop.f32.mrf.mxu0
  %v730 = vadd.f32 0.0, %v729
  %v731 = vpop.f32.mrf.mxu0
  %732 = vmatprep.mubr.bf16.mxu0 0
  %733 = vmatmul.mubr.bf16.gmra.mxu0 %v641
  %v734 = vpop.f32.mrf.mxu0
  %v735 = vadd.f32 0.0, %v734
  %v736 = vpop.f32.mrf.mxu0
  %v737 = vpop.f32.mrf.mxu0
  %v738 = vpop.f32.mrf.mxu0
  %739 = vdwg.mxu0
  %v741 = vunpack.c.l.b16 %v585
  %v742 = vpack.c.b16 %v741, %v741
  %v761 = vunpack.c.l.b16 %v586
  %v762 = vunpack.c.l.b16 %v587
  %v763 = vunpack.c.l.b16 %v588
  %v764 = vunpack.c.l.b16 %v589
  %v765 = vunpack.c.l.b16 %v590
  %v766 = vunpack.c.l.b16 %v591
  %v767 = vunpack.c.l.b16 %v592
  %v768 = vunpack.c.l.b16 %v593
  %v769 = vunpack.c.l.b16 %v594
  %v770 = vunpack.c.l.b16 %v595
  %v771 = vunpack.c.l.b16 %v596
  %v772 = vunpack.c.l.b16 %v597
  %v773 = vunpack.c.l.b16 %v598
  %v774 = vunpack.c.l.b16 %v599
  %v775 = vunpack.c.l.b16 %v600
  %v776 = vunpack.c.l.b16 %v601
  %v777 = vpack.c.b16 %v762, %v761
  %v778 = vpack.c.b16 %v764, %v763
  %v779 = vpack.c.b16 %v766, %v765
  %v780 = vpack.c.b16 %v768, %v767
  %v781 = vpack.c.b16 %v770, %v769
  %v782 = vpack.c.b16 %v772, %v771
  %v783 = vpack.c.b16 %v774, %v773
  %v784 = vpack.c.b16 %v776, %v775
  %793 = vmatprep.subr.bf16.mxu0 0
  %794 = vmatpush1.bf16.msra.mxu0 %v784
  %795 = vmatprep.subr.bf16.mxu0 0
  %796 = vmatpush1.bf16.msra.mxu0 %v783
  %797 = vmatprep.subr.bf16.mxu0 0
  %798 = vmatpush1.bf16.msra.mxu0 %v782
  %799 = vmatprep.subr.bf16.mxu0 0
  %800 = vmatpush1.bf16.msra.mxu0 %v781
  %801 = vmatprep.subr.bf16.mxu0 0
  %802 = vmatpush1.bf16.msra.mxu0 %v780
  %803 = vmatprep.subr.bf16.mxu0 0
  %804 = vmatpush1.bf16.msra.mxu0 %v779
  %805 = vmatprep.subr.bf16.mxu0 0
  %806 = vmatpush1.bf16.msra.mxu0 %v778
  %807 = vmatprep.subr.bf16.mxu0 0
  %808 = vmatpush1.bf16.msra.mxu0 %v777
  %809 = vmatprep.subr.bf16.mxu0 0
  %810 = vmatpush2.bf16.msra.mxu0 0
  %811 = vmatprep.subr.bf16.mxu0 0
  %812 = vmatpush2.bf16.msra.mxu0 0
  %813 = vmatprep.subr.bf16.mxu0 0
  %814 = vmatpush2.bf16.msra.mxu0 0
  %815 = vmatprep.subr.bf16.mxu0 0
  %816 = vmatpush2.bf16.msra.mxu0 0
  %817 = vmatprep.subr.bf16.mxu0 0
  %818 = vmatpush2.bf16.msra.mxu0 0
  %819 = vmatprep.subr.bf16.mxu0 0
  %820 = vmatpush2.bf16.msra.mxu0 0
  %821 = vmatprep.subr.bf16.mxu0 0
  %822 = vmatpush2.bf16.msra.mxu0 0
  %823 = vmatprep.subr.bf16.mxu0 0
  %824 = vmatpush2.bf16.msra.mxu0 0
  %825 = vmatprep.mubr.bf16.mxu0 0
  %826 = vmatmul.mubr.bf16.gmra.mxu0 %v625
  %v827 = vpop.f32.mrf.mxu0
  %v828 = vadd.f32 %v727, %v827
  %v829 = vpop.f32.mrf.mxu0
  %v830 = vpop.f32.mrf.mxu0
  %v831 = vadd.f32 %v730, %v830
  %v832 = vpop.f32.mrf.mxu0
  %833 = vmatprep.mubr.bf16.mxu0 0
  %834 = vmatmul.mubr.bf16.gmra.mxu0 %v742
  %v835 = vpop.f32.mrf.mxu0
  %v836 = vadd.f32 %v735, %v835
  %v837 = vpop.f32.mrf.mxu0
  %v838 = vpop.f32.mrf.mxu0
  %v839 = vpop.f32.mrf.mxu0
  %840 = vdwg.mxu0
  %v841 = vld [vmem:[%s582] sm:$0xc]
  %v842 = vld [vmem:[%s582 + $0x4] sm:$0xf]
  %v843 = vld [vmem:[%s582 + $0x8] sm:$0xf]
  %v844 = vld [vmem:[%s582 + $0xc] sm:$0x1]
  %v845 = vld [vmem:[%s280] sm:$0xf]
  %v846 = vld [vmem:[%s280 + $0x4] sm:$0xf]
  %v847 = vld [vmem:[%s280 + $0x8] sm:$0xf]
  %v848 = vld [vmem:[%s280 + $0xc] sm:$0xf]
  %v849 = vld [vmem:[%s280 + $0x10] sm:$0xf]
  %v850 = vld [vmem:[%s280 + $0x14] sm:$0xf]
  %v851 = vld [vmem:[%s280 + $0x18] sm:$0xf]
  %v852 = vld [vmem:[%s280 + $0x1c] sm:$0xf]
  %v853 = vld [vmem:[%s280 + $0x20] sm:$0xf]
  %v854 = vld [vmem:[%s280 + $0x24] sm:$0xf]
  %v855 = vld [vmem:[%s280 + $0x28] sm:$0xf]
  %v856 = vld [vmem:[%s280 + $0x2c] sm:$0xf]
  %v857 = vld [vmem:[%s280 + $0x30] sm:$0xf]
  %v858 = vld [vmem:[%s280 + $0x34] sm:$0xf]
  %v859 = vld [vmem:[%s280 + $0x38] sm:$0xf]
  %v860 = vld [vmem:[%s280 + $0x3c] sm:$0xf]
  %v865 = vunpack.c.l.b16 %v841
  %v866 = vunpack.c.l.b16 %v842
  %v867 = vunpack.c.l.b16 %v843
  %v868 = vunpack.c.l.b16 %v844
  %v869 = vpack.c.b16 %v866, %v865
  %v870 = vpack.c.b16 %v868, %v867
  %v872 = vshrl.u32 %v869, 16
  %v874 = vrot.slane %v872, 2
  %v875 = vshll.u32 %v869, 16
  %v877 = vrot.slane %v875, 3
  %v878 = vor.u32 %v874, %v877
  %v880 = vshrl.u32 %v870, 16
  %v882 = vrot.slane %v880, 2
  %v883 = vshll.u32 %v870, 16
  %v885 = vrot.slane %v883, 3
  %v886 = vor.u32 %v882, %v885
  %v887 = vsel %vm307, %v878, %v886
  %v906 = vunpack.c.l.b16 %v845
  %v907 = vunpack.c.l.b16 %v846
  %v908 = vunpack.c.l.b16 %v847
  %v909 = vunpack.c.l.b16 %v848
  %v910 = vunpack.c.l.b16 %v849
  %v911 = vunpack.c.l.b16 %v850
  %v912 = vunpack.c.l.b16 %v851
  %v913 = vunpack.c.l.b16 %v852
  %v914 = vunpack.c.l.b16 %v853
  %v915 = vunpack.c.l.b16 %v854
  %v916 = vunpack.c.l.b16 %v855
  %v917 = vunpack.c.l.b16 %v856
  %v918 = vunpack.c.l.b16 %v857
  %v919 = vunpack.c.l.b16 %v858
  %v920 = vunpack.c.l.b16 %v859
  %v921 = vunpack.c.l.b16 %v860
  %v922 = vpack.c.b16 %v907, %v906
  %v923 = vpack.c.b16 %v909, %v908
  %v924 = vpack.c.b16 %v911, %v910
  %v925 = vpack.c.b16 %v913, %v912
  %v926 = vpack.c.b16 %v915, %v914
  %v927 = vpack.c.b16 %v917, %v916
  %v928 = vpack.c.b16 %v919, %v918
  %v929 = vpack.c.b16 %v921, %v920
  %938 = vmatprep.subr.bf16.mxu0 0
  %939 = vmatpush1.bf16.msra.mxu0 %v929
  %940 = vmatprep.subr.bf16.mxu0 0
  %941 = vmatpush1.bf16.msra.mxu0 %v928
  %942 = vmatprep.subr.bf16.mxu0 0
  %943 = vmatpush1.bf16.msra.mxu0 %v927
  %944 = vmatprep.subr.bf16.mxu0 0
  %945 = vmatpush1.bf16.msra.mxu0 %v926
  %946 = vmatprep.subr.bf16.mxu0 0
  %947 = vmatpush1.bf16.msra.mxu0 %v925
  %948 = vmatprep.subr.bf16.mxu0 0
  %949 = vmatpush1.bf16.msra.mxu0 %v924
  %950 = vmatprep.subr.bf16.mxu0 0
  %951 = vmatpush1.bf16.msra.mxu0 %v923
  %952 = vmatprep.subr.bf16.mxu0 0
  %953 = vmatpush1.bf16.msra.mxu0 %v922
  %954 = vmatprep.subr.bf16.mxu0 0
  %955 = vmatpush2.bf16.msra.mxu0 0
  %956 = vmatprep.subr.bf16.mxu0 0
  %957 = vmatpush2.bf16.msra.mxu0 0
  %958 = vmatprep.subr.bf16.mxu0 0
  %959 = vmatpush2.bf16.msra.mxu0 0
  %960 = vmatprep.subr.bf16.mxu0 0
  %961 = vmatpush2.bf16.msra.mxu0 0
  %962 = vmatprep.subr.bf16.mxu0 0
  %963 = vmatpush2.bf16.msra.mxu0 0
  %964 = vmatprep.subr.bf16.mxu0 0
  %965 = vmatpush2.bf16.msra.mxu0 0
  %966 = vmatprep.subr.bf16.mxu0 0
  %967 = vmatpush2.bf16.msra.mxu0 0
  %968 = vmatprep.subr.bf16.mxu0 0
  %969 = vmatpush2.bf16.msra.mxu0 0
  %970 = vmatprep.mubr.bf16.mxu0 0
  %971 = vmatmul.mubr.bf16.gmra.mxu0 %v887
  %v972 = vpop.f32.mrf.mxu0
  %v973 = vadd.f32 0.0, %v972
  %v974 = vpop.f32.mrf.mxu0
  %v975 = vpop.f32.mrf.mxu0
  %v976 = vadd.f32 0.0, %v975
  %v977 = vpop.f32.mrf.mxu0
  %978 = vmatprep.mubr.bf16.mxu0 0
  %979 = vmatmul.mubr.bf16.gmra.mxu0 %v886
  %v980 = vpop.f32.mrf.mxu0
  %v981 = vadd.f32 0.0, %v980
  %v982 = vpop.f32.mrf.mxu0
  %v983 = vpop.f32.mrf.mxu0
  %v984 = vpop.f32.mrf.mxu0
  %985 = vdwg.mxu0
  %v986 = vadd.f32 %v828, %v973
  %v987 = vadd.f32 %v831, %v976
  %v988 = vadd.f32 %v836, %v981
  %v989 = vld [vmem:[%s582] sm:$0x8]
  %v990 = vld [vmem:[%s427] sm:$0xf]
  %v991 = vld [vmem:[%s427 + $0x4] sm:$0xf]
  %v992 = vld [vmem:[%s427 + $0x8] sm:$0xf]
  %v993 = vld [vmem:[%s427 + $0xc] sm:$0xf]
  %v994 = vld [vmem:[%s427 + $0x10] sm:$0xf]
  %v995 = vld [vmem:[%s427 + $0x14] sm:$0xf]
  %v996 = vld [vmem:[%s427 + $0x18] sm:$0xf]
  %v997 = vld [vmem:[%s427 + $0x1c] sm:$0xf]
  %v998 = vld [vmem:[%s427 + $0x20] sm:$0xf]
  %v999 = vld [vmem:[%s427 + $0x24] sm:$0xf]
  %v1000 = vld [vmem:[%s427 + $0x28] sm:$0xf]
  %v1001 = vld [vmem:[%s427 + $0x2c] sm:$0xf]
  %v1002 = vld [vmem:[%s427 + $0x30] sm:$0xf]
  %v1003 = vld [vmem:[%s427 + $0x34] sm:$0xf]
  %v1004 = vld [vmem:[%s427 + $0x38] sm:$0xf]
  %v1005 = vld [vmem:[%s427 + $0x3c] sm:$0xf]
  %v1007 = vunpack.c.l.b16 %v989
  %v1008 = vpack.c.b16 %v866, %v1007
  %v1009 = vrot.slane %v1008, 3
  %v1010 = vrot.slane %v870, 3
  %v1011 = vsel %vm447, %v1009, %v1010
  %v1030 = vunpack.c.l.b16 %v990
  %v1031 = vunpack.c.l.b16 %v991
  %v1032 = vunpack.c.l.b16 %v992
  %v1033 = vunpack.c.l.b16 %v993
  %v1034 = vunpack.c.l.b16 %v994
  %v1035 = vunpack.c.l.b16 %v995
  %v1036 = vunpack.c.l.b16 %v996
  %v1037 = vunpack.c.l.b16 %v997
  %v1038 = vunpack.c.l.b16 %v998
  %v1039 = vunpack.c.l.b16 %v999
  %v1040 = vunpack.c.l.b16 %v1000
  %v1041 = vunpack.c.l.b16 %v1001
  %v1042 = vunpack.c.l.b16 %v1002
  %v1043 = vunpack.c.l.b16 %v1003
  %v1044 = vunpack.c.l.b16 %v1004
  %v1045 = vunpack.c.l.b16 %v1005
  %v1046 = vpack.c.b16 %v1031, %v1030
  %v1047 = vpack.c.b16 %v1033, %v1032
  %v1048 = vpack.c.b16 %v1035, %v1034
  %v1049 = vpack.c.b16 %v1037, %v1036
  %v1050 = vpack.c.b16 %v1039, %v1038
  %v1051 = vpack.c.b16 %v1041, %v1040
  %v1052 = vpack.c.b16 %v1043, %v1042
  %v1053 = vpack.c.b16 %v1045, %v1044
  %1062 = vmatprep.subr.bf16.mxu0 0
  %1063 = vmatpush1.bf16.msra.mxu0 %v1053
  %1064 = vmatprep.subr.bf16.mxu0 0
  %1065 = vmatpush1.bf16.msra.mxu0 %v1052
  %1066 = vmatprep.subr.bf16.mxu0 0
  %1067 = vmatpush1.bf16.msra.mxu0 %v1051
  %1068 = vmatprep.subr.bf16.mxu0 0
  %1069 = vmatpush1.bf16.msra.mxu0 %v1050
  %1070 = vmatprep.subr.bf16.mxu0 0
  %1071 = vmatpush1.bf16.msra.mxu0 %v1049
  %1072 = vmatprep.subr.bf16.mxu0 0
  %1073 = vmatpush1.bf16.msra.mxu0 %v1048
  %1074 = vmatprep.subr.bf16.mxu0 0
  %1075 = vmatpush1.bf16.msra.mxu0 %v1047
  %1076 = vmatprep.subr.bf16.mxu0 0
  %1077 = vmatpush1.bf16.msra.mxu0 %v1046
  %1078 = vmatprep.subr.bf16.mxu0 0
  %1079 = vmatpush2.bf16.msra.mxu0 0
  %1080 = vmatprep.subr.bf16.mxu0 0
  %1081 = vmatpush2.bf16.msra.mxu0 0
  %1082 = vmatprep.subr.bf16.mxu0 0
  %1083 = vmatpush2.bf16.msra.mxu0 0
  %1084 = vmatprep.subr.bf16.mxu0 0
  %1085 = vmatpush2.bf16.msra.mxu0 0
  %1086 = vmatprep.subr.bf16.mxu0 0
  %1087 = vmatpush2.bf16.msra.mxu0 0
  %1088 = vmatprep.subr.bf16.mxu0 0
  %1089 = vmatpush2.bf16.msra.mxu0 0
  %1090 = vmatprep.subr.bf16.mxu0 0
  %1091 = vmatpush2.bf16.msra.mxu0 0
  %1092 = vmatprep.subr.bf16.mxu0 0
  %1093 = vmatpush2.bf16.msra.mxu0 0
  %1094 = vmatprep.mubr.bf16.mxu0 0
  %1095 = vmatmul.mubr.bf16.gmra.mxu0 %v1011
  %v1096 = vpop.f32.mrf.mxu0
  %v1097 = vadd.f32 0.0, %v1096
  %v1098 = vpop.f32.mrf.mxu0
  %v1099 = vpop.f32.mrf.mxu0
  %v1100 = vadd.f32 0.0, %v1099
  %v1101 = vpop.f32.mrf.mxu0
  %1102 = vmatprep.mubr.bf16.mxu0 0
  %1103 = vmatmul.mubr.bf16.gmra.mxu0 %v1010
  %v1104 = vpop.f32.mrf.mxu0
  %v1105 = vadd.f32 0.0, %v1104
  %v1106 = vpop.f32.mrf.mxu0
  %v1107 = vpop.f32.mrf.mxu0
  %v1108 = vpop.f32.mrf.mxu0
  %1109 = vdwg.mxu0
  %v1110 = vadd.f32 %v986, %v1097
  %v1111 = vadd.f32 %v987, %v1100
  %v1112 = vadd.f32 %v988, %v1105
  %v1113 = vadd.f32 %v1110, %v556
  %v1114 = vadd.f32 %v1111, %v556
  %v1115 = vadd.f32 %v1112, %v556
  %v1116 = vmax.f32 %v1113, 0.0
  %v1117 = vmax.f32 %v1114, 0.0
  %v1118 = vmax.f32 %v1115, 0.0
  %v1119 = vpack.c.bf16 %v1117, %v1116
  %v1120 = vpack.c.bf16 %v1118, %v1118
  %v1123 = vunpack.c.l.b16 %v1119
  %v1124 = vunpack.c.h.b16 %v1119
  %v1125 = vunpack.c.l.b16 %v1120
  %v1126 = vpack.c.b16 %v1123, %v1123
  %v1127 = vpack.c.b16 %v1124, %v1124
  %v1128 = vpack.c.b16 %v1125, %v1125
  %s1132 = scalar_lea.vmem %s3, 12
  %1133 = vst.msk [vmem:[%s1132] sm:$0xf] %vm577, %v1126
  %1134 = vst.msk [vmem:[%s1132 + $0x4] sm:$0xf] %vm577, %v1127
  %1135 = vst.msk [vmem:[%s1132 + $0x8] sm:$0x3] %vm580, %v1128
  // Predicated region
  $region14: #{qlearner_forward.5} parent=0 // pred_check
    _
  $region15: #{qlearner_forward.5} parent=0 // pred_check_branch
    %1137 = sbr.rel (0) target = $region17
  $region16: #{qlearner_forward.5} parent=0 // pred_region
    _
  $region17: #{qlearner_forward.5} parent=0 // pred_fallthru
    _
  // Predicated region
  $region18: #{qlearner_forward.5} parent=0 // pred_check
    _
  $region19: #{qlearner_forward.5} parent=0 // pred_check_branch
    %1139 = sbr.rel (0) target = $region21
  $region20: #{qlearner_forward.5} parent=0 // pred_region
    _
  $region21: #{qlearner_forward.5} parent=0 // pred_fallthru
    _

// kernel: qlearner_forward.7
$region0: #{qlearner_forward.7}
  #allocation0 [shape = 'u32[]', space=smem, size = 0x4, offset = 0x4, fixed_abs, tag = 'smem constant byte address 0x4 - core index']
  #allocation1 [shape = 'u32[144,128]{1,0:T(1,128)}', space=vmem, size = 0x12000, scoped, tag = 'internal scratch']
  #allocation2 [shape = 'bf16[2,512]{1,0:T(2,128)(2,1)}', space=vmem, size = 0x800, scoped, tag = 'scratch operand']
  %s0 = inlined_call_operand.vmem [shape: bf16[2,256], index: 0, kind: input, shape index: {}]
  %s1 = inlined_call_operand.vmem [shape: bf16[256,512], index: 1, kind: input, shape index: {}]
  %s2 = inlined_call_operand.vmem [shape: f32[1,512], index: 2, kind: input, shape index: {}]
  %s3 = inlined_call_operand.vmem [shape: bf16[512,128], index: 3, kind: input, shape index: {}]
  %s4 = inlined_call_operand.vmem [shape: f32[1,128], index: 4, kind: input, shape index: {}]
  %s5 = inlined_call_operand.hbm [shape: f32[2,128], index: 5, kind: output, shape index: {}]
  %s6 = sld [smem:[#allocation0]]
  $region30: #{qlearner_forward.7} parent=0
    _
  %s8 = ssub.s32 1, %s6
  %s9 = scalar_select 0, %s8, %s6
  $region1: #{qlearner_forward.7} parent=0
    #allocation3 [shape = 'u8[1024]{0}', space=vmem, size = 0x400, scoped, tag = 'output window, operand 0, single buffered']
    #allocation4 [shape = 's32[1]{0}', space=sflag, size = 0x4, scoped, tag = 'scoped memory for qlearner_forward.7']
    %10 = vsyncpa [#allocation4], 0
    // Predicated region
    $region2: #{qlearner_forward.7} parent=1 // pred_check
      _
    $region3: #{qlearner_forward.7} parent=1 // pred_check_branch
      %12 = sbr.rel (0) target = $region5
    $region4: #{qlearner_forward.7} parent=1 // pred_region
      _
    $region5: #{qlearner_forward.7} parent=1 // pred_fallthru
      _
    // Predicated region
    $region6: #{qlearner_forward.7} parent=1 // pred_check
      _
    $region7: #{qlearner_forward.7} parent=1 // pred_check_branch
      %14 = sbr.rel (0) target = $region9
    $region8: #{qlearner_forward.7} parent=1 // pred_region
      _
    $region9: #{qlearner_forward.7} parent=1 // pred_fallthru
      _
    // Predicated region
    $region10: #{qlearner_forward.7} parent=1 // pred_check
      _
    $region11: #{qlearner_forward.7} parent=1 // pred_check_branch
      %16 = sbr.rel (0) target = $region13
    $region12: #{qlearner_forward.7} parent=1 // pred_region
      _
    $region13: #{qlearner_forward.7} parent=1 // pred_fallthru
      _
    // Predicated region
    $region14: #{qlearner_forward.7} parent=1 // pred_check
      _
    $region15: #{qlearner_forward.7} parent=1 // pred_check_branch
      %18 = sbr.rel (0) target = $region17
    $region16: #{qlearner_forward.7} parent=1 // pred_region
      _
    $region17: #{qlearner_forward.7} parent=1 // pred_fallthru
      _
    // Predicated region
    $region18: #{qlearner_forward.7} parent=1 // pred_check
      _
    $region19: #{qlearner_forward.7} parent=1 // pred_check_branch
      %20 = sbr.rel (0) target = $region21
    $region20: #{qlearner_forward.7} parent=1 // pred_region
      _
    $region21: #{qlearner_forward.7} parent=1 // pred_fallthru
      _
    %v22 = vld [vmem:[%s0] sm:$0x3]
    %v23 = vld [vmem:[%s1] sm:$0xff]
    %v24 = vld [vmem:[%s1 + $0x8] sm:$0xff]
    %v25 = vld [vmem:[%s1 + $0x10] sm:$0xff]
    %v26 = vld [vmem:[%s1 + $0x18] sm:$0xff]
    %v27 = vld [vmem:[%s1 + $0x20] sm:$0xff]
    %v28 = vld [vmem:[%s1 + $0x28] sm:$0xff]
    %v29 = vld [vmem:[%s1 + $0x30] sm:$0xff]
    %v30 = vld [vmem:[%s1 + $0x38] sm:$0xff]
    %v31 = vld [vmem:[%s1 + $0x40] sm:$0xff]
    %v32 = vld [vmem:[%s1 + $0x48] sm:$0xff]
    %v33 = vld [vmem:[%s1 + $0x50] sm:$0xff]
    %v34 = vld [vmem:[%s1 + $0x58] sm:$0xff]
    %v35 = vld [vmem:[%s1 + $0x60] sm:$0xff]
    %v36 = vld [vmem:[%s1 + $0x68] sm:$0xff]
    %v37 = vld [vmem:[%s1 + $0x70] sm:$0xff]
    %v38 = vld [vmem:[%s1 + $0x78] sm:$0xff]
    %v39 = vld [vmem:[%s1 + $0x80] sm:$0xff]
    %v40 = vld [vmem:[%s1 + $0x88] sm:$0xff]
    %v41 = vld [vmem:[%s1 + $0x90] sm:$0xff]
    %v42 = vld [vmem:[%s1 + $0x98] sm:$0xff]
    %v43 = vld [vmem:[%s1 + $0xa0] sm:$0xff]
    %v44 = vld [vmem:[%s1 + $0xa8] sm:$0xff]
    %v45 = vld [vmem:[%s1 + $0xb0] sm:$0xff]
    %v46 = vld [vmem:[%s1 + $0xb8] sm:$0xff]
    %v47 = vld [vmem:[%s1 + $0xc0] sm:$0xff]
    %v48 = vld [vmem:[%s1 + $0xc8] sm:$0xff]
    %v49 = vld [vmem:[%s1 + $0xd0] sm:$0xff]
    %v50 = vld [vmem:[%s1 + $0xd8] sm:$0xff]
    %v51 = vld [vmem:[%s1 + $0xe0] sm:$0xff]
    %v52 = vld [vmem:[%s1 + $0xe8] sm:$0xff]
    %v53 = vld [vmem:[%s1 + $0xf0] sm:$0xff]
    %v54 = vld [vmem:[%s1 + $0xf8] sm:$0xff]
    %v55 = vld [vmem:[%s1 + $0x100] sm:$0xff]
    %v56 = vld [vmem:[%s1 + $0x108] sm:$0xff]
    %v57 = vld [vmem:[%s1 + $0x110] sm:$0xff]
    %v58 = vld [vmem:[%s1 + $0x118] sm:$0xff]
    %v59 = vld [vmem:[%s1 + $0x120] sm:$0xff]
    %v60 = vld [vmem:[%s1 + $0x128] sm:$0xff]
    %v61 = vld [vmem:[%s1 + $0x130] sm:$0xff]
    %v62 = vld [vmem:[%s1 + $0x138] sm:$0xff]
    %v63 = vld [vmem:[%s1 + $0x140] sm:$0xff]
    %v64 = vld [vmem:[%s1 + $0x148] sm:$0xff]
    %v65 = vld [vmem:[%s1 + $0x150] sm:$0xff]
    %v66 = vld [vmem:[%s1 + $0x158] sm:$0xff]
    %v67 = vld [vmem:[%s1 + $0x160] sm:$0xff]
    %v68 = vld [vmem:[%s1 + $0x168] sm:$0xff]
    %v69 = vld [vmem:[%s1 + $0x170] sm:$0xff]
    %v70 = vld [vmem:[%s1 + $0x178] sm:$0xff]
    %v71 = vld [vmem:[%s1 + $0x180] sm:$0xff]
    %v72 = vld [vmem:[%s1 + $0x188] sm:$0xff]
    %v73 = vld [vmem:[%s1 + $0x190] sm:$0xff]
    %v74 = vld [vmem:[%s1 + $0x198] sm:$0xff]
    %v75 = vld [vmem:[%s1 + $0x1a0] sm:$0xff]
    %v76 = vld [vmem:[%s1 + $0x1a8] sm:$0xff]
    %v77 = vld [vmem:[%s1 + $0x1b0] sm:$0xff]
    %v78 = vld [vmem:[%s1 + $0x1b8] sm:$0xff]
    %v79 = vld [vmem:[%s1 + $0x1c0] sm:$0xff]
    %v80 = vld [vmem:[%s1 + $0x1c8] sm:$0xff]
    %v81 = vld [vmem:[%s1 + $0x1d0] sm:$0xff]
    %v82 = vld [vmem:[%s1 + $0x1d8] sm:$0xff]
    %v83 = vld [vmem:[%s1 + $0x1e0] sm:$0xff]
    %v84 = vld [vmem:[%s1 + $0x1e8] sm:$0xff]
    %v85 = vld [vmem:[%s1 + $0x1f0] sm:$0xff]
    %v86 = vld [vmem:[%s1 + $0x1f8] sm:$0xff]
    %v87 = vld [vmem:[%s2] sm:$0xf]
    %v89 = vlaneseq
    %v90 = vshrl.u32 %v89, 7
    %v91 = vsub.s32 0, %v90
    %v92 = vrot.slane %v87, %v91
    %v93 = vlaneseq
    %v94 = vshrl.u32 %v93, 7
    %v95 = vsub.s32 1, %v94
    %v96 = vrot.slane %v87, %v95
    %v97 = vlaneseq
    %v98 = vshrl.u32 %v97, 7
    %v99 = vsub.s32 2, %v98
    %v100 = vrot.slane %v87, %v99
    %v101 = vlaneseq
    %v102 = vshrl.u32 %v101, 7
    %v103 = vsub.s32 3, %v102
    %v104 = vrot.slane %v87, %v103
    %v111 = vunpack.c.l.s4 1966171168
    %v112 = vunpack.c.0.s8 %v111
    %v113 = vlaneseq
    %v114 = vshrl.u32 %v113, 7
    %v115 = vsub.s32 %v112, %v114
    %v116 = vrot.slane %v22, %v115
    %v117 = vcombine.high %v116, %v116
    %v119 = vunpack.c.l.s4 1966171168
    %v120 = vunpack.c.0.s8 %v119
    %v121 = vlaneseq
    %v122 = vshrl.u32 %v121, 7
    %v123 = vsub.s32 %v120, %v122
    %v124 = vrot.slane %v116, %v123
    %v126 = vunpack.c.l.s4 1966171168
    %v127 = vunpack.c.0.s8 %v126
    %v128 = vlaneseq
    %v129 = vshrl.u32 %v128, 7
    %v130 = vsub.s32 %v127, %v129
    %v131 = vrot.slane %v117, %v130
    %v198 = vunpack.c.l.b16 %v23
    %v199 = vunpack.c.h.b16 %v23
    %v200 = vunpack.c.l.b16 %v24
    %v201 = vunpack.c.h.b16 %v24
    %v202 = vunpack.c.l.b16 %v25
    %v203 = vunpack.c.h.b16 %v25
    %v204 = vunpack.c.l.b16 %v26
    %v205 = vunpack.c.h.b16 %v26
    %v206 = vunpack.c.l.b16 %v27
    %v207 = vunpack.c.h.b16 %v27
    %v208 = vunpack.c.l.b16 %v28
    %v209 = vunpack.c.h.b16 %v28
    %v210 = vunpack.c.l.b16 %v29
    %v211 = vunpack.c.h.b16 %v29
    %v212 = vunpack.c.l.b16 %v30
    %v213 = vunpack.c.h.b16 %v30
    %v214 = vunpack.c.l.b16 %v31
    %v215 = vunpack.c.h.b16 %v31
    %v216 = vunpack.c.l.b16 %v32
    %v217 = vunpack.c.h.b16 %v32
    %v218 = vunpack.c.l.b16 %v33
    %v219 = vunpack.c.h.b16 %v33
    %v220 = vunpack.c.l.b16 %v34
    %v221 = vunpack.c.h.b16 %v34
    %v222 = vunpack.c.l.b16 %v35
    %v223 = vunpack.c.h.b16 %v35
    %v224 = vunpack.c.l.b16 %v36
    %v225 = vunpack.c.h.b16 %v36
    %v226 = vunpack.c.l.b16 %v37
    %v227 = vunpack.c.h.b16 %v37
    %v228 = vunpack.c.l.b16 %v38
    %v229 = vunpack.c.h.b16 %v38
    %v230 = vunpack.c.l.b16 %v39
    %v231 = vunpack.c.h.b16 %v39
    %v232 = vunpack.c.l.b16 %v40
    %v233 = vunpack.c.h.b16 %v40
    %v234 = vunpack.c.l.b16 %v41
    %v235 = vunpack.c.h.b16 %v41
    %v236 = vunpack.c.l.b16 %v42
    %v237 = vunpack.c.h.b16 %v42
    %v238 = vunpack.c.l.b16 %v43
    %v239 = vunpack.c.h.b16 %v43
    %v240 = vunpack.c.l.b16 %v44
    %v241 = vunpack.c.h.b16 %v44
    %v242 = vunpack.c.l.b16 %v45
    %v243 = vunpack.c.h.b16 %v45
    %v244 = vunpack.c.l.b16 %v46
    %v245 = vunpack.c.h.b16 %v46
    %v246 = vunpack.c.l.b16 %v47
    %v247 = vunpack.c.h.b16 %v47
    %v248 = vunpack.c.l.b16 %v48
    %v249 = vunpack.c.h.b16 %v48
    %v250 = vunpack.c.l.b16 %v49
    %v251 = vunpack.c.h.b16 %v49
    %v252 = vunpack.c.l.b16 %v50
    %v253 = vunpack.c.h.b16 %v50
    %v254 = vunpack.c.l.b16 %v51
    %v255 = vunpack.c.h.b16 %v51
    %v256 = vunpack.c.l.b16 %v52
    %v257 = vunpack.c.h.b16 %v52
    %v258 = vunpack.c.l.b16 %v53
    %v259 = vunpack.c.h.b16 %v53
    %v260 = vunpack.c.l.b16 %v54
    %v261 = vunpack.c.h.b16 %v54
    %v262 = vunpack.c.l.b16 %v55
    %v263 = vunpack.c.h.b16 %v55
    %v264 = vunpack.c.l.b16 %v56
    %v265 = vunpack.c.h.b16 %v56
    %v266 = vunpack.c.l.b16 %v57
    %v267 = vunpack.c.h.b16 %v57
    %v268 = vunpack.c.l.b16 %v58
    %v269 = vunpack.c.h.b16 %v58
    %v270 = vunpack.c.l.b16 %v59
    %v271 = vunpack.c.h.b16 %v59
    %v272 = vunpack.c.l.b16 %v60
    %v273 = vunpack.c.h.b16 %v60
    %v274 = vunpack.c.l.b16 %v61
    %v275 = vunpack.c.h.b16 %v61
    %v276 = vunpack.c.l.b16 %v62
    %v277 = vunpack.c.h.b16 %v62
    %v278 = vunpack.c.l.b16 %v63
    %v279 = vunpack.c.h.b16 %v63
    %v280 = vunpack.c.l.b16 %v64
    %v281 = vunpack.c.h.b16 %v64
    %v282 = vunpack.c.l.b16 %v65
    %v283 = vunpack.c.h.b16 %v65
    %v284 = vunpack.c.l.b16 %v66
    %v285 = vunpack.c.h.b16 %v66
    %v286 = vunpack.c.l.b16 %v67
    %v287 = vunpack.c.h.b16 %v67
    %v288 = vunpack.c.l.b16 %v68
    %v289 = vunpack.c.h.b16 %v68
    %v290 = vunpack.c.l.b16 %v69
    %v291 = vunpack.c.h.b16 %v69
    %v292 = vunpack.c.l.b16 %v70
    %v293 = vunpack.c.h.b16 %v70
    %v294 = vunpack.c.l.b16 %v71
    %v295 = vunpack.c.h.b16 %v71
    %v296 = vunpack.c.l.b16 %v72
    %v297 = vunpack.c.h.b16 %v72
    %v298 = vunpack.c.l.b16 %v73
    %v299 = vunpack.c.h.b16 %v73
    %v300 = vunpack.c.l.b16 %v74
    %v301 = vunpack.c.h.b16 %v74
    %v302 = vunpack.c.l.b16 %v75
    %v303 = vunpack.c.h.b16 %v75
    %v304 = vunpack.c.l.b16 %v76
    %v305 = vunpack.c.h.b16 %v76
    %v306 = vunpack.c.l.b16 %v77
    %v307 = vunpack.c.h.b16 %v77
    %v308 = vunpack.c.l.b16 %v78
    %v309 = vunpack.c.h.b16 %v78
    %v310 = vunpack.c.l.b16 %v79
    %v311 = vunpack.c.h.b16 %v79
    %v312 = vunpack.c.l.b16 %v80
    %v313 = vunpack.c.h.b16 %v80
    %v314 = vunpack.c.l.b16 %v81
    %v315 = vunpack.c.h.b16 %v81
    %v316 = vunpack.c.l.b16 %v82
    %v317 = vunpack.c.h.b16 %v82
    %v318 = vunpack.c.l.b16 %v83
    %v319 = vunpack.c.h.b16 %v83
    %v320 = vunpack.c.l.b16 %v84
    %v321 = vunpack.c.h.b16 %v84
    %v322 = vunpack.c.l.b16 %v85
    %v323 = vunpack.c.h.b16 %v85
    %v324 = vunpack.c.l.b16 %v86
    %v325 = vunpack.c.h.b16 %v86
    %v326 = vpack.c.b16 %v202, %v198
    %v327 = vpack.c.b16 %v203, %v199
    %v328 = vpack.c.b16 %v204, %v200
    %v329 = vpack.c.b16 %v205, %v201
    %v330 = vpack.c.b16 %v210, %v206
    %v331 = vpack.c.b16 %v211, %v207
    %v332 = vpack.c.b16 %v212, %v208
    %v333 = vpack.c.b16 %v213, %v209
    %v334 = vpack.c.b16 %v218, %v214
    %v335 = vpack.c.b16 %v219, %v215
    %v336 = vpack.c.b16 %v220, %v216
    %v337 = vpack.c.b16 %v221, %v217
    %v338 = vpack.c.b16 %v226, %v222
    %v339 = vpack.c.b16 %v227, %v223
    %v340 = vpack.c.b16 %v228, %v224
    %v341 = vpack.c.b16 %v229, %v225
    %v342 = vpack.c.b16 %v234, %v230
    %v343 = vpack.c.b16 %v235, %v231
    %v344 = vpack.c.b16 %v236, %v232
    %v345 = vpack.c.b16 %v237, %v233
    %v346 = vpack.c.b16 %v242, %v238
    %v347 = vpack.c.b16 %v243, %v239
    %v348 = vpack.c.b16 %v244, %v240
    %v349 = vpack.c.b16 %v245, %v241
    %v350 = vpack.c.b16 %v250, %v246
    %v351 = vpack.c.b16 %v251, %v247
    %v352 = vpack.c.b16 %v252, %v248
    %v353 = vpack.c.b16 %v253, %v249
    %v354 = vpack.c.b16 %v258, %v254
    %v355 = vpack.c.b16 %v259, %v255
    %v356 = vpack.c.b16 %v260, %v256
    %v357 = vpack.c.b16 %v261, %v257
    %v358 = vpack.c.b16 %v266, %v262
    %v359 = vpack.c.b16 %v267, %v263
    %v360 = vpack.c.b16 %v268, %v264
    %v361 = vpack.c.b16 %v269, %v265
    %v362 = vpack.c.b16 %v274, %v270
    %v363 = vpack.c.b16 %v275, %v271
    %v364 = vpack.c.b16 %v276, %v272
    %v365 = vpack.c.b16 %v277, %v273
    %v366 = vpack.c.b16 %v282, %v278
    %v367 = vpack.c.b16 %v283, %v279
    %v368 = vpack.c.b16 %v284, %v280
    %v369 = vpack.c.b16 %v285, %v281
    %v370 = vpack.c.b16 %v290, %v286
    %v371 = vpack.c.b16 %v291, %v287
    %v372 = vpack.c.b16 %v292, %v288
    %v373 = vpack.c.b16 %v293, %v289
    %v374 = vpack.c.b16 %v298, %v294
    %v375 = vpack.c.b16 %v299, %v295
    %v376 = vpack.c.b16 %v300, %v296
    %v377 = vpack.c.b16 %v301, %v297
    %v378 = vpack.c.b16 %v306, %v302
    %v379 = vpack.c.b16 %v307, %v303
    %v380 = vpack.c.b16 %v308, %v304
    %v381 = vpack.c.b16 %v309, %v305
    %v382 = vpack.c.b16 %v314, %v310
    %v383 = vpack.c.b16 %v315, %v311
    %v384 = vpack.c.b16 %v316, %v312
    %v385 = vpack.c.b16 %v317, %v313
    %v386 = vpack.c.b16 %v322, %v318
    %v387 = vpack.c.b16 %v323, %v319
    %v388 = vpack.c.b16 %v324, %v320
    %v389 = vpack.c.b16 %v325, %v321
    %454 = vmatprep.subr.bf16.mxu0 %v355
    %455 = vmatpush1.bf16.msra.mxu0 %v354
    %456 = vmatprep.subr.bf16.mxu0 %v351
    %457 = vmatpush1.bf16.msra.mxu0 %v350
    %458 = vmatprep.subr.bf16.mxu0 %v347
    %459 = vmatpush1.bf16.msra.mxu0 %v346
    %460 = vmatprep.subr.bf16.mxu0 %v343
    %461 = vmatpush1.bf16.msra.mxu0 %v342
    %462 = vmatprep.subr.bf16.mxu0 %v339
    %463 = vmatpush1.bf16.msra.mxu0 %v338
    %464 = vmatprep.subr.bf16.mxu0 %v335
    %465 = vmatpush1.bf16.msra.mxu0 %v334
    %466 = vmatprep.subr.bf16.mxu0 %v331
    %467 = vmatpush1.bf16.msra.mxu0 %v330
    %468 = vmatprep.subr.bf16.mxu0 %v327
    %469 = vmatpush1.bf16.msra.mxu0 %v326
    %470 = vmatprep.subr.bf16.mxu0 %v387
    %471 = vmatpush2.bf16.msra.mxu0 %v386
    %472 = vmatprep.subr.bf16.mxu0 %v383
    %473 = vmatpush2.bf16.msra.mxu0 %v382
    %474 = vmatprep.subr.bf16.mxu0 %v379
    %475 = vmatpush2.bf16.msra.mxu0 %v378
    %476 = vmatprep.subr.bf16.mxu0 %v375
    %477 = vmatpush2.bf16.msra.mxu0 %v374
    %478 = vmatprep.subr.bf16.mxu0 %v371
    %479 = vmatpush2.bf16.msra.mxu0 %v370
    %480 = vmatprep.subr.bf16.mxu0 %v367
    %481 = vmatpush2.bf16.msra.mxu0 %v366
    %482 = vmatprep.subr.bf16.mxu0 %v363
    %483 = vmatpush2.bf16.msra.mxu0 %v362
    %484 = vmatprep.subr.bf16.mxu0 %v359
    %485 = vmatpush2.bf16.msra.mxu0 %v358
    %486 = vmatprep.mubr.bf16.mxu0 %v131
    %487 = vmatmul.mubr.bf16.gmra.mxu0 %v124
    %v488 = vpop.f32.mrf.mxu0
    %v489 = vadd.f32 %v92, %v488
    %v490 = vpop.f32.mrf.mxu0
    %v491 = vadd.f32 %v96, %v490
    %v492 = vpop.f32.mrf.mxu0
    %v493 = vpop.f32.mrf.mxu0
    %494 = vdwg.mxu0
    %495 = vmatprep.subr.bf16.mxu0 %v357
    %496 = vmatpush1.bf16.msra.mxu0 %v356
    %497 = vmatprep.subr.bf16.mxu0 %v353
    %498 = vmatpush1.bf16.msra.mxu0 %v352
    %499 = vmatprep.subr.bf16.mxu0 %v349
    %500 = vmatpush1.bf16.msra.mxu0 %v348
    %501 = vmatprep.subr.bf16.mxu0 %v345
    %502 = vmatpush1.bf16.msra.mxu0 %v344
    %503 = vmatprep.subr.bf16.mxu0 %v341
    %504 = vmatpush1.bf16.msra.mxu0 %v340
    %505 = vmatprep.subr.bf16.mxu0 %v337
    %506 = vmatpush1.bf16.msra.mxu0 %v336
    %507 = vmatprep.subr.bf16.mxu0 %v333
    %508 = vmatpush1.bf16.msra.mxu0 %v332
    %509 = vmatprep.subr.bf16.mxu0 %v329
    %510 = vmatpush1.bf16.msra.mxu0 %v328
    %511 = vmatprep.subr.bf16.mxu0 %v389
    %512 = vmatpush2.bf16.msra.mxu0 %v388
    %513 = vmatprep.subr.bf16.mxu0 %v385
    %514 = vmatpush2.bf16.msra.mxu0 %v384
    %515 = vmatprep.subr.bf16.mxu0 %v381
    %516 = vmatpush2.bf16.msra.mxu0 %v380
    %517 = vmatprep.subr.bf16.mxu0 %v377
    %518 = vmatpush2.bf16.msra.mxu0 %v376
    %519 = vmatprep.subr.bf16.mxu0 %v373
    %520 = vmatpush2.bf16.msra.mxu0 %v372
    %521 = vmatprep.subr.bf16.mxu0 %v369
    %522 = vmatpush2.bf16.msra.mxu0 %v368
    %523 = vmatprep.subr.bf16.mxu0 %v365
    %524 = vmatpush2.bf16.msra.mxu0 %v364
    %525 = vmatprep.subr.bf16.mxu0 %v361
    %526 = vmatpush2.bf16.msra.mxu0 %v360
    %527 = vmatprep.mubr.bf16.mxu0 %v131
    %528 = vmatmul.mubr.bf16.gmra.mxu0 %v124
    %v529 = vpop.f32.mrf.mxu0
    %v530 = vadd.f32 %v100, %v529
    %v531 = vpop.f32.mrf.mxu0
    %v532 = vadd.f32 %v104, %v531
    %v533 = vpop.f32.mrf.mxu0
    %v534 = vpop.f32.mrf.mxu0
    %535 = vdwg.mxu0
    %v536 = vmax.f32 %v489, 0.0
    %v537 = vmax.f32 %v491, 0.0
    %v538 = vmax.f32 %v530, 0.0
    %v539 = vmax.f32 %v532, 0.0
    %v540 = vpack.c.bf16 %v536, %v536
    %v541 = vpack.c.bf16 %v537, %v537
    %v542 = vpack.c.bf16 %v538, %v538
    %v543 = vpack.c.bf16 %v539, %v539
    %v548 = vcombine.low %v540, %v541
    %v549 = vcombine.low %v542, %v543
    %v551 = vunpack.c.l.s4 1966171168
    %v552 = vunpack.c.0.s8 %v551
    %v553 = vlaneseq
    %v554 = vshrl.u32 %v553, 7
    %v555 = vsub.s32 %v552, %v554
    %v556 = vrot.slane %v548, %v555
    %v558 = vunpack.c.l.s4 1966171168
    %v559 = vunpack.c.0.s8 %v558
    %v560 = vlaneseq
    %v561 = vshrl.u32 %v560, 7
    %v562 = vsub.s32 %v559, %v561
    %v563 = vrot.slane %v549, %v562
    %v564 = vcombine.low %v556, %v563
    %v566 = vunpack.c.l.s4 1966171168
    %v567 = vunpack.c.0.s8 %v566
    %v568 = vlaneseq
    %v569 = vshrl.u32 %v568, 7
    %v570 = vsub.s32 %v567, %v569
    %v571 = vrot.slane %v564, %v570
    %573 = vst [vmem:[#allocation2] sm:$0xf] %v571
    %v574 = vld [vmem:[#allocation2] sm:$0xf]
    %v575 = vld [vmem:[%s3] sm:$0xf]
    %v576 = vld [vmem:[%s3 + $0x4] sm:$0xf]
    %v577 = vld [vmem:[%s3 + $0x8] sm:$0xf]
    %v578 = vld [vmem:[%s3 + $0xc] sm:$0xf]
    %v579 = vld [vmem:[%s3 + $0x10] sm:$0xf]
    %v580 = vld [vmem:[%s3 + $0x14] sm:$0xf]
    %v581 = vld [vmem:[%s3 + $0x18] sm:$0xf]
    %v582 = vld [vmem:[%s3 + $0x1c] sm:$0xf]
    %v583 = vld [vmem:[%s3 + $0x20] sm:$0xf]
    %v584 = vld [vmem:[%s3 + $0x24] sm:$0xf]
    %v585 = vld [vmem:[%s3 + $0x28] sm:$0xf]
    %v586 = vld [vmem:[%s3 + $0x2c] sm:$0xf]
    %v587 = vld [vmem:[%s3 + $0x30] sm:$0xf]
    %v588 = vld [vmem:[%s3 + $0x34] sm:$0xf]
    %v589 = vld [vmem:[%s3 + $0x38] sm:$0xf]
    %v590 = vld [vmem:[%s3 + $0x3c] sm:$0xf]
    %v591 = vld [vmem:[%s3 + $0x40] sm:$0xf]
    %v592 = vld [vmem:[%s3 + $0x44] sm:$0xf]
    %v593 = vld [vmem:[%s3 + $0x48] sm:$0xf]
    %v594 = vld [vmem:[%s3 + $0x4c] sm:$0xf]
    %v595 = vld [vmem:[%s3 + $0x50] sm:$0xf]
    %v596 = vld [vmem:[%s3 + $0x54] sm:$0xf]
    %v597 = vld [vmem:[%s3 + $0x58] sm:$0xf]
    %v598 = vld [vmem:[%s3 + $0x5c] sm:$0xf]
    %v599 = vld [vmem:[%s3 + $0x60] sm:$0xf]
    %v600 = vld [vmem:[%s3 + $0x64] sm:$0xf]
    %v601 = vld [vmem:[%s3 + $0x68] sm:$0xf]
    %v602 = vld [vmem:[%s3 + $0x6c] sm:$0xf]
    %v603 = vld [vmem:[%s3 + $0x70] sm:$0xf]
    %v604 = vld [vmem:[%s3 + $0x74] sm:$0xf]
    %v605 = vld [vmem:[%s3 + $0x78] sm:$0xf]
    %v606 = vld [vmem:[%s3 + $0x7c] sm:$0xf]
    %v607 = vld [vmem:[%s3 + $0x80] sm:$0xf]
    %v608 = vld [vmem:[%s3 + $0x84] sm:$0xf]
    %v609 = vld [vmem:[%s3 + $0x88] sm:$0xf]
    %v610 = vld [vmem:[%s3 + $0x8c] sm:$0xf]
    %v611 = vld [vmem:[%s3 + $0x90] sm:$0xf]
    %v612 = vld [vmem:[%s3 + $0x94] sm:$0xf]
    %v613 = vld [vmem:[%s3 + $0x98] sm:$0xf]
    %v614 = vld [vmem:[%s3 + $0x9c] sm:$0xf]
    %v615 = vld [vmem:[%s3 + $0xa0] sm:$0xf]
    %v616 = vld [vmem:[%s3 + $0xa4] sm:$0xf]
    %v617 = vld [vmem:[%s3 + $0xa8] sm:$0xf]
    %v618 = vld [vmem:[%s3 + $0xac] sm:$0xf]
    %v619 = vld [vmem:[%s3 + $0xb0] sm:$0xf]
    %v620 = vld [vmem:[%s3 + $0xb4] sm:$0xf]
    %v621 = vld [vmem:[%s3 + $0xb8] sm:$0xf]
    %v622 = vld [vmem:[%s3 + $0xbc] sm:$0xf]
    %v623 = vld [vmem:[%s3 + $0xc0] sm:$0xf]
    %v624 = vld [vmem:[%s3 + $0xc4] sm:$0xf]
    %v625 = vld [vmem:[%s3 + $0xc8] sm:$0xf]
    %v626 = vld [vmem:[%s3 + $0xcc] sm:$0xf]
    %v627 = vld [vmem:[%s3 + $0xd0] sm:$0xf]
    %v628 = vld [vmem:[%s3 + $0xd4] sm:$0xf]
    %v629 = vld [vmem:[%s3 + $0xd8] sm:$0xf]
    %v630 = vld [vmem:[%s3 + $0xdc] sm:$0xf]
    %v631 = vld [vmem:[%s3 + $0xe0] sm:$0xf]
    %v632 = vld [vmem:[%s3 + $0xe4] sm:$0xf]
    %v633 = vld [vmem:[%s3 + $0xe8] sm:$0xf]
    %v634 = vld [vmem:[%s3 + $0xec] sm:$0xf]
    %v635 = vld [vmem:[%s3 + $0xf0] sm:$0xf]
    %v636 = vld [vmem:[%s3 + $0xf4] sm:$0xf]
    %v637 = vld [vmem:[%s3 + $0xf8] sm:$0xf]
    %v638 = vld [vmem:[%s3 + $0xfc] sm:$0xf]
    %v639 = vld [vmem:[%s4] sm:$0x1]
    %v641 = vlaneseq
    %v642 = vshrl.u32 %v641, 7
    %v643 = vsub.s32 0, %v642
    %v644 = vrot.slane %v639, %v643
    %v648 = vunpack.c.l.s4 1966171168
    %v649 = vunpack.c.0.s8 %v648
    %v650 = vlaneseq
    %v651 = vshrl.u32 %v650, 7
    %v652 = vsub.s32 %v649, %v651
    %v653 = vrot.slane %v574, %v652
    %v654 = vcombine.high %v653, %v653
    %v656 = vunpack.c.l.s4 1966171168
    %v657 = vunpack.c.0.s8 %v656
    %v658 = vlaneseq
    %v659 = vshrl.u32 %v658, 7
    %v660 = vsub.s32 %v657, %v659
    %v661 = vrot.slane %v653, %v660
    %v663 = vunpack.c.l.s4 1966171168
    %v664 = vunpack.c.0.s8 %v663
    %v665 = vlaneseq
    %v666 = vshrl.u32 %v665, 7
    %v667 = vsub.s32 %v664, %v666
    %v668 = vrot.slane %v654, %v667
    %v669 = vcombine.high %v661, %v661
    %v670 = vcombine.high %v668, %v668
    %v739 = vunpack.c.l.b16 %v575
    %v740 = vunpack.c.l.b16 %v576
    %v741 = vunpack.c.l.b16 %v577
    %v742 = vunpack.c.l.b16 %v578
    %v743 = vunpack.c.l.b16 %v579
    %v744 = vunpack.c.l.b16 %v580
    %v745 = vunpack.c.l.b16 %v581
    %v746 = vunpack.c.l.b16 %v582
    %v747 = vunpack.c.l.b16 %v583
    %v748 = vunpack.c.l.b16 %v584
    %v749 = vunpack.c.l.b16 %v585
    %v750 = vunpack.c.l.b16 %v586
    %v751 = vunpack.c.l.b16 %v587
    %v752 = vunpack.c.l.b16 %v588
    %v753 = vunpack.c.l.b16 %v589
    %v754 = vunpack.c.l.b16 %v590
    %v755 = vunpack.c.l.b16 %v591
    %v756 = vunpack.c.l.b16 %v592
    %v757 = vunpack.c.l.b16 %v593
    %v758 = vunpack.c.l.b16 %v594
    %v759 = vunpack.c.l.b16 %v595
    %v760 = vunpack.c.l.b16 %v596
    %v761 = vunpack.c.l.b16 %v597
    %v762 = vunpack.c.l.b16 %v598
    %v763 = vunpack.c.l.b16 %v599
    %v764 = vunpack.c.l.b16 %v600
    %v765 = vunpack.c.l.b16 %v601
    %v766 = vunpack.c.l.b16 %v602
    %v767 = vunpack.c.l.b16 %v603
    %v768 = vunpack.c.l.b16 %v604
    %v769 = vunpack.c.l.b16 %v605
    %v770 = vunpack.c.l.b16 %v606
    %v771 = vunpack.c.l.b16 %v607
    %v772 = vunpack.c.l.b16 %v608
    %v773 = vunpack.c.l.b16 %v609
    %v774 = vunpack.c.l.b16 %v610
    %v775 = vunpack.c.l.b16 %v611
    %v776 = vunpack.c.l.b16 %v612
    %v777 = vunpack.c.l.b16 %v613
    %v778 = vunpack.c.l.b16 %v614
    %v779 = vunpack.c.l.b16 %v615
    %v780 = vunpack.c.l.b16 %v616
    %v781 = vunpack.c.l.b16 %v617
    %v782 = vunpack.c.l.b16 %v618
    %v783 = vunpack.c.l.b16 %v619
    %v784 = vunpack.c.l.b16 %v620
    %v785 = vunpack.c.l.b16 %v621
    %v786 = vunpack.c.l.b16 %v622
    %v787 = vunpack.c.l.b16 %v623
    %v788 = vunpack.c.l.b16 %v624
    %v789 = vunpack.c.l.b16 %v625
    %v790 = vunpack.c.l.b16 %v626
    %v791 = vunpack.c.l.b16 %v627
    %v792 = vunpack.c.l.b16 %v628
    %v793 = vunpack.c.l.b16 %v629
    %v794 = vunpack.c.l.b16 %v630
    %v795 = vunpack.c.l.b16 %v631
    %v796 = vunpack.c.l.b16 %v632
    %v797 = vunpack.c.l.b16 %v633
    %v798 = vunpack.c.l.b16 %v634
    %v799 = vunpack.c.l.b16 %v635
    %v800 = vunpack.c.l.b16 %v636
    %v801 = vunpack.c.l.b16 %v637
    %v802 = vunpack.c.l.b16 %v638
    %v803 = vpack.c.b16 %v740, %v739
    %v804 = vpack.c.b16 %v742, %v741
    %v805 = vpack.c.b16 %v744, %v743
    %v806 = vpack.c.b16 %v746, %v745
    %v807 = vpack.c.b16 %v748, %v747
    %v808 = vpack.c.b16 %v750, %v749
    %v809 = vpack.c.b16 %v752, %v751
    %v810 = vpack.c.b16 %v754, %v753
    %v811 = vpack.c.b16 %v756, %v755
    %v812 = vpack.c.b16 %v758, %v757
    %v813 = vpack.c.b16 %v760, %v759
    %v814 = vpack.c.b16 %v762, %v761
    %v815 = vpack.c.b16 %v764, %v763
    %v816 = vpack.c.b16 %v766, %v765
    %v817 = vpack.c.b16 %v768, %v767
    %v818 = vpack.c.b16 %v770, %v769
    %v819 = vpack.c.b16 %v772, %v771
    %v820 = vpack.c.b16 %v774, %v773
    %v821 = vpack.c.b16 %v776, %v775
    %v822 = vpack.c.b16 %v778, %v777
    %v823 = vpack.c.b16 %v780, %v779
    %v824 = vpack.c.b16 %v782, %v781
    %v825 = vpack.c.b16 %v784, %v783
    %v826 = vpack.c.b16 %v786, %v785
    %v827 = vpack.c.b16 %v788, %v787
    %v828 = vpack.c.b16 %v790, %v789
    %v829 = vpack.c.b16 %v792, %v791
    %v830 = vpack.c.b16 %v794, %v793
    %v831 = vpack.c.b16 %v796, %v795
    %v832 = vpack.c.b16 %v798, %v797
    %v833 = vpack.c.b16 %v800, %v799
    %v834 = vpack.c.b16 %v802, %v801
    %867 = vmatprep.subr.bf16.mxu0 0
    %868 = vmatpush1.bf16.msra.mxu0 %v810
    %869 = vmatprep.subr.bf16.mxu0 0
    %870 = vmatpush1.bf16.msra.mxu0 %v809
    %871 = vmatprep.subr.bf16.mxu0 0
    %872 = vmatpush1.bf16.msra.mxu0 %v808
    %873 = vmatprep.subr.bf16.mxu0 0
    %874 = vmatpush1.bf16.msra.mxu0 %v807
    %875 = vmatprep.subr.bf16.mxu0 0
    %876 = vmatpush1.bf16.msra.mxu0 %v806
    %877 = vmatprep.subr.bf16.mxu0 0
    %878 = vmatpush1.bf16.msra.mxu0 %v805
    %879 = vmatprep.subr.bf16.mxu0 0
    %880 = vmatpush1.bf16.msra.mxu0 %v804
    %881 = vmatprep.subr.bf16.mxu0 0
    %882 = vmatpush1.bf16.msra.mxu0 %v803
    %883 = vmatprep.subr.bf16.mxu0 0
    %884 = vmatpush2.bf16.msra.mxu0 %v818
    %885 = vmatprep.subr.bf16.mxu0 0
    %886 = vmatpush2.bf16.msra.mxu0 %v817
    %887 = vmatprep.subr.bf16.mxu0 0
    %888 = vmatpush2.bf16.msra.mxu0 %v816
    %889 = vmatprep.subr.bf16.mxu0 0
    %890 = vmatpush2.bf16.msra.mxu0 %v815
    %891 = vmatprep.subr.bf16.mxu0 0
    %892 = vmatpush2.bf16.msra.mxu0 %v814
    %893 = vmatprep.subr.bf16.mxu0 0
    %894 = vmatpush2.bf16.msra.mxu0 %v813
    %895 = vmatprep.subr.bf16.mxu0 0
    %896 = vmatpush2.bf16.msra.mxu0 %v812
    %897 = vmatprep.subr.bf16.mxu0 0
    %898 = vmatpush2.bf16.msra.mxu0 %v811
    %899 = vmatprep.mubr.bf16.mxu0 %v668
    %900 = vmatmul.mubr.bf16.gmra.mxu0 %v661
    %v901 = vpop.f32.mrf.mxu0
    %v902 = vadd.f32 %v644, %v901
    %v903 = vpop.f32.mrf.mxu0
    %v904 = vpop.f32.mrf.mxu0
    %v905 = vpop.f32.mrf.mxu0
    %906 = vdwg.mxu0
    %907 = vmatprep.subr.bf16.mxu0 0
    %908 = vmatpush1.bf16.msra.mxu0 %v826
    %909 = vmatprep.subr.bf16.mxu0 0
    %910 = vmatpush1.bf16.msra.mxu0 %v825
    %911 = vmatprep.subr.bf16.mxu0 0
    %912 = vmatpush1.bf16.msra.mxu0 %v824
    %913 = vmatprep.subr.bf16.mxu0 0
    %914 = vmatpush1.bf16.msra.mxu0 %v823
    %915 = vmatprep.subr.bf16.mxu0 0
    %916 = vmatpush1.bf16.msra.mxu0 %v822
    %917 = vmatprep.subr.bf16.mxu0 0
    %918 = vmatpush1.bf16.msra.mxu0 %v821
    %919 = vmatprep.subr.bf16.mxu0 0
    %920 = vmatpush1.bf16.msra.mxu0 %v820
    %921 = vmatprep.subr.bf16.mxu0 0
    %922 = vmatpush1.bf16.msra.mxu0 %v819
    %923 = vmatprep.subr.bf16.mxu0 0
    %924 = vmatpush2.bf16.msra.mxu0 %v834
    %925 = vmatprep.subr.bf16.mxu0 0
    %926 = vmatpush2.bf16.msra.mxu0 %v833
    %927 = vmatprep.subr.bf16.mxu0 0
    %928 = vmatpush2.bf16.msra.mxu0 %v832
    %929 = vmatprep.subr.bf16.mxu0 0
    %930 = vmatpush2.bf16.msra.mxu0 %v831
    %931 = vmatprep.subr.bf16.mxu0 0
    %932 = vmatpush2.bf16.msra.mxu0 %v830
    %933 = vmatprep.subr.bf16.mxu0 0
    %934 = vmatpush2.bf16.msra.mxu0 %v829
    %935 = vmatprep.subr.bf16.mxu0 0
    %936 = vmatpush2.bf16.msra.mxu0 %v828
    %937 = vmatprep.subr.bf16.mxu0 0
    %938 = vmatpush2.bf16.msra.mxu0 %v827
    %939 = vmatprep.mubr.bf16.mxu0 %v670
    %940 = vmatmul.mubr.bf16.gmra.mxu0 %v669
    %v941 = vpop.f32.mrf.mxu0
    %v942 = vadd.f32 %v902, %v941
    %v943 = vpop.f32.mrf.mxu0
    %v944 = vpop.f32.mrf.mxu0
    %v945 = vpop.f32.mrf.mxu0
    %946 = vdwg.mxu0
    %947 = vst [vmem:[#allocation3] sm:$0x3] %v942
    // Predicated region
    $region22: #{qlearner_forward.7} parent=1 // pred_check
      _
    $region23: #{qlearner_forward.7} parent=1 // pred_check_branch
      %949 = sbr.rel (0) target = $region25
    $region24: #{qlearner_forward.7} parent=1 // pred_region
      %s951 = ssub.s32 32, 32
      %952 = vsyncadd [#allocation4], %s951
      %s954 = sshll.u32 [#allocation3], 4
      %s955 = int_to_ptr.vmem [resolvable:$true] %s954
      %957 = dma.vmem_to_hbm [thread:$0]  %s955, 32, %s5, [#allocation4]
    $region25: #{qlearner_forward.7} parent=1 // pred_fallthru
      _
    // Predicated region
    $region26: #{qlearner_forward.7} parent=1 // pred_check
      _
    $region27: #{qlearner_forward.7} parent=1 // pred_check_branch
      %959 = sbr.rel (0) target = $region29
    $region28: #{qlearner_forward.7} parent=1 // pred_region
      %960 = dma.done [#allocation4], 32
    $region29: #{qlearner_forward.7} parent=1 // pred_fallthru
      _
    %961 = vsyncpa [#allocation4], 1

// kernel: qlearner_forward.6
$region0: #{qlearner_forward.6}
  #allocation0 [shape = 'u32[]', space=smem, size = 0x4, offset = 0x4, fixed_abs, tag = 'smem constant byte address 0x4 - core index']
  #allocation1 [shape = 'u32[144,128]{1,0:T(1,128)}', space=vmem, size = 0x12000, scoped, tag = 'internal scratch']
  %s0 = inlined_call_operand.vmem [shape: bf16[2,20,64], index: 0, kind: input, shape index: {}]
  %s1 = inlined_call_operand.vmem [shape: bf16[9,64,64], index: 1, kind: input, shape index: {}]
  %s2 = inlined_call_operand.vmem [shape: f32[1,64], index: 2, kind: input, shape index: {}]
  %s3 = inlined_call_operand.vmem [shape: bf16[2,8,64], index: 3, kind: output, shape index: {}]
  %s4 = sld [smem:[#allocation0]]
  $region22: #{qlearner_forward.6} parent=0
    _
  %s6 = ssub.s32 1, %s4
  %s7 = scalar_select 0, %s6, %s4
  // Predicated region
  $region2: #{qlearner_forward.6} parent=0 // pred_check
    _
  $region3: #{qlearner_forward.6} parent=0 // pred_check_branch
    %9 = sbr.rel (0) target = $region5
  $region4: #{qlearner_forward.6} parent=0 // pred_region
    _
  $region5: #{qlearner_forward.6} parent=0 // pred_fallthru
    _
  // Predicated region
  $region6: #{qlearner_forward.6} parent=0 // pred_check
    _
  $region7: #{qlearner_forward.6} parent=0 // pred_check_branch
    %11 = sbr.rel (0) target = $region9
  $region8: #{qlearner_forward.6} parent=0 // pred_region
    _
  $region9: #{qlearner_forward.6} parent=0 // pred_fallthru
    _
  // Predicated region
  $region10: #{qlearner_forward.6} parent=0 // pred_check
    _
  $region11: #{qlearner_forward.6} parent=0 // pred_check_branch
    %13 = sbr.rel (0) target = $region13
  $region12: #{qlearner_forward.6} parent=0 // pred_region
    _
  $region13: #{qlearner_forward.6} parent=0 // pred_fallthru
    _
  %v15 = vld [vmem:[%s2] sm:$0x1]
  %v16 = vld [vmem:[%s0] sm:$0xf]
  %v17 = vld [vmem:[%s1] sm:$0xf]
  %v18 = vld [vmem:[%s1 + $0x4] sm:$0xf]
  %v19 = vld [vmem:[%s1 + $0x8] sm:$0xf]
  %v20 = vld [vmem:[%s1 + $0xc] sm:$0xf]
  %v21 = vld [vmem:[%s1 + $0x10] sm:$0xf]
  %v22 = vld [vmem:[%s1 + $0x14] sm:$0xf]
  %v23 = vld [vmem:[%s1 + $0x18] sm:$0xf]
  %v24 = vld [vmem:[%s1 + $0x1c] sm:$0xf]
  %v25 = vld [vmem:[%s0 + $0x4] sm:$0x1]
  %s26 = scalar_lea.vmem %s1, 32
  %v27 = vld [vmem:[%s26] sm:$0xf]
  %v28 = vld [vmem:[%s26 + $0x4] sm:$0xf]
  %v29 = vld [vmem:[%s26 + $0x8] sm:$0xf]
  %v30 = vld [vmem:[%s26 + $0xc] sm:$0xf]
  %v31 = vld [vmem:[%s26 + $0x10] sm:$0xf]
  %v32 = vld [vmem:[%s26 + $0x14] sm:$0xf]
  %v33 = vld [vmem:[%s26 + $0x18] sm:$0xf]
  %v34 = vld [vmem:[%s26 + $0x1c] sm:$0xf]
  %v37 = vunpack.c.l.b16 %v16
  %v38 = vunpack.c.l.b16 %v25
  %v39 = vpack.c.b16 %v38, %v37
  %v41 = vshrl.u32 %v39, 16
  %v43 = vshll.u32 %v39, 16
  %v45 = vrot.slane %v43, 1
  %v46 = vor.u32 %v41, %v45
  %v55 = vunpack.c.l.b16 %v27
  %v56 = vunpack.c.l.b16 %v28
  %v57 = vunpack.c.l.b16 %v29
  %v58 = vunpack.c.l.b16 %v30
  %v59 = vunpack.c.l.b16 %v31
  %v60 = vunpack.c.l.b16 %v32
  %v61 = vunpack.c.l.b16 %v33
  %v62 = vunpack.c.l.b16 %v34
  %v63 = vpack.c.b16 %v56, %v55
  %v64 = vpack.c.b16 %v58, %v57
  %v65 = vpack.c.b16 %v60, %v59
  %v66 = vpack.c.b16 %v62, %v61
  %vm71 = vcmask 523264
  %v73 = vsel %vm71, %v46, 0
  %75 = vmatprep.subr.bf16.mxu0 0
  %76 = vmatpush1.bf16.msra.mxu0 0
  %77 = vmatprep.subr.bf16.mxu0 0
  %78 = vmatpush1.bf16.msra.mxu0 0
  %79 = vmatprep.subr.bf16.mxu0 0
  %80 = vmatpush1.bf16.msra.mxu0 0
  %81 = vmatprep.subr.bf16.mxu0 0
  %82 = vmatpush1.bf16.msra.mxu0 0
  %83 = vmatprep.subr.bf16.mxu0 0
  %84 = vmatpush1.bf16.msra.mxu0 %v66
  %85 = vmatprep.subr.bf16.mxu0 0
  %86 = vmatpush1.bf16.msra.mxu0 %v65
  %87 = vmatprep.subr.bf16.mxu0 0
  %88 = vmatpush1.bf16.msra.mxu0 %v64
  %89 = vmatprep.subr.bf16.mxu0 0
  %90 = vmatpush1.bf16.msra.mxu0 %v63
  %91 = vmatprep.subr.bf16.mxu0 0
  %92 = vmatpush2.bf16.msra.mxu0 0
  %93 = vmatprep.subr.bf16.mxu0 0
  %94 = vmatpush2.bf16.msra.mxu0 0
  %95 = vmatprep.subr.bf16.mxu0 0
  %96 = vmatpush2.bf16.msra.mxu0 0
  %97 = vmatprep.subr.bf16.mxu0 0
  %98 = vmatpush2.bf16.msra.mxu0 0
  %99 = vmatprep.subr.bf16.mxu0 0
  %100 = vmatpush2.bf16.msra.mxu0 0
  %101 = vmatprep.subr.bf16.mxu0 0
  %102 = vmatpush2.bf16.msra.mxu0 0
  %103 = vmatprep.subr.bf16.mxu0 0
  %104 = vmatpush2.bf16.msra.mxu0 0
  %105 = vmatprep.subr.bf16.mxu0 0
  %106 = vmatpush2.bf16.msra.mxu0 0
  %107 = vmatprep.mubr.bf16.mxu0 0
  %108 = vmatmul.mubr.bf16.gmra.mxu0 %v73
  %v109 = vpop.f32.mrf.mxu0
  %v110 = vadd.f32 0.0, %v109
  %v111 = vpop.f32.mrf.mxu0
  %v112 = vpop.f32.mrf.mxu0
  %v113 = vpop.f32.mrf.mxu0
  %114 = vdwg.mxu0
  %v123 = vunpack.c.l.b16 %v17
  %v124 = vunpack.c.l.b16 %v18
  %v125 = vunpack.c.l.b16 %v19
  %v126 = vunpack.c.l.b16 %v20
  %v127 = vunpack.c.l.b16 %v21
  %v128 = vunpack.c.l.b16 %v22
  %v129 = vunpack.c.l.b16 %v23
  %v130 = vunpack.c.l.b16 %v24
  %v131 = vpack.c.b16 %v124, %v123
  %v132 = vpack.c.b16 %v126, %v125
  %v133 = vpack.c.b16 %v128, %v127
  %v134 = vpack.c.b16 %v130, %v129
  %v140 = vsel %vm71, %v16, 0
  %142 = vmatprep.subr.bf16.mxu0 0
  %143 = vmatpush1.bf16.msra.mxu0 0
  %144 = vmatprep.subr.bf16.mxu0 0
  %145 = vmatpush1.bf16.msra.mxu0 0
  %146 = vmatprep.subr.bf16.mxu0 0
  %147 = vmatpush1.bf16.msra.mxu0 0
  %148 = vmatprep.subr.bf16.mxu0 0
  %149 = vmatpush1.bf16.msra.mxu0 0
  %150 = vmatprep.subr.bf16.mxu0 0
  %151 = vmatpush1.bf16.msra.mxu0 %v134
  %152 = vmatprep.subr.bf16.mxu0 0
  %153 = vmatpush1.bf16.msra.mxu0 %v133
  %154 = vmatprep.subr.bf16.mxu0 0
  %155 = vmatpush1.bf16.msra.mxu0 %v132
  %156 = vmatprep.subr.bf16.mxu0 0
  %157 = vmatpush1.bf16.msra.mxu0 %v131
  %158 = vmatprep.subr.bf16.mxu0 0
  %159 = vmatpush2.bf16.msra.mxu0 0
  %160 = vmatprep.subr.bf16.mxu0 0
  %161 = vmatpush2.bf16.msra.mxu0 0
  %162 = vmatprep.subr.bf16.mxu0 0
  %163 = vmatpush2.bf16.msra.mxu0 0
  %164 = vmatprep.subr.bf16.mxu0 0
  %165 = vmatpush2.bf16.msra.mxu0 0
  %166 = vmatprep.subr.bf16.mxu0 0
  %167 = vmatpush2.bf16.msra.mxu0 0
  %168 = vmatprep.subr.bf16.mxu0 0
  %169 = vmatpush2.bf16.msra.mxu0 0
  %170 = vmatprep.subr.bf16.mxu0 0
  %171 = vmatpush2.bf16.msra.mxu0 0
  %172 = vmatprep.subr.bf16.mxu0 0
  %173 = vmatpush2.bf16.msra.mxu0 0
  %174 = vmatprep.mubr.bf16.mxu0 0
  %175 = vmatmul.mubr.bf16.gmra.mxu0 %v140
  %v176 = vpop.f32.mrf.mxu0
  %v177 = vadd.f32 %v110, %v176
  %v178 = vpop.f32.mrf.mxu0
  %v179 = vpop.f32.mrf.mxu0
  %v180 = vpop.f32.mrf.mxu0
  %181 = vdwg.mxu0
  %v182 = vld [vmem:[%s0] sm:$0xe]
  %s183 = scalar_lea.vmem %s1, 64
  %v184 = vld [vmem:[%s183] sm:$0xf]
  %v185 = vld [vmem:[%s183 + $0x4] sm:$0xf]
  %v186 = vld [vmem:[%s183 + $0x8] sm:$0xf]
  %v187 = vld [vmem:[%s183 + $0xc] sm:$0xf]
  %v188 = vld [vmem:[%s183 + $0x10] sm:$0xf]
  %v189 = vld [vmem:[%s183 + $0x14] sm:$0xf]
  %v190 = vld [vmem:[%s183 + $0x18] sm:$0xf]
  %v191 = vld [vmem:[%s183 + $0x1c] sm:$0xf]
  %v193 = vunpack.c.l.b16 %v182
  %v194 = vpack.c.b16 %v38, %v193
  %v195 = vrot.slane %v194, 1
  %v204 = vunpack.c.l.b16 %v184
  %v205 = vunpack.c.l.b16 %v185
  %v206 = vunpack.c.l.b16 %v186
  %v207 = vunpack.c.l.b16 %v187
  %v208 = vunpack.c.l.b16 %v188
  %v209 = vunpack.c.l.b16 %v189
  %v210 = vunpack.c.l.b16 %v190
  %v211 = vunpack.c.l.b16 %v191
  %v212 = vpack.c.b16 %v205, %v204
  %v213 = vpack.c.b16 %v207, %v206
  %v214 = vpack.c.b16 %v209, %v208
  %v215 = vpack.c.b16 %v211, %v210
  %v221 = vsel %vm71, %v195, 0
  %223 = vmatprep.subr.bf16.mxu0 0
  %224 = vmatpush1.bf16.msra.mxu0 0
  %225 = vmatprep.subr.bf16.mxu0 0
  %226 = vmatpush1.bf16.msra.mxu0 0
  %227 = vmatprep.subr.bf16.mxu0 0
  %228 = vmatpush1.bf16.msra.mxu0 0
  %229 = vmatprep.subr.bf16.mxu0 0
  %230 = vmatpush1.bf16.msra.mxu0 0
  %231 = vmatprep.subr.bf16.mxu0 0
  %232 = vmatpush1.bf16.msra.mxu0 %v215
  %233 = vmatprep.subr.bf16.mxu0 0
  %234 = vmatpush1.bf16.msra.mxu0 %v214
  %235 = vmatprep.subr.bf16.mxu0 0
  %236 = vmatpush1.bf16.msra.mxu0 %v213
  %237 = vmatprep.subr.bf16.mxu0 0
  %238 = vmatpush1.bf16.msra.mxu0 %v212
  %239 = vmatprep.subr.bf16.mxu0 0
  %240 = vmatpush2.bf16.msra.mxu0 0
  %241 = vmatprep.subr.bf16.mxu0 0
  %242 = vmatpush2.bf16.msra.mxu0 0
  %243 = vmatprep.subr.bf16.mxu0 0
  %244 = vmatpush2.bf16.msra.mxu0 0
  %245 = vmatprep.subr.bf16.mxu0 0
  %246 = vmatpush2.bf16.msra.mxu0 0
  %247 = vmatprep.subr.bf16.mxu0 0
  %248 = vmatpush2.bf16.msra.mxu0 0
  %249 = vmatprep.subr.bf16.mxu0 0
  %250 = vmatpush2.bf16.msra.mxu0 0
  %251 = vmatprep.subr.bf16.mxu0 0
  %252 = vmatpush2.bf16.msra.mxu0 0
  %253 = vmatprep.subr.bf16.mxu0 0
  %254 = vmatpush2.bf16.msra.mxu0 0
  %255 = vmatprep.mubr.bf16.mxu0 0
  %256 = vmatmul.mubr.bf16.gmra.mxu0 %v221
  %v257 = vpop.f32.mrf.mxu0
  %v258 = vadd.f32 0.0, %v257
  %v259 = vpop.f32.mrf.mxu0
  %v260 = vpop.f32.mrf.mxu0
  %v261 = vpop.f32.mrf.mxu0
  %262 = vdwg.mxu0
  %v263 = vadd.f32 %v177, %v258
  %v264 = vld [vmem:[%s0] sm:$0xc]
  %v265 = vld [vmem:[%s0 + $0x4] sm:$0x3]
  %s266 = scalar_lea.vmem %s1, 96
  %v267 = vld [vmem:[%s266] sm:$0xf]
  %v268 = vld [vmem:[%s266 + $0x4] sm:$0xf]
  %v269 = vld [vmem:[%s266 + $0x8] sm:$0xf]
  %v270 = vld [vmem:[%s266 + $0xc] sm:$0xf]
  %v271 = vld [vmem:[%s266 + $0x10] sm:$0xf]
  %v272 = vld [vmem:[%s266 + $0x14] sm:$0xf]
  %v273 = vld [vmem:[%s266 + $0x18] sm:$0xf]
  %v274 = vld [vmem:[%s266 + $0x1c] sm:$0xf]
  %v277 = vunpack.c.l.b16 %v264
  %v278 = vunpack.c.l.b16 %v265
  %v279 = vpack.c.b16 %v278, %v277
  %v280 = vrot.slane %v279, 2
  %v289 = vunpack.c.l.b16 %v267
  %v290 = vunpack.c.l.b16 %v268
  %v291 = vunpack.c.l.b16 %v269
  %v292 = vunpack.c.l.b16 %v270
  %v293 = vunpack.c.l.b16 %v271
  %v294 = vunpack.c.l.b16 %v272
  %v295 = vunpack.c.l.b16 %v273
  %v296 = vunpack.c.l.b16 %v274
  %v297 = vpack.c.b16 %v290, %v289
  %v298 = vpack.c.b16 %v292, %v291
  %v299 = vpack.c.b16 %v294, %v293
  %v300 = vpack.c.b16 %v296, %v295
  %v306 = vsel %vm71, %v280, 0
  %308 = vmatprep.subr.bf16.mxu0 0
  %309 = vmatpush1.bf16.msra.mxu0 0
  %310 = vmatprep.subr.bf16.mxu0 0
  %311 = vmatpush1.bf16.msra.mxu0 0
  %312 = vmatprep.subr.bf16.mxu0 0
  %313 = vmatpush1.bf16.msra.mxu0 0
  %314 = vmatprep.subr.bf16.mxu0 0
  %315 = vmatpush1.bf16.msra.mxu0 0
  %316 = vmatprep.subr.bf16.mxu0 0
  %317 = vmatpush1.bf16.msra.mxu0 %v300
  %318 = vmatprep.subr.bf16.mxu0 0
  %319 = vmatpush1.bf16.msra.mxu0 %v299
  %320 = vmatprep.subr.bf16.mxu0 0
  %321 = vmatpush1.bf16.msra.mxu0 %v298
  %322 = vmatprep.subr.bf16.mxu0 0
  %323 = vmatpush1.bf16.msra.mxu0 %v297
  %324 = vmatprep.subr.bf16.mxu0 0
  %325 = vmatpush2.bf16.msra.mxu0 0
  %326 = vmatprep.subr.bf16.mxu0 0
  %327 = vmatpush2.bf16.msra.mxu0 0
  %328 = vmatprep.subr.bf16.mxu0 0
  %329 = vmatpush2.bf16.msra.mxu0 0
  %330 = vmatprep.subr.bf16.mxu0 0
  %331 = vmatpush2.bf16.msra.mxu0 0
  %332 = vmatprep.subr.bf16.mxu0 0
  %333 = vmatpush2.bf16.msra.mxu0 0
  %334 = vmatprep.subr.bf16.mxu0 0
  %335 = vmatpush2.bf16.msra.mxu0 0
  %336 = vmatprep.subr.bf16.mxu0 0
  %337 = vmatpush2.bf16.msra.mxu0 0
  %338 = vmatprep.subr.bf16.mxu0 0
  %339 = vmatpush2.bf16.msra.mxu0 0
  %340 = vmatprep.mubr.bf16.mxu0 0
  %341 = vmatmul.mubr.bf16.gmra.mxu0 %v306
  %v342 = vpop.f32.mrf.mxu0
  %v343 = vadd.f32 0.0, %v342
  %v344 = vpop.f32.mrf.mxu0
  %v345 = vpop.f32.mrf.mxu0
  %v346 = vpop.f32.mrf.mxu0
  %347 = vdwg.mxu0
  %v348 = vadd.f32 %v263, %v343
  %v349 = vld [vmem:[%s0 + $0x4] sm:$0x7]
  %s350 = scalar_lea.vmem %s1, 128
  %v351 = vld [vmem:[%s350] sm:$0xf]
  %v352 = vld [vmem:[%s350 + $0x4] sm:$0xf]
  %v353 = vld [vmem:[%s350 + $0x8] sm:$0xf]
  %v354 = vld [vmem:[%s350 + $0xc] sm:$0xf]
  %v355 = vld [vmem:[%s350 + $0x10] sm:$0xf]
  %v356 = vld [vmem:[%s350 + $0x14] sm:$0xf]
  %v357 = vld [vmem:[%s350 + $0x18] sm:$0xf]
  %v358 = vld [vmem:[%s350 + $0x1c] sm:$0xf]
  %v360 = vunpack.c.l.b16 %v349
  %v361 = vpack.c.b16 %v360, %v277
  %v363 = vshrl.u32 %v361, 16
  %v365 = vrot.slane %v363, 2
  %v366 = vshll.u32 %v361, 16
  %v368 = vrot.slane %v366, 3
  %v369 = vor.u32 %v365, %v368
  %v378 = vunpack.c.l.b16 %v351
  %v379 = vunpack.c.l.b16 %v352
  %v380 = vunpack.c.l.b16 %v353
  %v381 = vunpack.c.l.b16 %v354
  %v382 = vunpack.c.l.b16 %v355
  %v383 = vunpack.c.l.b16 %v356
  %v384 = vunpack.c.l.b16 %v357
  %v385 = vunpack.c.l.b16 %v358
  %v386 = vpack.c.b16 %v379, %v378
  %v387 = vpack.c.b16 %v381, %v380
  %v388 = vpack.c.b16 %v383, %v382
  %v389 = vpack.c.b16 %v385, %v384
  %v395 = vsel %vm71, %v369, 0
  %397 = vmatprep.subr.bf16.mxu0 0
  %398 = vmatpush1.bf16.msra.mxu0 0
  %399 = vmatprep.subr.bf16.mxu0 0
  %400 = vmatpush1.bf16.msra.mxu0 0
  %401 = vmatprep.subr.bf16.mxu0 0
  %402 = vmatpush1.bf16.msra.mxu0 0
  %403 = vmatprep.subr.bf16.mxu0 0
  %404 = vmatpush1.bf16.msra.mxu0 0
  %405 = vmatprep.subr.bf16.mxu0 0
  %406 = vmatpush1.bf16.msra.mxu0 %v389
  %407 = vmatprep.subr.bf16.mxu0 0
  %408 = vmatpush1.bf16.msra.mxu0 %v388
  %409 = vmatprep.subr.bf16.mxu0 0
  %410 = vmatpush1.bf16.msra.mxu0 %v387
  %411 = vmatprep.subr.bf16.mxu0 0
  %412 = vmatpush1.bf16.msra.mxu0 %v386
  %413 = vmatprep.subr.bf16.mxu0 0
  %414 = vmatpush2.bf16.msra.mxu0 0
  %415 = vmatprep.subr.bf16.mxu0 0
  %416 = vmatpush2.bf16.msra.mxu0 0
  %417 = vmatprep.subr.bf16.mxu0 0
  %418 = vmatpush2.bf16.msra.mxu0 0
  %419 = vmatprep.subr.bf16.mxu0 0
  %420 = vmatpush2.bf16.msra.mxu0 0
  %421 = vmatprep.subr.bf16.mxu0 0
  %422 = vmatpush2.bf16.msra.mxu0 0
  %423 = vmatprep.subr.bf16.mxu0 0
  %424 = vmatpush2.bf16.msra.mxu0 0
  %425 = vmatprep.subr.bf16.mxu0 0
  %426 = vmatpush2.bf16.msra.mxu0 0
  %427 = vmatprep.subr.bf16.mxu0 0
  %428 = vmatpush2.bf16.msra.mxu0 0
  %429 = vmatprep.mubr.bf16.mxu0 0
  %430 = vmatmul.mubr.bf16.gmra.mxu0 %v395
  %v431 = vpop.f32.mrf.mxu0
  %v432 = vadd.f32 0.0, %v431
  %v433 = vpop.f32.mrf.mxu0
  %v434 = vpop.f32.mrf.mxu0
  %v435 = vpop.f32.mrf.mxu0
  %436 = vdwg.mxu0
  %v437 = vadd.f32 %v348, %v432
  %v438 = vld [vmem:[%s0] sm:$0x8]
  %s439 = scalar_lea.vmem %s1, 160
  %v440 = vld [vmem:[%s439] sm:$0xf]
  %v441 = vld [vmem:[%s439 + $0x4] sm:$0xf]
  %v442 = vld [vmem:[%s439 + $0x8] sm:$0xf]
  %v443 = vld [vmem:[%s439 + $0xc] sm:$0xf]
  %v444 = vld [vmem:[%s439 + $0x10] sm:$0xf]
  %v445 = vld [vmem:[%s439 + $0x14] sm:$0xf]
  %v446 = vld [vmem:[%s439 + $0x18] sm:$0xf]
  %v447 = vld [vmem:[%s439 + $0x1c] sm:$0xf]
  %v449 = vunpack.c.l.b16 %v438
  %v450 = vpack.c.b16 %v360, %v449
  %v451 = vrot.slane %v450, 3
  %v460 = vunpack.c.l.b16 %v440
  %v461 = vunpack.c.l.b16 %v441
  %v462 = vunpack.c.l.b16 %v442
  %v463 = vunpack.c.l.b16 %v443
  %v464 = vunpack.c.l.b16 %v444
  %v465 = vunpack.c.l.b16 %v445
  %v466 = vunpack.c.l.b16 %v446
  %v467 = vunpack.c.l.b16 %v447
  %v468 = vpack.c.b16 %v461, %v460
  %v469 = vpack.c.b16 %v463, %v462
  %v470 = vpack.c.b16 %v465, %v464
  %v471 = vpack.c.b16 %v467, %v466
  %v477 = vsel %vm71, %v451, 0
  %479 = vmatprep.subr.bf16.mxu0 0
  %480 = vmatpush1.bf16.msra.mxu0 0
  %481 = vmatprep.subr.bf16.mxu0 0
  %482 = vmatpush1.bf16.msra.mxu0 0
  %483 = vmatprep.subr.bf16.mxu0 0
  %484 = vmatpush1.bf16.msra.mxu0 0
  %485 = vmatprep.subr.bf16.mxu0 0
  %486 = vmatpush1.bf16.msra.mxu0 0
  %487 = vmatprep.subr.bf16.mxu0 0
  %488 = vmatpush1.bf16.msra.mxu0 %v471
  %489 = vmatprep.subr.bf16.mxu0 0
  %490 = vmatpush1.bf16.msra.mxu0 %v470
  %491 = vmatprep.subr.bf16.mxu0 0
  %492 = vmatpush1.bf16.msra.mxu0 %v469
  %493 = vmatprep.subr.bf16.mxu0 0
  %494 = vmatpush1.bf16.msra.mxu0 %v468
  %495 = vmatprep.subr.bf16.mxu0 0
  %496 = vmatpush2.bf16.msra.mxu0 0
  %497 = vmatprep.subr.bf16.mxu0 0
  %498 = vmatpush2.bf16.msra.mxu0 0
  %499 = vmatprep.subr.bf16.mxu0 0
  %500 = vmatpush2.bf16.msra.mxu0 0
  %501 = vmatprep.subr.bf16.mxu0 0
  %502 = vmatpush2.bf16.msra.mxu0 0
  %503 = vmatprep.subr.bf16.mxu0 0
  %504 = vmatpush2.bf16.msra.mxu0 0
  %505 = vmatprep.subr.bf16.mxu0 0
  %506 = vmatpush2.bf16.msra.mxu0 0
  %507 = vmatprep.subr.bf16.mxu0 0
  %508 = vmatpush2.bf16.msra.mxu0 0
  %509 = vmatprep.subr.bf16.mxu0 0
  %510 = vmatpush2.bf16.msra.mxu0 0
  %511 = vmatprep.mubr.bf16.mxu0 0
  %512 = vmatmul.mubr.bf16.gmra.mxu0 %v477
  %v513 = vpop.f32.mrf.mxu0
  %v514 = vadd.f32 0.0, %v513
  %v515 = vpop.f32.mrf.mxu0
  %v516 = vpop.f32.mrf.mxu0
  %v517 = vpop.f32.mrf.mxu0
  %518 = vdwg.mxu0
  %v519 = vadd.f32 %v437, %v514
  %v520 = vld [vmem:[%s0 + $0x4] sm:$0xf]
  %s521 = scalar_lea.vmem %s1, 192
  %v522 = vld [vmem:[%s521] sm:$0xf]
  %v523 = vld [vmem:[%s521 + $0x4] sm:$0xf]
  %v524 = vld [vmem:[%s521 + $0x8] sm:$0xf]
  %v525 = vld [vmem:[%s521 + $0xc] sm:$0xf]
  %v526 = vld [vmem:[%s521 + $0x10] sm:$0xf]
  %v527 = vld [vmem:[%s521 + $0x14] sm:$0xf]
  %v528 = vld [vmem:[%s521 + $0x18] sm:$0xf]
  %v529 = vld [vmem:[%s521 + $0x1c] sm:$0xf]
  %v538 = vunpack.c.l.b16 %v522
  %v539 = vunpack.c.l.b16 %v523
  %v540 = vunpack.c.l.b16 %v524
  %v541 = vunpack.c.l.b16 %v525
  %v542 = vunpack.c.l.b16 %v526
  %v543 = vunpack.c.l.b16 %v527
  %v544 = vunpack.c.l.b16 %v528
  %v545 = vunpack.c.l.b16 %v529
  %v546 = vpack.c.b16 %v539, %v538
  %v547 = vpack.c.b16 %v541, %v540
  %v548 = vpack.c.b16 %v543, %v542
  %v549 = vpack.c.b16 %v545, %v544
  %v555 = vsel %vm71, %v520, 0
  %557 = vmatprep.subr.bf16.mxu0 0
  %558 = vmatpush1.bf16.msra.mxu0 0
  %559 = vmatprep.subr.bf16.mxu0 0
  %560 = vmatpush1.bf16.msra.mxu0 0
  %561 = vmatprep.subr.bf16.mxu0 0
  %562 = vmatpush1.bf16.msra.mxu0 0
  %563 = vmatprep.subr.bf16.mxu0 0
  %564 = vmatpush1.bf16.msra.mxu0 0
  %565 = vmatprep.subr.bf16.mxu0 0
  %566 = vmatpush1.bf16.msra.mxu0 %v549
  %567 = vmatprep.subr.bf16.mxu0 0
  %568 = vmatpush1.bf16.msra.mxu0 %v548
  %569 = vmatprep.subr.bf16.mxu0 0
  %570 = vmatpush1.bf16.msra.mxu0 %v547
  %571 = vmatprep.subr.bf16.mxu0 0
  %572 = vmatpush1.bf16.msra.mxu0 %v546
  %573 = vmatprep.subr.bf16.mxu0 0
  %574 = vmatpush2.bf16.msra.mxu0 0
  %575 = vmatprep.subr.bf16.mxu0 0
  %576 = vmatpush2.bf16.msra.mxu0 0
  %577 = vmatprep.subr.bf16.mxu0 0
  %578 = vmatpush2.bf16.msra.mxu0 0
  %579 = vmatprep.subr.bf16.mxu0 0
  %580 = vmatpush2.bf16.msra.mxu0 0
  %581 = vmatprep.subr.bf16.mxu0 0
  %582 = vmatpush2.bf16.msra.mxu0 0
  %583 = vmatprep.subr.bf16.mxu0 0
  %584 = vmatpush2.bf16.msra.mxu0 0
  %585 = vmatprep.subr.bf16.mxu0 0
  %586 = vmatpush2.bf16.msra.mxu0 0
  %587 = vmatprep.subr.bf16.mxu0 0
  %588 = vmatpush2.bf16.msra.mxu0 0
  %589 = vmatprep.mubr.bf16.mxu0 0
  %590 = vmatmul.mubr.bf16.gmra.mxu0 %v555
  %v591 = vpop.f32.mrf.mxu0
  %v592 = vadd.f32 0.0, %v591
  %v593 = vpop.f32.mrf.mxu0
  %v594 = vpop.f32.mrf.mxu0
  %v595 = vpop.f32.mrf.mxu0
  %596 = vdwg.mxu0
  %v597 = vadd.f32 %v519, %v592
  %v598 = vld [vmem:[%s0 + $0x4] sm:$0xf]
  %v599 = vld [vmem:[%s0 + $0x8] sm:$0x1]
  %s600 = scalar_lea.vmem %s1, 224
  %v601 = vld [vmem:[%s600] sm:$0xf]
  %v602 = vld [vmem:[%s600 + $0x4] sm:$0xf]
  %v603 = vld [vmem:[%s600 + $0x8] sm:$0xf]
  %v604 = vld [vmem:[%s600 + $0xc] sm:$0xf]
  %v605 = vld [vmem:[%s600 + $0x10] sm:$0xf]
  %v606 = vld [vmem:[%s600 + $0x14] sm:$0xf]
  %v607 = vld [vmem:[%s600 + $0x18] sm:$0xf]
  %v608 = vld [vmem:[%s600 + $0x1c] sm:$0xf]
  %v611 = vunpack.c.l.b16 %v598
  %v612 = vunpack.c.l.b16 %v599
  %v613 = vpack.c.b16 %v612, %v611
  %v615 = vshrl.u32 %v613, 16
  %v617 = vshll.u32 %v613, 16
  %v619 = vrot.slane %v617, 1
  %v620 = vor.u32 %v615, %v619
  %v629 = vunpack.c.l.b16 %v601
  %v630 = vunpack.c.l.b16 %v602
  %v631 = vunpack.c.l.b16 %v603
  %v632 = vunpack.c.l.b16 %v604
  %v633 = vunpack.c.l.b16 %v605
  %v634 = vunpack.c.l.b16 %v606
  %v635 = vunpack.c.l.b16 %v607
  %v636 = vunpack.c.l.b16 %v608
  %v637 = vpack.c.b16 %v630, %v629
  %v638 = vpack.c.b16 %v632, %v631
  %v639 = vpack.c.b16 %v634, %v633
  %v640 = vpack.c.b16 %v636, %v635
  %v646 = vsel %vm71, %v620, 0
  %648 = vmatprep.subr.bf16.mxu0 0
  %649 = vmatpush1.bf16.msra.mxu0 0
  %650 = vmatprep.subr.bf16.mxu0 0
  %651 = vmatpush1.bf16.msra.mxu0 0
  %652 = vmatprep.subr.bf16.mxu0 0
  %653 = vmatpush1.bf16.msra.mxu0 0
  %654 = vmatprep.subr.bf16.mxu0 0
  %655 = vmatpush1.bf16.msra.mxu0 0
  %656 = vmatprep.subr.bf16.mxu0 0
  %657 = vmatpush1.bf16.msra.mxu0 %v640
  %658 = vmatprep.subr.bf16.mxu0 0
  %659 = vmatpush1.bf16.msra.mxu0 %v639
  %660 = vmatprep.subr.bf16.mxu0 0
  %661 = vmatpush1.bf16.msra.mxu0 %v638
  %662 = vmatprep.subr.bf16.mxu0 0
  %663 = vmatpush1.bf16.msra.mxu0 %v637
  %664 = vmatprep.subr.bf16.mxu0 0
  %665 = vmatpush2.bf16.msra.mxu0 0
  %666 = vmatprep.subr.bf16.mxu0 0
  %667 = vmatpush2.bf16.msra.mxu0 0
  %668 = vmatprep.subr.bf16.mxu0 0
  %669 = vmatpush2.bf16.msra.mxu0 0
  %670 = vmatprep.subr.bf16.mxu0 0
  %671 = vmatpush2.bf16.msra.mxu0 0
  %672 = vmatprep.subr.bf16.mxu0 0
  %673 = vmatpush2.bf16.msra.mxu0 0
  %674 = vmatprep.subr.bf16.mxu0 0
  %675 = vmatpush2.bf16.msra.mxu0 0
  %676 = vmatprep.subr.bf16.mxu0 0
  %677 = vmatpush2.bf16.msra.mxu0 0
  %678 = vmatprep.subr.bf16.mxu0 0
  %679 = vmatpush2.bf16.msra.mxu0 0
  %680 = vmatprep.mubr.bf16.mxu0 0
  %681 = vmatmul.mubr.bf16.gmra.mxu0 %v646
  %v682 = vpop.f32.mrf.mxu0
  %v683 = vadd.f32 0.0, %v682
  %v684 = vpop.f32.mrf.mxu0
  %v685 = vpop.f32.mrf.mxu0
  %v686 = vpop.f32.mrf.mxu0
  %687 = vdwg.mxu0
  %v688 = vadd.f32 %v597, %v683
  %v689 = vld [vmem:[%s0 + $0x4] sm:$0xe]
  %s690 = scalar_lea.vmem %s1, 256
  %v691 = vld [vmem:[%s690] sm:$0xf]
  %v692 = vld [vmem:[%s690 + $0x4] sm:$0xf]
  %v693 = vld [vmem:[%s690 + $0x8] sm:$0xf]
  %v694 = vld [vmem:[%s690 + $0xc] sm:$0xf]
  %v695 = vld [vmem:[%s690 + $0x10] sm:$0xf]
  %v696 = vld [vmem:[%s690 + $0x14] sm:$0xf]
  %v697 = vld [vmem:[%s690 + $0x18] sm:$0xf]
  %v698 = vld [vmem:[%s690 + $0x1c] sm:$0xf]
  %v700 = vunpack.c.l.b16 %v689
  %v701 = vpack.c.b16 %v612, %v700
  %v702 = vrot.slane %v701, 1
  %v711 = vunpack.c.l.b16 %v691
  %v712 = vunpack.c.l.b16 %v692
  %v713 = vunpack.c.l.b16 %v693
  %v714 = vunpack.c.l.b16 %v694
  %v715 = vunpack.c.l.b16 %v695
  %v716 = vunpack.c.l.b16 %v696
  %v717 = vunpack.c.l.b16 %v697
  %v718 = vunpack.c.l.b16 %v698
  %v719 = vpack.c.b16 %v712, %v711
  %v720 = vpack.c.b16 %v714, %v713
  %v721 = vpack.c.b16 %v716, %v715
  %v722 = vpack.c.b16 %v718, %v717
  %v728 = vsel %vm71, %v702, 0
  %730 = vmatprep.subr.bf16.mxu0 0
  %731 = vmatpush1.bf16.msra.mxu0 0
  %732 = vmatprep.subr.bf16.mxu0 0
  %733 = vmatpush1.bf16.msra.mxu0 0
  %734 = vmatprep.subr.bf16.mxu0 0
  %735 = vmatpush1.bf16.msra.mxu0 0
  %736 = vmatprep.subr.bf16.mxu0 0
  %737 = vmatpush1.bf16.msra.mxu0 0
  %738 = vmatprep.subr.bf16.mxu0 0
  %739 = vmatpush1.bf16.msra.mxu0 %v722
  %740 = vmatprep.subr.bf16.mxu0 0
  %741 = vmatpush1.bf16.msra.mxu0 %v721
  %742 = vmatprep.subr.bf16.mxu0 0
  %743 = vmatpush1.bf16.msra.mxu0 %v720
  %744 = vmatprep.subr.bf16.mxu0 0
  %745 = vmatpush1.bf16.msra.mxu0 %v719
  %746 = vmatprep.subr.bf16.mxu0 0
  %747 = vmatpush2.bf16.msra.mxu0 0
  %748 = vmatprep.subr.bf16.mxu0 0
  %749 = vmatpush2.bf16.msra.mxu0 0
  %750 = vmatprep.subr.bf16.mxu0 0
  %751 = vmatpush2.bf16.msra.mxu0 0
  %752 = vmatprep.subr.bf16.mxu0 0
  %753 = vmatpush2.bf16.msra.mxu0 0
  %754 = vmatprep.subr.bf16.mxu0 0
  %755 = vmatpush2.bf16.msra.mxu0 0
  %756 = vmatprep.subr.bf16.mxu0 0
  %757 = vmatpush2.bf16.msra.mxu0 0
  %758 = vmatprep.subr.bf16.mxu0 0
  %759 = vmatpush2.bf16.msra.mxu0 0
  %760 = vmatprep.subr.bf16.mxu0 0
  %761 = vmatpush2.bf16.msra.mxu0 0
  %762 = vmatprep.mubr.bf16.mxu0 0
  %763 = vmatmul.mubr.bf16.gmra.mxu0 %v728
  %v764 = vpop.f32.mrf.mxu0
  %v765 = vadd.f32 0.0, %v764
  %v766 = vpop.f32.mrf.mxu0
  %v767 = vpop.f32.mrf.mxu0
  %v768 = vpop.f32.mrf.mxu0
  %769 = vdwg.mxu0
  %v770 = vadd.f32 %v688, %v765
  %v772 = vlaneseq
  %v773 = vshrl.u32 %v772, 7
  %v774 = vsub.s32 0, %v773
  %v775 = vrot.slane %v15, %v774
  %v777 = vadd.f32 %v770, %v775
  %v778 = vmax.f32 %v777, 0.0
  %v779 = vpack.c.bf16 %v778, %v778
  %vm780 = vcmask 519168
  %781 = vst.msk [vmem:[%s3] sm:$0xf] %vm780, %v779
  %s782 = scalar_lea.vmem %s0, 12
  %v783 = vld [vmem:[%s782] sm:$0xf]
  %v784 = vld [vmem:[%s1] sm:$0xf]
  %v785 = vld [vmem:[%s1 + $0x4] sm:$0xf]
  %v786 = vld [vmem:[%s1 + $0x8] sm:$0xf]
  %v787 = vld [vmem:[%s1 + $0xc] sm:$0xf]
  %v788 = vld [vmem:[%s1 + $0x10] sm:$0xf]
  %v789 = vld [vmem:[%s1 + $0x14] sm:$0xf]
  %v790 = vld [vmem:[%s1 + $0x18] sm:$0xf]
  %v791 = vld [vmem:[%s1 + $0x1c] sm:$0xf]
  %v792 = vld [vmem:[%s782 + $0x4] sm:$0x1]
  %v793 = vld [vmem:[%s26] sm:$0xf]
  %v794 = vld [vmem:[%s26 + $0x4] sm:$0xf]
  %v795 = vld [vmem:[%s26 + $0x8] sm:$0xf]
  %v796 = vld [vmem:[%s26 + $0xc] sm:$0xf]
  %v797 = vld [vmem:[%s26 + $0x10] sm:$0xf]
  %v798 = vld [vmem:[%s26 + $0x14] sm:$0xf]
  %v799 = vld [vmem:[%s26 + $0x18] sm:$0xf]
  %v800 = vld [vmem:[%s26 + $0x1c] sm:$0xf]
  %v803 = vunpack.c.l.b16 %v783
  %v804 = vunpack.c.l.b16 %v792
  %v805 = vpack.c.b16 %v804, %v803
  %v807 = vshrl.u32 %v805, 16
  %v809 = vshll.u32 %v805, 16
  %v811 = vrot.slane %v809, 1
  %v812 = vor.u32 %v807, %v811
  %v821 = vunpack.c.l.b16 %v793
  %v822 = vunpack.c.l.b16 %v794
  %v823 = vunpack.c.l.b16 %v795
  %v824 = vunpack.c.l.b16 %v796
  %v825 = vunpack.c.l.b16 %v797
  %v826 = vunpack.c.l.b16 %v798
  %v827 = vunpack.c.l.b16 %v799
  %v828 = vunpack.c.l.b16 %v800
  %v829 = vpack.c.b16 %v822, %v821
  %v830 = vpack.c.b16 %v824, %v823
  %v831 = vpack.c.b16 %v826, %v825
  %v832 = vpack.c.b16 %v828, %v827
  %v838 = vsel %vm71, %v812, 0
  %840 = vmatprep.subr.bf16.mxu0 0
  %841 = vmatpush1.bf16.msra.mxu0 0
  %842 = vmatprep.subr.bf16.mxu0 0
  %843 = vmatpush1.bf16.msra.mxu0 0
  %844 = vmatprep.subr.bf16.mxu0 0
  %845 = vmatpush1.bf16.msra.mxu0 0
  %846 = vmatprep.subr.bf16.mxu0 0
  %847 = vmatpush1.bf16.msra.mxu0 0
  %848 = vmatprep.subr.bf16.mxu0 0
  %849 = vmatpush1.bf16.msra.mxu0 %v832
  %850 = vmatprep.subr.bf16.mxu0 0
  %851 = vmatpush1.bf16.msra.mxu0 %v831
  %852 = vmatprep.subr.bf16.mxu0 0
  %853 = vmatpush1.bf16.msra.mxu0 %v830
  %854 = vmatprep.subr.bf16.mxu0 0
  %855 = vmatpush1.bf16.msra.mxu0 %v829
  %856 = vmatprep.subr.bf16.mxu0 0
  %857 = vmatpush2.bf16.msra.mxu0 0
  %858 = vmatprep.subr.bf16.mxu0 0
  %859 = vmatpush2.bf16.msra.mxu0 0
  %860 = vmatprep.subr.bf16.mxu0 0
  %861 = vmatpush2.bf16.msra.mxu0 0
  %862 = vmatprep.subr.bf16.mxu0 0
  %863 = vmatpush2.bf16.msra.mxu0 0
  %864 = vmatprep.subr.bf16.mxu0 0
  %865 = vmatpush2.bf16.msra.mxu0 0
  %866 = vmatprep.subr.bf16.mxu0 0
  %867 = vmatpush2.bf16.msra.mxu0 0
  %868 = vmatprep.subr.bf16.mxu0 0
  %869 = vmatpush2.bf16.msra.mxu0 0
  %870 = vmatprep.subr.bf16.mxu0 0
  %871 = vmatpush2.bf16.msra.mxu0 0
  %872 = vmatprep.mubr.bf16.mxu0 0
  %873 = vmatmul.mubr.bf16.gmra.mxu0 %v838
  %v874 = vpop.f32.mrf.mxu0
  %v875 = vadd.f32 0.0, %v874
  %v876 = vpop.f32.mrf.mxu0
  %v877 = vpop.f32.mrf.mxu0
  %v878 = vpop.f32.mrf.mxu0
  %879 = vdwg.mxu0
  %v888 = vunpack.c.l.b16 %v784
  %v889 = vunpack.c.l.b16 %v785
  %v890 = vunpack.c.l.b16 %v786
  %v891 = vunpack.c.l.b16 %v787
  %v892 = vunpack.c.l.b16 %v788
  %v893 = vunpack.c.l.b16 %v789
  %v894 = vunpack.c.l.b16 %v790
  %v895 = vunpack.c.l.b16 %v791
  %v896 = vpack.c.b16 %v889, %v888
  %v897 = vpack.c.b16 %v891, %v890
  %v898 = vpack.c.b16 %v893, %v892
  %v899 = vpack.c.b16 %v895, %v894
  %v905 = vsel %vm71, %v783, 0
  %907 = vmatprep.subr.bf16.mxu0 0
  %908 = vmatpush1.bf16.msra.mxu0 0
  %909 = vmatprep.subr.bf16.mxu0 0
  %910 = vmatpush1.bf16.msra.mxu0 0
  %911 = vmatprep.subr.bf16.mxu0 0
  %912 = vmatpush1.bf16.msra.mxu0 0
  %913 = vmatprep.subr.bf16.mxu0 0
  %914 = vmatpush1.bf16.msra.mxu0 0
  %915 = vmatprep.subr.bf16.mxu0 0
  %916 = vmatpush1.bf16.msra.mxu0 %v899
  %917 = vmatprep.subr.bf16.mxu0 0
  %918 = vmatpush1.bf16.msra.mxu0 %v898
  %919 = vmatprep.subr.bf16.mxu0 0
  %920 = vmatpush1.bf16.msra.mxu0 %v897
  %921 = vmatprep.subr.bf16.mxu0 0
  %922 = vmatpush1.bf16.msra.mxu0 %v896
  %923 = vmatprep.subr.bf16.mxu0 0
  %924 = vmatpush2.bf16.msra.mxu0 0
  %925 = vmatprep.subr.bf16.mxu0 0
  %926 = vmatpush2.bf16.msra.mxu0 0
  %927 = vmatprep.subr.bf16.mxu0 0
  %928 = vmatpush2.bf16.msra.mxu0 0
  %929 = vmatprep.subr.bf16.mxu0 0
  %930 = vmatpush2.bf16.msra.mxu0 0
  %931 = vmatprep.subr.bf16.mxu0 0
  %932 = vmatpush2.bf16.msra.mxu0 0
  %933 = vmatprep.subr.bf16.mxu0 0
  %934 = vmatpush2.bf16.msra.mxu0 0
  %935 = vmatprep.subr.bf16.mxu0 0
  %936 = vmatpush2.bf16.msra.mxu0 0
  %937 = vmatprep.subr.bf16.mxu0 0
  %938 = vmatpush2.bf16.msra.mxu0 0
  %939 = vmatprep.mubr.bf16.mxu0 0
  %940 = vmatmul.mubr.bf16.gmra.mxu0 %v905
  %v941 = vpop.f32.mrf.mxu0
  %v942 = vadd.f32 %v875, %v941
  %v943 = vpop.f32.mrf.mxu0
  %v944 = vpop.f32.mrf.mxu0
  %v945 = vpop.f32.mrf.mxu0
  %946 = vdwg.mxu0
  %v947 = vld [vmem:[%s782] sm:$0xe]
  %v948 = vld [vmem:[%s183] sm:$0xf]
  %v949 = vld [vmem:[%s183 + $0x4] sm:$0xf]
  %v950 = vld [vmem:[%s183 + $0x8] sm:$0xf]
  %v951 = vld [vmem:[%s183 + $0xc] sm:$0xf]
  %v952 = vld [vmem:[%s183 + $0x10] sm:$0xf]
  %v953 = vld [vmem:[%s183 + $0x14] sm:$0xf]
  %v954 = vld [vmem:[%s183 + $0x18] sm:$0xf]
  %v955 = vld [vmem:[%s183 + $0x1c] sm:$0xf]
  %v957 = vunpack.c.l.b16 %v947
  %v958 = vpack.c.b16 %v804, %v957
  %v959 = vrot.slane %v958, 1
  %v968 = vunpack.c.l.b16 %v948
  %v969 = vunpack.c.l.b16 %v949
  %v970 = vunpack.c.l.b16 %v950
  %v971 = vunpack.c.l.b16 %v951
  %v972 = vunpack.c.l.b16 %v952
  %v973 = vunpack.c.l.b16 %v953
  %v974 = vunpack.c.l.b16 %v954
  %v975 = vunpack.c.l.b16 %v955
  %v976 = vpack.c.b16 %v969, %v968
  %v977 = vpack.c.b16 %v971, %v970
  %v978 = vpack.c.b16 %v973, %v972
  %v979 = vpack.c.b16 %v975, %v974
  %v985 = vsel %vm71, %v959, 0
  %987 = vmatprep.subr.bf16.mxu0 0
  %988 = vmatpush1.bf16.msra.mxu0 0
  %989 = vmatprep.subr.bf16.mxu0 0
  %990 = vmatpush1.bf16.msra.mxu0 0
  %991 = vmatprep.subr.bf16.mxu0 0
  %992 = vmatpush1.bf16.msra.mxu0 0
  %993 = vmatprep.subr.bf16.mxu0 0
  %994 = vmatpush1.bf16.msra.mxu0 0
  %995 = vmatprep.subr.bf16.mxu0 0
  %996 = vmatpush1.bf16.msra.mxu0 %v979
  %997 = vmatprep.subr.bf16.mxu0 0
  %998 = vmatpush1.bf16.msra.mxu0 %v978
  %999 = vmatprep.subr.bf16.mxu0 0
  %1000 = vmatpush1.bf16.msra.mxu0 %v977
  %1001 = vmatprep.subr.bf16.mxu0 0
  %1002 = vmatpush1.bf16.msra.mxu0 %v976
  %1003 = vmatprep.subr.bf16.mxu0 0
  %1004 = vmatpush2.bf16.msra.mxu0 0
  %1005 = vmatprep.subr.bf16.mxu0 0
  %1006 = vmatpush2.bf16.msra.mxu0 0
  %1007 = vmatprep.subr.bf16.mxu0 0
  %1008 = vmatpush2.bf16.msra.mxu0 0
  %1009 = vmatprep.subr.bf16.mxu0 0
  %1010 = vmatpush2.bf16.msra.mxu0 0
  %1011 = vmatprep.subr.bf16.mxu0 0
  %1012 = vmatpush2.bf16.msra.mxu0 0
  %1013 = vmatprep.subr.bf16.mxu0 0
  %1014 = vmatpush2.bf16.msra.mxu0 0
  %1015 = vmatprep.subr.bf16.mxu0 0
  %1016 = vmatpush2.bf16.msra.mxu0 0
  %1017 = vmatprep.subr.bf16.mxu0 0
  %1018 = vmatpush2.bf16.msra.mxu0 0
  %1019 = vmatprep.mubr.bf16.mxu0 0
  %1020 = vmatmul.mubr.bf16.gmra.mxu0 %v985
  %v1021 = vpop.f32.mrf.mxu0
  %v1022 = vadd.f32 0.0, %v1021
  %v1023 = vpop.f32.mrf.mxu0
  %v1024 = vpop.f32.mrf.mxu0
  %v1025 = vpop.f32.mrf.mxu0
  %1026 = vdwg.mxu0
  %v1027 = vadd.f32 %v942, %v1022
  %v1028 = vld [vmem:[%s782] sm:$0xc]
  %v1029 = vld [vmem:[%s782 + $0x4] sm:$0x3]
  %v1030 = vld [vmem:[%s266] sm:$0xf]
  %v1031 = vld [vmem:[%s266 + $0x4] sm:$0xf]
  %v1032 = vld [vmem:[%s266 + $0x8] sm:$0xf]
  %v1033 = vld [vmem:[%s266 + $0xc] sm:$0xf]
  %v1034 = vld [vmem:[%s266 + $0x10] sm:$0xf]
  %v1035 = vld [vmem:[%s266 + $0x14] sm:$0xf]
  %v1036 = vld [vmem:[%s266 + $0x18] sm:$0xf]
  %v1037 = vld [vmem:[%s266 + $0x1c] sm:$0xf]
  %v1040 = vunpack.c.l.b16 %v1028
  %v1041 = vunpack.c.l.b16 %v1029
  %v1042 = vpack.c.b16 %v1041, %v1040
  %v1043 = vrot.slane %v1042, 2
  %v1052 = vunpack.c.l.b16 %v1030
  %v1053 = vunpack.c.l.b16 %v1031
  %v1054 = vunpack.c.l.b16 %v1032
  %v1055 = vunpack.c.l.b16 %v1033
  %v1056 = vunpack.c.l.b16 %v1034
  %v1057 = vunpack.c.l.b16 %v1035
  %v1058 = vunpack.c.l.b16 %v1036
  %v1059 = vunpack.c.l.b16 %v1037
  %v1060 = vpack.c.b16 %v1053, %v1052
  %v1061 = vpack.c.b16 %v1055, %v1054
  %v1062 = vpack.c.b16 %v1057, %v1056
  %v1063 = vpack.c.b16 %v1059, %v1058
  %v1069 = vsel %vm71, %v1043, 0
  %1071 = vmatprep.subr.bf16.mxu0 0
  %1072 = vmatpush1.bf16.msra.mxu0 0
  %1073 = vmatprep.subr.bf16.mxu0 0
  %1074 = vmatpush1.bf16.msra.mxu0 0
  %1075 = vmatprep.subr.bf16.mxu0 0
  %1076 = vmatpush1.bf16.msra.mxu0 0
  %1077 = vmatprep.subr.bf16.mxu0 0
  %1078 = vmatpush1.bf16.msra.mxu0 0
  %1079 = vmatprep.subr.bf16.mxu0 0
  %1080 = vmatpush1.bf16.msra.mxu0 %v1063
  %1081 = vmatprep.subr.bf16.mxu0 0
  %1082 = vmatpush1.bf16.msra.mxu0 %v1062
  %1083 = vmatprep.subr.bf16.mxu0 0
  %1084 = vmatpush1.bf16.msra.mxu0 %v1061
  %1085 = vmatprep.subr.bf16.mxu0 0
  %1086 = vmatpush1.bf16.msra.mxu0 %v1060
  %1087 = vmatprep.subr.bf16.mxu0 0
  %1088 = vmatpush2.bf16.msra.mxu0 0
  %1089 = vmatprep.subr.bf16.mxu0 0
  %1090 = vmatpush2.bf16.msra.mxu0 0
  %1091 = vmatprep.subr.bf16.mxu0 0
  %1092 = vmatpush2.bf16.msra.mxu0 0
  %1093 = vmatprep.subr.bf16.mxu0 0
  %1094 = vmatpush2.bf16.msra.mxu0 0
  %1095 = vmatprep.subr.bf16.mxu0 0
  %1096 = vmatpush2.bf16.msra.mxu0 0
  %1097 = vmatprep.subr.bf16.mxu0 0
  %1098 = vmatpush2.bf16.msra.mxu0 0
  %1099 = vmatprep.subr.bf16.mxu0 0
  %1100 = vmatpush2.bf16.msra.mxu0 0
  %1101 = vmatprep.subr.bf16.mxu0 0
  %1102 = vmatpush2.bf16.msra.mxu0 0
  %1103 = vmatprep.mubr.bf16.mxu0 0
  %1104 = vmatmul.mubr.bf16.gmra.mxu0 %v1069
  %v1105 = vpop.f32.mrf.mxu0
  %v1106 = vadd.f32 0.0, %v1105
  %v1107 = vpop.f32.mrf.mxu0
  %v1108 = vpop.f32.mrf.mxu0
  %v1109 = vpop.f32.mrf.mxu0
  %1110 = vdwg.mxu0
  %v1111 = vadd.f32 %v1027, %v1106
  %v1112 = vld [vmem:[%s782 + $0x4] sm:$0x7]
  %v1113 = vld [vmem:[%s350] sm:$0xf]
  %v1114 = vld [vmem:[%s350 + $0x4] sm:$0xf]
  %v1115 = vld [vmem:[%s350 + $0x8] sm:$0xf]
  %v1116 = vld [vmem:[%s350 + $0xc] sm:$0xf]
  %v1117 = vld [vmem:[%s350 + $0x10] sm:$0xf]
  %v1118 = vld [vmem:[%s350 + $0x14] sm:$0xf]
  %v1119 = vld [vmem:[%s350 + $0x18] sm:$0xf]
  %v1120 = vld [vmem:[%s350 + $0x1c] sm:$0xf]
  %v1122 = vunpack.c.l.b16 %v1112
  %v1123 = vpack.c.b16 %v1122, %v1040
  %v1125 = vshrl.u32 %v1123, 16
  %v1127 = vrot.slane %v1125, 2
  %v1128 = vshll.u32 %v1123, 16
  %v1130 = vrot.slane %v1128, 3
  %v1131 = vor.u32 %v1127, %v1130
  %v1140 = vunpack.c.l.b16 %v1113
  %v1141 = vunpack.c.l.b16 %v1114
  %v1142 = vunpack.c.l.b16 %v1115
  %v1143 = vunpack.c.l.b16 %v1116
  %v1144 = vunpack.c.l.b16 %v1117
  %v1145 = vunpack.c.l.b16 %v1118
  %v1146 = vunpack.c.l.b16 %v1119
  %v1147 = vunpack.c.l.b16 %v1120
  %v1148 = vpack.c.b16 %v1141, %v1140
  %v1149 = vpack.c.b16 %v1143, %v1142
  %v1150 = vpack.c.b16 %v1145, %v1144
  %v1151 = vpack.c.b16 %v1147, %v1146
  %v1157 = vsel %vm71, %v1131, 0
  %1159 = vmatprep.subr.bf16.mxu0 0
  %1160 = vmatpush1.bf16.msra.mxu0 0
  %1161 = vmatprep.subr.bf16.mxu0 0
  %1162 = vmatpush1.bf16.msra.mxu0 0
  %1163 = vmatprep.subr.bf16.mxu0 0
  %1164 = vmatpush1.bf16.msra.mxu0 0
  %1165 = vmatprep.subr.bf16.mxu0 0
  %1166 = vmatpush1.bf16.msra.mxu0 0
  %1167 = vmatprep.subr.bf16.mxu0 0
  %1168 = vmatpush1.bf16.msra.mxu0 %v1151
  %1169 = vmatprep.subr.bf16.mxu0 0
  %1170 = vmatpush1.bf16.msra.mxu0 %v1150
  %1171 = vmatprep.subr.bf16.mxu0 0
  %1172 = vmatpush1.bf16.msra.mxu0 %v1149
  %1173 = vmatprep.subr.bf16.mxu0 0
  %1174 = vmatpush1.bf16.msra.mxu0 %v1148
  %1175 = vmatprep.subr.bf16.mxu0 0
  %1176 = vmatpush2.bf16.msra.mxu0 0
  %1177 = vmatprep.subr.bf16.mxu0 0
  %1178 = vmatpush2.bf16.msra.mxu0 0
  %1179 = vmatprep.subr.bf16.mxu0 0
  %1180 = vmatpush2.bf16.msra.mxu0 0
  %1181 = vmatprep.subr.bf16.mxu0 0
  %1182 = vmatpush2.bf16.msra.mxu0 0
  %1183 = vmatprep.subr.bf16.mxu0 0
  %1184 = vmatpush2.bf16.msra.mxu0 0
  %1185 = vmatprep.subr.bf16.mxu0 0
  %1186 = vmatpush2.bf16.msra.mxu0 0
  %1187 = vmatprep.subr.bf16.mxu0 0
  %1188 = vmatpush2.bf16.msra.mxu0 0
  %1189 = vmatprep.subr.bf16.mxu0 0
  %1190 = vmatpush2.bf16.msra.mxu0 0
  %1191 = vmatprep.mubr.bf16.mxu0 0
  %1192 = vmatmul.mubr.bf16.gmra.mxu0 %v1157
  %v1193 = vpop.f32.mrf.mxu0
  %v1194 = vadd.f32 0.0, %v1193
  %v1195 = vpop.f32.mrf.mxu0
  %v1196 = vpop.f32.mrf.mxu0
  %v1197 = vpop.f32.mrf.mxu0
  %1198 = vdwg.mxu0
  %v1199 = vadd.f32 %v1111, %v1194
  %v1200 = vld [vmem:[%s782] sm:$0x8]
  %v1201 = vld [vmem:[%s439] sm:$0xf]
  %v1202 = vld [vmem:[%s439 + $0x4] sm:$0xf]
  %v1203 = vld [vmem:[%s439 + $0x8] sm:$0xf]
  %v1204 = vld [vmem:[%s439 + $0xc] sm:$0xf]
  %v1205 = vld [vmem:[%s439 + $0x10] sm:$0xf]
  %v1206 = vld [vmem:[%s439 + $0x14] sm:$0xf]
  %v1207 = vld [vmem:[%s439 + $0x18] sm:$0xf]
  %v1208 = vld [vmem:[%s439 + $0x1c] sm:$0xf]
  %v1210 = vunpack.c.l.b16 %v1200
  %v1211 = vpack.c.b16 %v1122, %v1210
  %v1212 = vrot.slane %v1211, 3
  %v1221 = vunpack.c.l.b16 %v1201
  %v1222 = vunpack.c.l.b16 %v1202
  %v1223 = vunpack.c.l.b16 %v1203
  %v1224 = vunpack.c.l.b16 %v1204
  %v1225 = vunpack.c.l.b16 %v1205
  %v1226 = vunpack.c.l.b16 %v1206
  %v1227 = vunpack.c.l.b16 %v1207
  %v1228 = vunpack.c.l.b16 %v1208
  %v1229 = vpack.c.b16 %v1222, %v1221
  %v1230 = vpack.c.b16 %v1224, %v1223
  %v1231 = vpack.c.b16 %v1226, %v1225
  %v1232 = vpack.c.b16 %v1228, %v1227
  %v1238 = vsel %vm71, %v1212, 0
  %1240 = vmatprep.subr.bf16.mxu0 0
  %1241 = vmatpush1.bf16.msra.mxu0 0
  %1242 = vmatprep.subr.bf16.mxu0 0
  %1243 = vmatpush1.bf16.msra.mxu0 0
  %1244 = vmatprep.subr.bf16.mxu0 0
  %1245 = vmatpush1.bf16.msra.mxu0 0
  %1246 = vmatprep.subr.bf16.mxu0 0
  %1247 = vmatpush1.bf16.msra.mxu0 0
  %1248 = vmatprep.subr.bf16.mxu0 0
  %1249 = vmatpush1.bf16.msra.mxu0 %v1232
  %1250 = vmatprep.subr.bf16.mxu0 0
  %1251 = vmatpush1.bf16.msra.mxu0 %v1231
  %1252 = vmatprep.subr.bf16.mxu0 0
  %1253 = vmatpush1.bf16.msra.mxu0 %v1230
  %1254 = vmatprep.subr.bf16.mxu0 0
  %1255 = vmatpush1.bf16.msra.mxu0 %v1229
  %1256 = vmatprep.subr.bf16.mxu0 0
  %1257 = vmatpush2.bf16.msra.mxu0 0
  %1258 = vmatprep.subr.bf16.mxu0 0
  %1259 = vmatpush2.bf16.msra.mxu0 0
  %1260 = vmatprep.subr.bf16.mxu0 0
  %1261 = vmatpush2.bf16.msra.mxu0 0
  %1262 = vmatprep.subr.bf16.mxu0 0
  %1263 = vmatpush2.bf16.msra.mxu0 0
  %1264 = vmatprep.subr.bf16.mxu0 0
  %1265 = vmatpush2.bf16.msra.mxu0 0
  %1266 = vmatprep.subr.bf16.mxu0 0
  %1267 = vmatpush2.bf16.msra.mxu0 0
  %1268 = vmatprep.subr.bf16.mxu0 0
  %1269 = vmatpush2.bf16.msra.mxu0 0
  %1270 = vmatprep.subr.bf16.mxu0 0
  %1271 = vmatpush2.bf16.msra.mxu0 0
  %1272 = vmatprep.mubr.bf16.mxu0 0
  %1273 = vmatmul.mubr.bf16.gmra.mxu0 %v1238
  %v1274 = vpop.f32.mrf.mxu0
  %v1275 = vadd.f32 0.0, %v1274
  %v1276 = vpop.f32.mrf.mxu0
  %v1277 = vpop.f32.mrf.mxu0
  %v1278 = vpop.f32.mrf.mxu0
  %1279 = vdwg.mxu0
  %v1280 = vadd.f32 %v1199, %v1275
  %v1281 = vld [vmem:[%s782 + $0x4] sm:$0xf]
  %v1282 = vld [vmem:[%s521] sm:$0xf]
  %v1283 = vld [vmem:[%s521 + $0x4] sm:$0xf]
  %v1284 = vld [vmem:[%s521 + $0x8] sm:$0xf]
  %v1285 = vld [vmem:[%s521 + $0xc] sm:$0xf]
  %v1286 = vld [vmem:[%s521 + $0x10] sm:$0xf]
  %v1287 = vld [vmem:[%s521 + $0x14] sm:$0xf]
  %v1288 = vld [vmem:[%s521 + $0x18] sm:$0xf]
  %v1289 = vld [vmem:[%s521 + $0x1c] sm:$0xf]
  %v1298 = vunpack.c.l.b16 %v1282
  %v1299 = vunpack.c.l.b16 %v1283
  %v1300 = vunpack.c.l.b16 %v1284
  %v1301 = vunpack.c.l.b16 %v1285
  %v1302 = vunpack.c.l.b16 %v1286
  %v1303 = vunpack.c.l.b16 %v1287
  %v1304 = vunpack.c.l.b16 %v1288
  %v1305 = vunpack.c.l.b16 %v1289
  %v1306 = vpack.c.b16 %v1299, %v1298
  %v1307 = vpack.c.b16 %v1301, %v1300
  %v1308 = vpack.c.b16 %v1303, %v1302
  %v1309 = vpack.c.b16 %v1305, %v1304
  %v1315 = vsel %vm71, %v1281, 0
  %1317 = vmatprep.subr.bf16.mxu0 0
  %1318 = vmatpush1.bf16.msra.mxu0 0
  %1319 = vmatprep.subr.bf16.mxu0 0
  %1320 = vmatpush1.bf16.msra.mxu0 0
  %1321 = vmatprep.subr.bf16.mxu0 0
  %1322 = vmatpush1.bf16.msra.mxu0 0
  %1323 = vmatprep.subr.bf16.mxu0 0
  %1324 = vmatpush1.bf16.msra.mxu0 0
  %1325 = vmatprep.subr.bf16.mxu0 0
  %1326 = vmatpush1.bf16.msra.mxu0 %v1309
  %1327 = vmatprep.subr.bf16.mxu0 0
  %1328 = vmatpush1.bf16.msra.mxu0 %v1308
  %1329 = vmatprep.subr.bf16.mxu0 0
  %1330 = vmatpush1.bf16.msra.mxu0 %v1307
  %1331 = vmatprep.subr.bf16.mxu0 0
  %1332 = vmatpush1.bf16.msra.mxu0 %v1306
  %1333 = vmatprep.subr.bf16.mxu0 0
  %1334 = vmatpush2.bf16.msra.mxu0 0
  %1335 = vmatprep.subr.bf16.mxu0 0
  %1336 = vmatpush2.bf16.msra.mxu0 0
  %1337 = vmatprep.subr.bf16.mxu0 0
  %1338 = vmatpush2.bf16.msra.mxu0 0
  %1339 = vmatprep.subr.bf16.mxu0 0
  %1340 = vmatpush2.bf16.msra.mxu0 0
  %1341 = vmatprep.subr.bf16.mxu0 0
  %1342 = vmatpush2.bf16.msra.mxu0 0
  %1343 = vmatprep.subr.bf16.mxu0 0
  %1344 = vmatpush2.bf16.msra.mxu0 0
  %1345 = vmatprep.subr.bf16.mxu0 0
  %1346 = vmatpush2.bf16.msra.mxu0 0
  %1347 = vmatprep.subr.bf16.mxu0 0
  %1348 = vmatpush2.bf16.msra.mxu0 0
  %1349 = vmatprep.mubr.bf16.mxu0 0
  %1350 = vmatmul.mubr.bf16.gmra.mxu0 %v1315
  %v1351 = vpop.f32.mrf.mxu0
  %v1352 = vadd.f32 0.0, %v1351
  %v1353 = vpop.f32.mrf.mxu0
  %v1354 = vpop.f32.mrf.mxu0
  %v1355 = vpop.f32.mrf.mxu0
  %1356 = vdwg.mxu0
  %v1357 = vadd.f32 %v1280, %v1352
  %v1358 = vld [vmem:[%s782 + $0x4] sm:$0xf]
  %v1359 = vld [vmem:[%s782 + $0x8] sm:$0x1]
  %v1360 = vld [vmem:[%s600] sm:$0xf]
  %v1361 = vld [vmem:[%s600 + $0x4] sm:$0xf]
  %v1362 = vld [vmem:[%s600 + $0x8] sm:$0xf]
  %v1363 = vld [vmem:[%s600 + $0xc] sm:$0xf]
  %v1364 = vld [vmem:[%s600 + $0x10] sm:$0xf]
  %v1365 = vld [vmem:[%s600 + $0x14] sm:$0xf]
  %v1366 = vld [vmem:[%s600 + $0x18] sm:$0xf]
  %v1367 = vld [vmem:[%s600 + $0x1c] sm:$0xf]
  %v1370 = vunpack.c.l.b16 %v1358
  %v1371 = vunpack.c.l.b16 %v1359
  %v1372 = vpack.c.b16 %v1371, %v1370
  %v1374 = vshrl.u32 %v1372, 16
  %v1376 = vshll.u32 %v1372, 16
  %v1378 = vrot.slane %v1376, 1
  %v1379 = vor.u32 %v1374, %v1378
  %v1388 = vunpack.c.l.b16 %v1360
  %v1389 = vunpack.c.l.b16 %v1361
  %v1390 = vunpack.c.l.b16 %v1362
  %v1391 = vunpack.c.l.b16 %v1363
  %v1392 = vunpack.c.l.b16 %v1364
  %v1393 = vunpack.c.l.b16 %v1365
  %v1394 = vunpack.c.l.b16 %v1366
  %v1395 = vunpack.c.l.b16 %v1367
  %v1396 = vpack.c.b16 %v1389, %v1388
  %v1397 = vpack.c.b16 %v1391, %v1390
  %v1398 = vpack.c.b16 %v1393, %v1392
  %v1399 = vpack.c.b16 %v1395, %v1394
  %v1405 = vsel %vm71, %v1379, 0
  %1407 = vmatprep.subr.bf16.mxu0 0
  %1408 = vmatpush1.bf16.msra.mxu0 0
  %1409 = vmatprep.subr.bf16.mxu0 0
  %1410 = vmatpush1.bf16.msra.mxu0 0
  %1411 = vmatprep.subr.bf16.mxu0 0
  %1412 = vmatpush1.bf16.msra.mxu0 0
  %1413 = vmatprep.subr.bf16.mxu0 0
  %1414 = vmatpush1.bf16.msra.mxu0 0
  %1415 = vmatprep.subr.bf16.mxu0 0
  %1416 = vmatpush1.bf16.msra.mxu0 %v1399
  %1417 = vmatprep.subr.bf16.mxu0 0
  %1418 = vmatpush1.bf16.msra.mxu0 %v1398
  %1419 = vmatprep.subr.bf16.mxu0 0
  %1420 = vmatpush1.bf16.msra.mxu0 %v1397
  %1421 = vmatprep.subr.bf16.mxu0 0
  %1422 = vmatpush1.bf16.msra.mxu0 %v1396
  %1423 = vmatprep.subr.bf16.mxu0 0
  %1424 = vmatpush2.bf16.msra.mxu0 0
  %1425 = vmatprep.subr.bf16.mxu0 0
  %1426 = vmatpush2.bf16.msra.mxu0 0
  %1427 = vmatprep.subr.bf16.mxu0 0
  %1428 = vmatpush2.bf16.msra.mxu0 0
  %1429 = vmatprep.subr.bf16.mxu0 0
  %1430 = vmatpush2.bf16.msra.mxu0 0
  %1431 = vmatprep.subr.bf16.mxu0 0
  %1432 = vmatpush2.bf16.msra.mxu0 0
  %1433 = vmatprep.subr.bf16.mxu0 0
  %1434 = vmatpush2.bf16.msra.mxu0 0
  %1435 = vmatprep.subr.bf16.mxu0 0
  %1436 = vmatpush2.bf16.msra.mxu0 0
  %1437 = vmatprep.subr.bf16.mxu0 0
  %1438 = vmatpush2.bf16.msra.mxu0 0
  %1439 = vmatprep.mubr.bf16.mxu0 0
  %1440 = vmatmul.mubr.bf16.gmra.mxu0 %v1405
  %v1441 = vpop.f32.mrf.mxu0
  %v1442 = vadd.f32 0.0, %v1441
  %v1443 = vpop.f32.mrf.mxu0
  %v1444 = vpop.f32.mrf.mxu0
  %v1445 = vpop.f32.mrf.mxu0
  %1446 = vdwg.mxu0
  %v1447 = vadd.f32 %v1357, %v1442
  %v1448 = vld [vmem:[%s782 + $0x4] sm:$0xe]
  %v1449 = vld [vmem:[%s690] sm:$0xf]
  %v1450 = vld [vmem:[%s690 + $0x4] sm:$0xf]
  %v1451 = vld [vmem:[%s690 + $0x8] sm:$0xf]
  %v1452 = vld [vmem:[%s690 + $0xc] sm:$0xf]
  %v1453 = vld [vmem:[%s690 + $0x10] sm:$0xf]
  %v1454 = vld [vmem:[%s690 + $0x14] sm:$0xf]
  %v1455 = vld [vmem:[%s690 + $0x18] sm:$0xf]
  %v1456 = vld [vmem:[%s690 + $0x1c] sm:$0xf]
  %v1458 = vunpack.c.l.b16 %v1448
  %v1459 = vpack.c.b16 %v1371, %v1458
  %v1460 = vrot.slane %v1459, 1
  %v1469 = vunpack.c.l.b16 %v1449
  %v1470 = vunpack.c.l.b16 %v1450
  %v1471 = vunpack.c.l.b16 %v1451
  %v1472 = vunpack.c.l.b16 %v1452
  %v1473 = vunpack.c.l.b16 %v1453
  %v1474 = vunpack.c.l.b16 %v1454
  %v1475 = vunpack.c.l.b16 %v1455
  %v1476 = vunpack.c.l.b16 %v1456
  %v1477 = vpack.c.b16 %v1470, %v1469
  %v1478 = vpack.c.b16 %v1472, %v1471
  %v1479 = vpack.c.b16 %v1474, %v1473
  %v1480 = vpack.c.b16 %v1476, %v1475
  %v1486 = vsel %vm71, %v1460, 0
  %1488 = vmatprep.subr.bf16.mxu0 0
  %1489 = vmatpush1.bf16.msra.mxu0 0
  %1490 = vmatprep.subr.bf16.mxu0 0
  %1491 = vmatpush1.bf16.msra.mxu0 0
  %1492 = vmatprep.subr.bf16.mxu0 0
  %1493 = vmatpush1.bf16.msra.mxu0 0
  %1494 = vmatprep.subr.bf16.mxu0 0
  %1495 = vmatpush1.bf16.msra.mxu0 0
  %1496 = vmatprep.subr.bf16.mxu0 0
  %1497 = vmatpush1.bf16.msra.mxu0 %v1480
  %1498 = vmatprep.subr.bf16.mxu0 0
  %1499 = vmatpush1.bf16.msra.mxu0 %v1479
  %1500 = vmatprep.subr.bf16.mxu0 0
  %1501 = vmatpush1.bf16.msra.mxu0 %v1478
  %1502 = vmatprep.subr.bf16.mxu0 0
  %1503 = vmatpush1.bf16.msra.mxu0 %v1477
  %1504 = vmatprep.subr.bf16.mxu0 0
  %1505 = vmatpush2.bf16.msra.mxu0 0
  %1506 = vmatprep.subr.bf16.mxu0 0
  %1507 = vmatpush2.bf16.msra.mxu0 0
  %1508 = vmatprep.subr.bf16.mxu0 0
  %1509 = vmatpush2.bf16.msra.mxu0 0
  %1510 = vmatprep.subr.bf16.mxu0 0
  %1511 = vmatpush2.bf16.msra.mxu0 0
  %1512 = vmatprep.subr.bf16.mxu0 0
  %1513 = vmatpush2.bf16.msra.mxu0 0
  %1514 = vmatprep.subr.bf16.mxu0 0
  %1515 = vmatpush2.bf16.msra.mxu0 0
  %1516 = vmatprep.subr.bf16.mxu0 0
  %1517 = vmatpush2.bf16.msra.mxu0 0
  %1518 = vmatprep.subr.bf16.mxu0 0
  %1519 = vmatpush2.bf16.msra.mxu0 0
  %1520 = vmatprep.mubr.bf16.mxu0 0
  %1521 = vmatmul.mubr.bf16.gmra.mxu0 %v1486
  %v1522 = vpop.f32.mrf.mxu0
  %v1523 = vadd.f32 0.0, %v1522
  %v1524 = vpop.f32.mrf.mxu0
  %v1525 = vpop.f32.mrf.mxu0
  %v1526 = vpop.f32.mrf.mxu0
  %1527 = vdwg.mxu0
  %v1528 = vadd.f32 %v1447, %v1523
  %v1529 = vadd.f32 %v1528, %v775
  %v1530 = vmax.f32 %v1529, 0.0
  %v1531 = vpack.c.bf16 %v1530, %v1530
  %s1532 = scalar_lea.vmem %s3, 4
  %1533 = vst.msk [vmem:[%s1532] sm:$0xf] %vm780, %v1531
  // Predicated region
  $region14: #{qlearner_forward.6} parent=0 // pred_check
    _
  $region15: #{qlearner_forward.6} parent=0 // pred_check_branch
    %1535 = sbr.rel (0) target = $region17
  $region16: #{qlearner_forward.6} parent=0 // pred_region
    _
  $region17: #{qlearner_forward.6} parent=0 // pred_fallthru
    _
  // Predicated region
  $region18: #{qlearner_forward.6} parent=0 // pred_check
    _
  $region19: #{qlearner_forward.6} parent=0 // pred_check_branch
    %1537 = sbr.rel (0) target = $region21
  $region20: #{qlearner_forward.6} parent=0 // pred_region
    _
  $region21: #{qlearner_forward.6} parent=0 // pred_fallthru
    _

</llo_original>
